<compile_context>
chip_gen: v7x
topology: tpu7x:2x2x1
jax: 0.10.0
libtpu: 0.0.40
codegen_flags: <defaults>
</compile_context>

<pallas_src>
import functools
import math

import jax
import jax.numpy as jnp
import numpy as np
from jax.experimental import pallas as pl
from jax.experimental.pallas import tpu as pltpu

_NEG_BIAS = -1e9  # finite off-diagonal mask; never -inf (avoids inf-inf -> NaN)


# ----------------------------------------------------------------------------
# Kernel
# ----------------------------------------------------------------------------
def _attention_kernel(x_ref, wqkv_ref, bias_ref, wout_ref, o_ref,
                      qkv_ref, ho_ref, *,
                      heads, dim_head, dim, n_groups, g_rows,
                      compute_dtype, approx_recip, unroll):
    """One slab of wb windows (flattened to rows) per grid step.

    x_ref   : (wb*N, dim)               input tokens (io dtype)
    wqkv_ref: (dim, 3*dim)              fused qkv weight (q-columns pre-scaled)
    bias_ref: (heads, g_rows, g_rows)   block-diagonal rel-pos bias tile (f32)
    wout_ref: (dim, dim)                output projection weight
    o_ref   : (wb*N, dim)
    qkv_ref : VMEM scratch (wb*N, 3*dim), compute dtype
    ho_ref  : VMEM scratch (wb*N, dim),   concatenated per-head attention outputs
    """
    # ---- hoisted QKV projection over the whole slab (M = wb*N) ----
    x2d = x_ref[...].astype(compute_dtype)
    qkv = jnp.dot(x2d, wqkv_ref[...], preferred_element_type=jnp.float32)
    qkv_ref[...] = qkv.astype(compute_dtype)

    # ---- block-diagonal attention: 128-row groups, one head at a time ----
    def group_body(g, carry):
        base = pl.multiple_of(g * g_rows, g_rows)
        for hh in range(heads):            # heads is small -> static unroll
            lo = hh * dim_head
            qh = qkv_ref[pl.ds(base, g_rows), pl.ds(lo, dim_head)]
            kh = qkv_ref[pl.ds(base, g_rows), pl.ds(dim + lo, dim_head)]
            vh = qkv_ref[pl.ds(base, g_rows), pl.ds(2 * dim + lo, dim_head)]

            # sim = (q*scale) @ k^T over the whole group (scale folded into Wqkv);
            # cross-window entries are killed by the -1e9 additive bias below.
            sim = jax.lax.dot_general(
                qh, kh, (((1,), (1,)), ((), ())),
                preferred_element_type=jnp.float32)            # (g_rows, g_rows)
            sim = sim + bias_ref[hh]

            # lane-dense, max-stabilised softmax in f32
            m = jnp.max(sim, axis=-1, keepdims=True)
            e = jnp.exp(sim - m)                               # off-diag -> exactly 0
            s = jnp.sum(e, axis=-1, keepdims=True)
            inv = pl.reciprocal(s, approx=approx_recip)
            attn = (e * inv).astype(compute_dtype)

            oh = jnp.dot(attn, vh, preferred_element_type=jnp.float32)
            ho_ref[pl.ds(base, g_rows), pl.ds(lo, dim_head)] = oh.astype(compute_dtype)
        return carry

    jax.lax.fori_loop(0, n_groups, group_body, 0, unroll=unroll)

    # ---- hoisted output projection over the whole slab ----
    out2d = jnp.dot(ho_ref[...], wout_ref[...], preferred_element_type=jnp.float32)
    o_ref[...] = out2d.astype(o_ref.dtype)


# ----------------------------------------------------------------------------
# Host-side helpers
# ----------------------------------------------------------------------------
@functools.lru_cache(maxsize=None)
def _rel_pos_indices(window_size):
    pos = np.arange(window_size)
    gi, gj = np.meshgrid(pos, pos, indexing="ij")
    grid = np.stack([gi.reshape(-1), gj.reshape(-1)], axis=-1)        # (N, 2)
    rel = grid[:, None, :] - grid[None, :, :] + (window_size - 1)     # (N, N, 2)
    return np.asarray(rel[..., 0] * (2 * window_size - 1) + rel[..., 1])


def _rel_pos_bias(rel_pos_emb, window_size):
    """(heads, N, N) relative-position bias (one-time embedding gather)."""
    idx = jnp.asarray(_rel_pos_indices(window_size))
    bias = jnp.asarray(rel_pos_emb, jnp.float32)[idx]                 # (N, N, h)
    return jnp.transpose(bias, (2, 0, 1))                             # (h, N, N)


def _bias_tile(rel_pos_emb, window_size, g_win):
    """Block-diagonal (heads, g_win*N, g_win*N) bias tile, -1e9 off-diagonal."""
    bias = _rel_pos_bias(rel_pos_emb, window_size)                    # (h, N, N)
    h, n, _ = bias.shape
    eye = jnp.eye(g_win, dtype=jnp.float32)
    diag = jnp.einsum("ab,hij->haibj", eye, bias).reshape(h, g_win * n, g_win * n)
    offmask = 1.0 - jnp.kron(eye, jnp.ones((n, n), jnp.float32))
    return diag + _NEG_BIAS * offmask


def _padded_elems(shape):
    """Element count after TPU VMEM padding (lane -> 128, sublane -> 8)."""
    s = list(shape)
    s[-1] = -(-s[-1] // 128) * 128
    if len(s) >= 2:
        s[-2] = -(-s[-2] // 8) * 8
    n = 1
    for v in s:
        n *= v
    return n


def _vmem_bytes(wb, n_tok, dim, heads, g_rows, io_it, cp_it):
    rows = wb * n_tok
    total = 0
    total += 2 * _padded_elems((rows, dim)) * io_it            # x block (double-buffered)
    total += 2 * _padded_elems((rows, dim)) * io_it            # out block
    total += 2 * _padded_elems((dim, 3 * dim)) * cp_it         # Wqkv
    total += 2 * _padded_elems((heads, g_rows, g_rows)) * 4    # bias tile (f32)
    total += 2 * _padded_elems((dim, dim)) * cp_it             # Wout
    total += _padded_elems((rows, 3 * dim)) * cp_it            # qkv scratch
    total += _padded_elems((rows, dim)) * cp_it                # per-head outputs scratch
    return total


def _choose_window_batch(*, n_windows, n_tok, dim, heads, g_win,
                         io_itemsize, cp_itemsize,
                         slab_target=2 << 20, vmem_budget=24 << 20):
    g_rows = g_win * n_tok
    # ~2 MiB of HBM x bytes per grid step amortises the ~0.35 us step overhead.
    wb = max(1, slab_target // max(1, n_tok * dim * io_itemsize))
    # Keep >= 2 grid steps where possible so both v7x TensorCores get work.
    wb = min(wb, max(1, n_windows // 2))
    # Round to the attention-group multiple; prefer wb*N a multiple of 256
    # (fills the v6e/v7x MXU M dimension).
    mult = g_win
    m256 = 256 // math.gcd(256, n_tok)
    if m256 % g_win == 0 and wb >= m256:
        mult = m256
    wb = max(mult, (wb // mult) * mult)
    wb = min(wb, -(-n_windows // mult) * mult)
    # Shrink until the lane-padded VMEM usage fits the budget.
    while wb > mult and _vmem_bytes(wb, n_tok, dim, heads, g_rows,
                                    io_itemsize, cp_itemsize) > vmem_budget:
        wb -= mult
    return wb


# ----------------------------------------------------------------------------
# Public wrapper
# ----------------------------------------------------------------------------
def attention_pallas(x, w_qkv, w_out, rel_pos_emb, *, dim_head, window_size,
                     io_dtype=jnp.bfloat16, compute_dtype=jnp.bfloat16,
                     window_batch=None, unroll=2, approx_recip=None,
                     vmem_budget_bytes=24 << 20):
    """Window attention forward.  Weights are (in, out); x is (b,gx,gy,w1,w2,d).

    Returns the output in io_dtype (bf16 by default; the kernel is HBM-bound,
    so bf16 I/O roughly halves wall-clock).  Accumulation and softmax are f32.
    """
    b, gx, gy, w1, w2, d = x.shape
    assert w1 == window_size and w2 == window_size
    assert d % dim_head == 0
    heads = d // dim_head
    scale = dim_head ** -0.5
    n_windows = b * gx * gy
    n_tok = w1 * w2

    g_win = max(1, 128 // n_tok)       # windows packed per 128-row attention group
    g_rows = g_win * n_tok

    io_dtype = jnp.dtype(io_dtype)
    compute_dtype = jnp.dtype(compute_dtype)
    if approx_recip is None:           # exact divide for the f32 validation path
        approx_recip = compute_dtype != jnp.dtype(jnp.float32)

    # Fold the q scale into the qkv weight once; cast params to compute dtype.
    w_qkv_c = (jnp.asarray(w_qkv, jnp.float32)
               .at[:, :d].multiply(scale)
               .astype(compute_dtype))
    w_out_c = jnp.asarray(w_out, jnp.float32).astype(compute_dtype)
    bias_tile = _bias_tile(rel_pos_emb, window_size, g_win)   # (h, g_rows, g_rows) f32

    wb = window_batch or _choose_window_batch(
        n_windows=n_windows, n_tok=n_tok, dim=d, heads=heads, g_win=g_win,
        io_itemsize=io_dtype.itemsize, cp_itemsize=compute_dtype.itemsize,
        vmem_budget=vmem_budget_bytes)
    if wb % g_win:                     # keep group alignment for overrides
        wb = -(-wb // g_win) * g_win

    # Lane-friendly 2-D HBM layout: (rows, d); no in-kernel reshape relayouts.
    x2d = x.reshape(n_windows * n_tok, d).astype(io_dtype)
    n_pad = pl.cdiv(n_windows, wb) * wb
    if n_pad != n_windows:
        x2d = jnp.pad(x2d, ((0, (n_pad - n_windows) * n_tok), (0, 0)))

    rows_blk = wb * n_tok
    n_groups = wb // g_win
    vmem_need = _vmem_bytes(wb, n_tok, d, heads, g_rows,
                            io_dtype.itemsize, compute_dtype.itemsize)
    vmem_limit = int(min(vmem_need + (8 << 20), 48 << 20))   # headroom, never all of v7x

    kernel = functools.partial(
        _attention_kernel, heads=heads, dim_head=dim_head, dim=d,
        n_groups=n_groups, g_rows=g_rows,
        compute_dtype=compute_dtype, approx_recip=approx_recip,
        unroll=max(1, min(unroll, n_groups)))

    out2d = pl.pallas_call(
        kernel,
        out_shape=jax.ShapeDtypeStruct((n_pad * n_tok, d), io_dtype),
        grid_spec=pltpu.PrefetchScalarGridSpec(
            num_scalar_prefetch=0,
            grid=(n_pad // wb,),
            in_specs=[
                pl.BlockSpec((rows_blk, d), lambda i: (i, 0)),                 # x slab
                pl.BlockSpec((d, 3 * d), lambda i: (0, 0)),                    # Wqkv
                pl.BlockSpec((heads, g_rows, g_rows), lambda i: (0, 0, 0)),    # bias tile
                pl.BlockSpec((d, d), lambda i: (0, 0)),                        # Wout
            ],
            out_specs=pl.BlockSpec((rows_blk, d), lambda i: (i, 0)),
            scratch_shapes=[
                pltpu.VMEM((rows_blk, 3 * d), compute_dtype),   # qkv slab
                pltpu.VMEM((rows_blk, d), compute_dtype),       # per-head outputs
            ],
        ),
        compiler_params=pltpu.CompilerParams(
            dimension_semantics=("parallel",),
            vmem_limit_bytes=vmem_limit,
        ),
    )(x2d, w_qkv_c, bias_tile, w_out_c)

    out = out2d[: n_windows * n_tok]
    return out.reshape(b, gx, gy, w1, w2, d)


# ----------------------------------------------------------------------------
# Pure-JAX f32 reference mirroring the PyTorch forward exactly
# ----------------------------------------------------------------------------
def attention_reference(x, w_qkv, w_out, rel_pos_emb, *, dim_head, window_size):
    b, gx, gy, w1, w2, d = x.shape
    h = d // dim_head
    scale = dim_head ** -0.5
    xf = x.reshape(-1, w1 * w2, d).astype(jnp.float32)

    qkv = xf @ jnp.asarray(w_qkv, jnp.float32)
    q, k, v = jnp.split(qkv, 3, axis=-1)

    def split_heads(t):
        B, N, _ = t.shape
        return t.reshape(B, N, h, dim_head).transpose(0, 2, 1, 3)

    q, k, v = map(split_heads, (q, k, v))
    q = q * scale
    sim = jnp.einsum("bhid,bhjd->bhij", q, k)
    sim = sim + _rel_pos_bias(rel_pos_emb, window_size)[None]
    attn = jax.nn.softmax(sim, axis=-1)
    out = jnp.einsum("bhij,bhjd->bhid", attn, v)
    out = out.transpose(0, 2, 1, 3).reshape(-1, w1 * w2, d)
    out = out @ jnp.asarray(w_out, jnp.float32)
    return out.reshape(b, gx, gy, w1, w2, d)


if __name__ == "__main__":
    # dim=32, dim_head=16 -> heads=2, window_size=4 -> N=16 tokens/window
    # b=2, gx=4, gy=5 -> 40 windows (exercises grouping G=8, window batching,
    # a 3-step grid and window padding).
    dim = 32
    dim_head = 16
    window_size = 4
    b, gx, gy = 2, 4, 5

    key = jax.random.PRNGKey(0)
    kx, kqkv, kout, kemb = jax.random.split(key, 4)

    x = jax.random.normal(kx, (b, gx, gy, window_size, window_size, dim),
                          dtype=jnp.float32)
    # synthetic nn.Linear weights stored as (in, out)
    w_qkv = (jax.random.normal(kqkv, (dim, 3 * dim), dtype=jnp.float32)
             * (1.0 / jnp.sqrt(dim)))
    w_out = (jax.random.normal(kout, (dim, dim), dtype=jnp.float32)
             * (1.0 / jnp.sqrt(dim)))
    heads = dim // dim_head
    rel_pos_emb = jax.random.normal(
        kemb, ((2 * window_size - 1) ** 2, heads), dtype=jnp.float32)

    ref = attention_reference(x, w_qkv, w_out, rel_pos_emb,
                              dim_head=dim_head, window_size=window_size)

    # Tight check: f32 I/O, f32 MXU operands, exact softmax divide.
    out_f32 = attention_pallas(x, w_qkv, w_out, rel_pos_emb,
                               dim_head=dim_head, window_size=window_size,
                               io_dtype=jnp.float32, compute_dtype=jnp.float32)
    out_f32 = jax.block_until_ready(out_f32)
    assert out_f32.shape == ref.shape
    max_err = float(jnp.max(jnp.abs(out_f32 - ref)))
    assert max_err < 2e-3, f"f32 max abs err {max_err}"

    # Default fast path: bf16 HBM I/O + bf16 MXU operands, f32 accumulation.
    out_bf16 = attention_pallas(x, w_qkv, w_out, rel_pos_emb,
                                dim_head=dim_head, window_size=window_size)
    out_bf16 = jax.block_until_ready(out_bf16)
    assert out_bf16.shape == ref.shape
    rel_err = float(jnp.linalg.norm(out_bf16.astype(jnp.float32) - ref)
                    / jnp.linalg.norm(ref))
    assert rel_err < 3e-2, f"bf16 relative error {rel_err}"

    print("KERNEL_OK")
</pallas_src>

<mosaic_0001>
module attributes {stable_mosaic.version = 11 : i64} {
  func.func @_attention_kernel(%arg0: i32, %arg1: memref<256x32xf32, #tpu.memory_space<vmem>>, %arg2: memref<32x96xf32, #tpu.memory_space<vmem>>, %arg3: memref<2x128x128xf32, #tpu.memory_space<vmem>>, %arg4: memref<32x32xf32, #tpu.memory_space<vmem>>, %arg5: memref<256x32xf32, #tpu.memory_space<vmem>>, %arg6: memref<256x96xf32, #tpu.memory_space<vmem>>, %arg7: memref<256x32xf32, #tpu.memory_space<vmem>>) attributes {dimension_semantics = [#tpu.dimension_semantics<parallel>], iteration_bounds = array<i64: 3>, scalar_prefetch = 0 : i64, scratch_operands = 2 : i64, tpu.core_type = #tpu.core_type<tc>, window_params = [{transform_indices = @transform_0, window_bounds = array<i64: 256, 32>}, {pipeline_mode = #tpu.pipeline_mode<synchronous>, transform_indices = @transform_1, window_bounds = array<i64: 32, 96>}, {pipeline_mode = #tpu.pipeline_mode<synchronous>, transform_indices = @transform_2, window_bounds = array<i64: 2, 128, 128>}, {pipeline_mode = #tpu.pipeline_mode<synchronous>, transform_indices = @transform_3, window_bounds = array<i64: 32, 32>}, {transform_indices = @transform_4, window_bounds = array<i64: 256, 32>}]} {
    %c0 = arith.constant 0 : index
    %c0_0 = arith.constant 0 : index
    %0 = vector.load %arg1[%c0, %c0_0] : memref<256x32xf32, #tpu.memory_space<vmem>>, vector<256x32xf32>
    %c0_1 = arith.constant 0 : index
    %c0_2 = arith.constant 0 : index
    %1 = vector.load %arg2[%c0_1, %c0_2] : memref<32x96xf32, #tpu.memory_space<vmem>>, vector<32x96xf32>
    %cst = arith.constant dense<0.000000e+00> : vector<256x96xf32>
    %2 = tpu.matmul %0, %1, %cst {dimension_numbers = #tpu.dot_dimension_numbers<[1], [0], [0], [1], [0, 0, 1, 1], [], []>} : vector<256x32xf32>, vector<32x96xf32>, vector<256x96xf32> -> vector<256x96xf32>
    %c0_3 = arith.constant 0 : index
    %c0_4 = arith.constant 0 : index
    %3 = vector.load %arg6[%c0_3, %c0_4] : memref<256x96xf32, #tpu.memory_space<vmem>>, vector<256x96xf32>
    tpu.vector_store %arg6[%c0_3, %c0_4], %2 {strides = array<i32>} : memref<256x96xf32, #tpu.memory_space<vmem>>, vector<256x96xf32>,
    %c0_i32 = arith.constant 0 : i32
    %c128_i32 = arith.constant 128 : i32
    %4 = arith.muli %c0_i32, %c128_i32 : i32
    %5 = tpu.assume_multiple %4, 128 : i32
    %6 = arith.index_cast %5 : i32 to index
    %c0_5 = arith.constant 0 : index
    %7 = vector.load %arg6[%6, %c0_5] : memref<256x96xf32, #tpu.memory_space<vmem>>, vector<128x16xf32>
    %8 = arith.index_cast %5 : i32 to index
    %c32 = arith.constant 32 : index
    %9 = vector.load %arg6[%8, %c32] : memref<256x96xf32, #tpu.memory_space<vmem>>, vector<128x16xf32>
    %10 = arith.index_cast %5 : i32 to index
    %c64 = arith.constant 64 : index
    %11 = vector.load %arg6[%10, %c64] : memref<256x96xf32, #tpu.memory_space<vmem>>, vector<128x16xf32>
    %cst_6 = arith.constant dense<0.000000e+00> : vector<128x128xf32>
    %12 = tpu.matmul %7, %9, %cst_6 {dimension_numbers = #tpu.dot_dimension_numbers<[1], [1], [0], [0], [0, 0, 1, 0], [], []>} : vector<128x16xf32>, vector<128x16xf32>, vector<128x128xf32> -> vector<128x128xf32>
    %c0_7 = arith.constant 0 : index
    %c0_8 = arith.constant 0 : index
    %c0_9 = arith.constant 0 : index
    %13 = vector.load %arg3[%c0_7, %c0_8, %c0_9] : memref<2x128x128xf32, #tpu.memory_space<vmem>>, vector<1x128x128xf32>
    %14 = vector.shape_cast %13 : vector<1x128x128xf32> to vector<128x128xf32>
    %15 = arith.addf %12, %14 : vector<128x128xf32>
    %cst_10 = arith.constant dense<0xFF800000> : vector<128xf32>
    %16 = vector.multi_reduction <maximumf>, %15, %cst_10 [1] : vector<128x128xf32> to vector<128xf32>
    %17 = vector.shape_cast %16 : vector<128xf32> to vector<128x1xf32>
    %18 = vector.broadcast %17 : vector<128x1xf32> to vector<128x128xf32>
    %19 = arith.subf %15, %18 : vector<128x128xf32>
    %20 = math.exp %19 : vector<128x128xf32>
    %cst_11 = arith.constant dense<0.000000e+00> : vector<128xf32>
    %21 = vector.multi_reduction <add>, %20, %cst_11 [1] : vector<128x128xf32> to vector<128xf32>
    %22 = vector.shape_cast %21 : vector<128xf32> to vector<128x1xf32>
    %23 = tpu.reciprocal %22 : vector<128x1xf32> -> vector<128x1xf32>
    %24 = vector.broadcast %23 : vector<128x1xf32> to vector<128x128xf32>
    %25 = arith.mulf %20, %24 : vector<128x128xf32>
    %cst_12 = arith.constant dense<0.000000e+00> : vector<128x16xf32>
    %26 = tpu.matmul %25, %11, %cst_12 {dimension_numbers = #tpu.dot_dimension_numbers<[1], [0], [0], [1], [0, 0, 1, 1], [], []>} : vector<128x128xf32>, vector<128x16xf32>, vector<128x16xf32> -> vector<128x16xf32>
    %27 = arith.index_cast %5 : i32 to index
    %c0_13 = arith.constant 0 : index
    %28 = vector.load %arg7[%27, %c0_13] : memref<256x32xf32, #tpu.memory_space<vmem>>, vector<128x16xf32>
    tpu.vector_store %arg7[%27, %c0_13], %26 {strides = array<i32>} : memref<256x32xf32, #tpu.memory_space<vmem>>, vector<128x16xf32>,
    %29 = arith.index_cast %5 : i32 to index
    %c16 = arith.constant 16 : index
    %30 = vector.load %arg6[%29, %c16] : memref<256x96xf32, #tpu.memory_space<vmem>>, vector<128x16xf32>
    %31 = arith.index_cast %5 : i32 to index
    %c48 = arith.constant 48 : index
    %32 = vector.load %arg6[%31, %c48] : memref<256x96xf32, #tpu.memory_space<vmem>>, vector<128x16xf32>
    %33 = arith.index_cast %5 : i32 to index
    %c80 = arith.constant 80 : index
    %34 = vector.load %arg6[%33, %c80] : memref<256x96xf32, #tpu.memory_space<vmem>>, vector<128x16xf32>
    %cst_14 = arith.constant dense<0.000000e+00> : vector<128x128xf32>
    %35 = tpu.matmul %30, %32, %cst_14 {dimension_numbers = #tpu.dot_dimension_numbers<[1], [1], [0], [0], [0, 0, 1, 0], [], []>} : vector<128x16xf32>, vector<128x16xf32>, vector<128x128xf32> -> vector<128x128xf32>
    %c1 = arith.constant 1 : index
    %c0_15 = arith.constant 0 : index
    %c0_16 = arith.constant 0 : index
    %36 = vector.load %arg3[%c1, %c0_15, %c0_16] : memref<2x128x128xf32, #tpu.memory_space<vmem>>, vector<1x128x128xf32>
    %37 = vector.shape_cast %36 : vector<1x128x128xf32> to vector<128x128xf32>
    %38 = arith.addf %35, %37 : vector<128x128xf32>
    %cst_17 = arith.constant dense<0xFF800000> : vector<128xf32>
    %39 = vector.multi_reduction <maximumf>, %38, %cst_17 [1] : vector<128x128xf32> to vector<128xf32>
    %40 = vector.shape_cast %39 : vector<128xf32> to vector<128x1xf32>
    %41 = vector.broadcast %40 : vector<128x1xf32> to vector<128x128xf32>
    %42 = arith.subf %38, %41 : vector<128x128xf32>
    %43 = math.exp %42 : vector<128x128xf32>
    %cst_18 = arith.constant dense<0.000000e+00> : vector<128xf32>
    %44 = vector.multi_reduction <add>, %43, %cst_18 [1] : vector<128x128xf32> to vector<128xf32>
    %45 = vector.shape_cast %44 : vector<128xf32> to vector<128x1xf32>
    %46 = tpu.reciprocal %45 : vector<128x1xf32> -> vector<128x1xf32>
    %47 = vector.broadcast %46 : vector<128x1xf32> to vector<128x128xf32>
    %48 = arith.mulf %43, %47 : vector<128x128xf32>
    %cst_19 = arith.constant dense<0.000000e+00> : vector<128x16xf32>
    %49 = tpu.matmul %48, %34, %cst_19 {dimension_numbers = #tpu.dot_dimension_numbers<[1], [0], [0], [1], [0, 0, 1, 1], [], []>} : vector<128x128xf32>, vector<128x16xf32>, vector<128x16xf32> -> vector<128x16xf32>
    %50 = arith.index_cast %5 : i32 to index
    %c16_20 = arith.constant 16 : index
    %51 = vector.load %arg7[%50, %c16_20] : memref<256x32xf32, #tpu.memory_space<vmem>>, vector<128x16xf32>
    tpu.vector_store %arg7[%50, %c16_20], %49 {strides = array<i32>} : memref<256x32xf32, #tpu.memory_space<vmem>>, vector<128x16xf32>,
    %c1_i32 = arith.constant 1 : i32
    %c128_i32_21 = arith.constant 128 : i32
    %52 = arith.muli %c1_i32, %c128_i32_21 : i32
    %53 = tpu.assume_multiple %52, 128 : i32
    %54 = arith.index_cast %53 : i32 to index
    %c0_22 = arith.constant 0 : index
    %55 = vector.load %arg6[%54, %c0_22] : memref<256x96xf32, #tpu.memory_space<vmem>>, vector<128x16xf32>
    %56 = arith.index_cast %53 : i32 to index
    %c32_23 = arith.constant 32 : index
    %57 = vector.load %arg6[%56, %c32_23] : memref<256x96xf32, #tpu.memory_space<vmem>>, vector<128x16xf32>
    %58 = arith.index_cast %53 : i32 to index
    %c64_24 = arith.constant 64 : index
    %59 = vector.load %arg6[%58, %c64_24] : memref<256x96xf32, #tpu.memory_space<vmem>>, vector<128x16xf32>
    %cst_25 = arith.constant dense<0.000000e+00> : vector<128x128xf32>
    %60 = tpu.matmul %55, %57, %cst_25 {dimension_numbers = #tpu.dot_dimension_numbers<[1], [1], [0], [0], [0, 0, 1, 0], [], []>} : vector<128x16xf32>, vector<128x16xf32>, vector<128x128xf32> -> vector<128x128xf32>
    %c0_26 = arith.constant 0 : index
    %c0_27 = arith.constant 0 : index
    %c0_28 = arith.constant 0 : index
    %61 = vector.load %arg3[%c0_26, %c0_27, %c0_28] : memref<2x128x128xf32, #tpu.memory_space<vmem>>, vector<1x128x128xf32>
    %62 = vector.shape_cast %61 : vector<1x128x128xf32> to vector<128x128xf32>
    %63 = arith.addf %60, %62 : vector<128x128xf32>
    %cst_29 = arith.constant dense<0xFF800000> : vector<128xf32>
    %64 = vector.multi_reduction <maximumf>, %63, %cst_29 [1] : vector<128x128xf32> to vector<128xf32>
    %65 = vector.shape_cast %64 : vector<128xf32> to vector<128x1xf32>
    %66 = vector.broadcast %65 : vector<128x1xf32> to vector<128x128xf32>
    %67 = arith.subf %63, %66 : vector<128x128xf32>
    %68 = math.exp %67 : vector<128x128xf32>
    %cst_30 = arith.constant dense<0.000000e+00> : vector<128xf32>
    %69 = vector.multi_reduction <add>, %68, %cst_30 [1] : vector<128x128xf32> to vector<128xf32>
    %70 = vector.shape_cast %69 : vector<128xf32> to vector<128x1xf32>
    %71 = tpu.reciprocal %70 : vector<128x1xf32> -> vector<128x1xf32>
    %72 = vector.broadcast %71 : vector<128x1xf32> to vector<128x128xf32>
    %73 = arith.mulf %68, %72 : vector<128x128xf32>
    %cst_31 = arith.constant dense<0.000000e+00> : vector<128x16xf32>
    %74 = tpu.matmul %73, %59, %cst_31 {dimension_numbers = #tpu.dot_dimension_numbers<[1], [0], [0], [1], [0, 0, 1, 1], [], []>} : vector<128x128xf32>, vector<128x16xf32>, vector<128x16xf32> -> vector<128x16xf32>
    %75 = arith.index_cast %53 : i32 to index
    %c0_32 = arith.constant 0 : index
    %76 = vector.load %arg7[%75, %c0_32] : memref<256x32xf32, #tpu.memory_space<vmem>>, vector<128x16xf32>
    tpu.vector_store %arg7[%75, %c0_32], %74 {strides = array<i32>} : memref<256x32xf32, #tpu.memory_space<vmem>>, vector<128x16xf32>,
    %77 = arith.index_cast %53 : i32 to index
    %c16_33 = arith.constant 16 : index
    %78 = vector.load %arg6[%77, %c16_33] : memref<256x96xf32, #tpu.memory_space<vmem>>, vector<128x16xf32>
    %79 = arith.index_cast %53 : i32 to index
    %c48_34 = arith.constant 48 : index
    %80 = vector.load %arg6[%79, %c48_34] : memref<256x96xf32, #tpu.memory_space<vmem>>, vector<128x16xf32>
    %81 = arith.index_cast %53 : i32 to index
    %c80_35 = arith.constant 80 : index
    %82 = vector.load %arg6[%81, %c80_35] : memref<256x96xf32, #tpu.memory_space<vmem>>, vector<128x16xf32>
    %cst_36 = arith.constant dense<0.000000e+00> : vector<128x128xf32>
    %83 = tpu.matmul %78, %80, %cst_36 {dimension_numbers = #tpu.dot_dimension_numbers<[1], [1], [0], [0], [0, 0, 1, 0], [], []>} : vector<128x16xf32>, vector<128x16xf32>, vector<128x128xf32> -> vector<128x128xf32>
    %c1_37 = arith.constant 1 : index
    %c0_38 = arith.constant 0 : index
    %c0_39 = arith.constant 0 : index
    %84 = vector.load %arg3[%c1_37, %c0_38, %c0_39] : memref<2x128x128xf32, #tpu.memory_space<vmem>>, vector<1x128x128xf32>
    %85 = vector.shape_cast %84 : vector<1x128x128xf32> to vector<128x128xf32>
    %86 = arith.addf %83, %85 : vector<128x128xf32>
    %cst_40 = arith.constant dense<0xFF800000> : vector<128xf32>
    %87 = vector.multi_reduction <maximumf>, %86, %cst_40 [1] : vector<128x128xf32> to vector<128xf32>
    %88 = vector.shape_cast %87 : vector<128xf32> to vector<128x1xf32>
    %89 = vector.broadcast %88 : vector<128x1xf32> to vector<128x128xf32>
    %90 = arith.subf %86, %89 : vector<128x128xf32>
    %91 = math.exp %90 : vector<128x128xf32>
    %cst_41 = arith.constant dense<0.000000e+00> : vector<128xf32>
    %92 = vector.multi_reduction <add>, %91, %cst_41 [1] : vector<128x128xf32> to vector<128xf32>
    %93 = vector.shape_cast %92 : vector<128xf32> to vector<128x1xf32>
    %94 = tpu.reciprocal %93 : vector<128x1xf32> -> vector<128x1xf32>
    %95 = vector.broadcast %94 : vector<128x1xf32> to vector<128x128xf32>
    %96 = arith.mulf %91, %95 : vector<128x128xf32>
    %cst_42 = arith.constant dense<0.000000e+00> : vector<128x16xf32>
    %97 = tpu.matmul %96, %82, %cst_42 {dimension_numbers = #tpu.dot_dimension_numbers<[1], [0], [0], [1], [0, 0, 1, 1], [], []>} : vector<128x128xf32>, vector<128x16xf32>, vector<128x16xf32> -> vector<128x16xf32>
    %98 = arith.index_cast %53 : i32 to index
    %c16_43 = arith.constant 16 : index
    %99 = vector.load %arg7[%98, %c16_43] : memref<256x32xf32, #tpu.memory_space<vmem>>, vector<128x16xf32>
    tpu.vector_store %arg7[%98, %c16_43], %97 {strides = array<i32>} : memref<256x32xf32, #tpu.memory_space<vmem>>, vector<128x16xf32>,
    %c2_i32 = arith.constant 2 : i32
    %c0_44 = arith.constant 0 : index
    %c0_45 = arith.constant 0 : index
    %100 = vector.load %arg7[%c0_44, %c0_45] : memref<256x32xf32, #tpu.memory_space<vmem>>, vector<256x32xf32>
    %c0_46 = arith.constant 0 : index
    %c0_47 = arith.constant 0 : index
    %101 = vector.load %arg4[%c0_46, %c0_47] : memref<32x32xf32, #tpu.memory_space<vmem>>, vector<32x32xf32>
    %cst_48 = arith.constant dense<0.000000e+00> : vector<256x32xf32>
    %102 = tpu.matmul %100, %101, %cst_48 {dimension_numbers = #tpu.dot_dimension_numbers<[1], [0], [0], [1], [0, 0, 1, 1], [], []>} : vector<256x32xf32>, vector<32x32xf32>, vector<256x32xf32> -> vector<256x32xf32>
    %c0_49 = arith.constant 0 : index
    %c0_50 = arith.constant 0 : index
    %103 = vector.load %arg5[%c0_49, %c0_50] : memref<256x32xf32, #tpu.memory_space<vmem>>, vector<256x32xf32>
    tpu.vector_store %arg5[%c0_49, %c0_50], %102 {strides = array<i32>} : memref<256x32xf32, #tpu.memory_space<vmem>>, vector<256x32xf32>,
    return
  }
  func.func @transform_0(%arg0: i32) -> (i32, i32) {
    %c0_i32 = arith.constant 0 : i32
    %c0_i32_0 = arith.constant 0 : i32
    return %arg0, %c0_i32 : i32, i32
  }
  func.func @transform_1(%arg0: i32) -> (i32, i32) {
    %c0_i32 = arith.constant 0 : i32
    %c0_i32_0 = arith.constant 0 : i32
    %c0_i32_1 = arith.constant 0 : i32
    return %c0_i32, %c0_i32_0 : i32, i32
  }
  func.func @transform_2(%arg0: i32) -> (i32, i32, i32) {
    %c0_i32 = arith.constant 0 : i32
    %c0_i32_0 = arith.constant 0 : i32
    %c0_i32_1 = arith.constant 0 : i32
    %c0_i32_2 = arith.constant 0 : i32
    return %c0_i32, %c0_i32_0, %c0_i32_1 : i32, i32, i32
  }
  func.func @transform_3(%arg0: i32) -> (i32, i32) {
    %c0_i32 = arith.constant 0 : i32
    %c0_i32_0 = arith.constant 0 : i32
    %c0_i32_1 = arith.constant 0 : i32
    return %c0_i32, %c0_i32_0 : i32, i32
  }
  func.func @transform_4(%arg0: i32) -> (i32, i32) {
    %c0_i32 = arith.constant 0 : i32
    %c0_i32_0 = arith.constant 0 : i32
    return %arg0, %c0_i32 : i32, i32
  }
}

</mosaic_0001>

<llo_original>
// kernel: tpu_custom_call.1
$region0: #{tpu_custom_call.1}
  #allocation0 [shape = 'u32[]', space=smem, size = 0x4, offset = 0x4, fixed_abs, tag = 'smem constant byte address 0x4 - core index']
  #allocation1 [shape = 'u32[144,128]{1,0:T(1,128)}', space=vmem, size = 0x12000, scoped, tag = 'internal scratch']
  #allocation2 [shape = 'f32[256,96]{1,0:T(8,128)}', space=vmem, size = 0x20000, scoped, tag = 'scratch operand']
  #allocation3 [shape = 'f32[256,32]{1,0:T(8,128)}', space=vmem, size = 0x20000, scoped, tag = 'scratch operand']
  %s0 = inlined_call_operand.vmem [shape: f32[768,32], index: 0, kind: input, shape index: {}]
  %s1 = inlined_call_operand.vmem [shape: f32[32,96], index: 1, kind: input, shape index: {}]
  %s2 = inlined_call_operand.vmem [shape: f32[2,128,128], index: 2, kind: input, shape index: {}]
  %s3 = inlined_call_operand.vmem [shape: f32[32,32], index: 3, kind: input, shape index: {}]
  %s4 = inlined_call_operand.vmem [shape: f32[768,32], index: 4, kind: output, shape index: {}]
  %s5 = sld [smem:[#allocation0]]
  $region49: #{tpu_custom_call.1} parent=0
    _
  %s7 = ssub.s32 1, %s5
  %s8 = scalar_select 0, %s7, %s5
  loop: start=0, step=1, limit=5
  $region2: #{tpu_custom_call.1} parent=0 // loop_pre_header
    _
  $region3: #{tpu_custom_call.1} parent=0 // loop_header
    %s10 = sphi 0, %s14
    %p11 = scmp.ge.s32.totalorder %s10, 5
    %s20 = sphi 0, %s22
    %s23 = sphi 0, %s20
    %s24 = sphi 0, %s23
    %s40 = sphi 0, %s24
    %s44 = sphi 0, %s44
    %s46 = sphi 0, %s44
    %s47 = sphi 0, %s46
    %s61 = sphi 0, %s47
    %s65 = sphi 0, %s65
    %s67 = sphi 0, %s65
    %s68 = sphi 0, %s67
    %s82 = sphi 0, %s68
    %s86 = sphi 0, %s86
    %s88 = sphi 0, %s86
    %s89 = sphi 0, %s88
    %s103 = sphi 0, %s89
    %s109 = sphi 0, %s111
    %s112 = sphi 0, %s109
    %s113 = sphi 0, %s112
    %s129 = sphi 0, %s113
  $region4: #{tpu_custom_call.1} parent=0 // loop_header_branch
    %13 = sbr.rel (%p11) target = $region8
  $region5: #{tpu_custom_call.1} parent=0 // loop_body
    %s15 = ssub.s32 %s10, 1
    %s16 = ssub.s32 %s10, 2
    %s17 = sadd.s32 %s10, 1
    %s18 = ssub.s32 %s10, %s17
    %p19 = scmp.eq.s32.totalorder %s18, 0
    %s21 = sadd.s32 %s20, 1
    %s22 = scalar_select %p19, %s20, %s21
    %p25 = pneg %p19
    %p26 = scmp.eq.s32.totalorder %s10, 2
    %p27 = por %p25, %p26
    %p28 = scmp.ne.s32.totalorder %s20, %s23
    %p29 = scmp.eq.s32.totalorder %s10, 0
    %p30 = por %p28, %p29
    %p31 = scmp.ne.s32.totalorder %s20, %s23
    %p32 = scmp.eq.s32.totalorder %s15, 2
    %p33 = por %p31, %p32
    %p34 = scmp.ne.s32.totalorder %s23, %s24
    %p35 = scmp.eq.s32.totalorder %s15, 0
    %p36 = por %p34, %p35
    %p37 = scmp.ne.s32.totalorder %s23, %s24
    %p38 = scmp.eq.s32.totalorder %s16, 2
    %p39 = por %p37, %p38
    %p41 = scmp.ne.s32.totalorder %s24, %s40
    %p42 = scmp.eq.s32.totalorder %s16, 0
    %p43 = por %p41, %p42
    %s45 = sadd.s32 %s44, 1
    %p48 = scmp.eq.s32.totalorder %s10, 2
    %p49 = scmp.ne.s32.totalorder %s44, %s46
    %p50 = scmp.eq.s32.totalorder %s10, 0
    %p51 = por %p49, %p50
    %p52 = scmp.ne.s32.totalorder %s44, %s46
    %p53 = scmp.eq.s32.totalorder %s15, 2
    %p54 = por %p52, %p53
    %p55 = scmp.ne.s32.totalorder %s46, %s47
    %p56 = scmp.eq.s32.totalorder %s15, 0
    %p57 = por %p55, %p56
    %p58 = scmp.ne.s32.totalorder %s46, %s47
    %p59 = scmp.eq.s32.totalorder %s16, 2
    %p60 = por %p58, %p59
    %p62 = scmp.ne.s32.totalorder %s47, %s61
    %p63 = scmp.eq.s32.totalorder %s16, 0
    %p64 = por %p62, %p63
    %s66 = sadd.s32 %s65, 1
    %p69 = scmp.eq.s32.totalorder %s10, 2
    %p70 = scmp.ne.s32.totalorder %s65, %s67
    %p71 = scmp.eq.s32.totalorder %s10, 0
    %p72 = por %p70, %p71
    %p73 = scmp.ne.s32.totalorder %s65, %s67
    %p74 = scmp.eq.s32.totalorder %s15, 2
    %p75 = por %p73, %p74
    %p76 = scmp.ne.s32.totalorder %s67, %s68
    %p77 = scmp.eq.s32.totalorder %s15, 0
    %p78 = por %p76, %p77
    %p79 = scmp.ne.s32.totalorder %s67, %s68
    %p80 = scmp.eq.s32.totalorder %s16, 2
    %p81 = por %p79, %p80
    %p83 = scmp.ne.s32.totalorder %s68, %s82
    %p84 = scmp.eq.s32.totalorder %s16, 0
    %p85 = por %p83, %p84
    %s87 = sadd.s32 %s86, 1
    %p90 = scmp.eq.s32.totalorder %s10, 2
    %p91 = scmp.ne.s32.totalorder %s86, %s88
    %p92 = scmp.eq.s32.totalorder %s10, 0
    %p93 = por %p91, %p92
    %p94 = scmp.ne.s32.totalorder %s86, %s88
    %p95 = scmp.eq.s32.totalorder %s15, 2
    %p96 = por %p94, %p95
    %p97 = scmp.ne.s32.totalorder %s88, %s89
    %p98 = scmp.eq.s32.totalorder %s15, 0
    %p99 = por %p97, %p98
    %p100 = scmp.ne.s32.totalorder %s88, %s89
    %p101 = scmp.eq.s32.totalorder %s16, 2
    %p102 = por %p100, %p101
    %p104 = scmp.ne.s32.totalorder %s89, %s103
    %p105 = scmp.eq.s32.totalorder %s16, 0
    %p106 = por %p104, %p105
    %s107 = ssub.s32 %s10, %s17
    %p108 = scmp.eq.s32.totalorder %s107, 0
    %s110 = sadd.s32 %s109, 1
    %s111 = scalar_select %p108, %s109, %s110
    %p114 = pneg %p108
    %p115 = scmp.eq.s32.totalorder %s10, 2
    %p116 = por %p114, %p115
    %p117 = scmp.ne.s32.totalorder %s109, %s112
    %p118 = scmp.eq.s32.totalorder %s10, 0
    %p119 = por %p117, %p118
    %p120 = scmp.ne.s32.totalorder %s109, %s112
    %p121 = scmp.eq.s32.totalorder %s15, 2
    %p122 = por %p120, %p121
    %p123 = scmp.ne.s32.totalorder %s112, %s113
    %p124 = scmp.eq.s32.totalorder %s15, 0
    %p125 = por %p123, %p124
    %p126 = scmp.ne.s32.totalorder %s112, %s113
    %p127 = scmp.eq.s32.totalorder %s16, 2
    %p128 = por %p126, %p127
    %p130 = scmp.ne.s32.totalorder %s113, %s129
    %p131 = scmp.eq.s32.totalorder %s16, 0
    %p132 = por %p130, %p131
    %p133 = scmp.le.s32.totalorder 1, %s10
    %p134 = scmp.lt.s32.totalorder %s10, 4
    %p135 = pnand %p133, %p134
    %p136 = pneg %p135
    // Predicated region
    $region9: #{tpu_custom_call.1} parent=5 // pred_check
      _
    $region10: #{tpu_custom_call.1} parent=5 // pred_check_branch
      %138 = sbr.rel (%p135) target = $region12
    $region11: #{tpu_custom_call.1} parent=5 // pred_region
      %s139 = ssub.s32 %s10, 1
      // Predicated region
      $region13: #{tpu_custom_call.1} parent=11 // pred_check
        %p140 = pneg %p57
      $region14: #{tpu_custom_call.1} parent=11 // pred_check_branch
        %142 = sbr.rel (%p140) target = $region16
      $region15: #{tpu_custom_call.1} parent=11 // pred_region
        _
      $region16: #{tpu_custom_call.1} parent=11 // pred_fallthru
        _
      // Predicated region
      $region17: #{tpu_custom_call.1} parent=11 // pred_check
        %p143 = pneg %p78
      $region18: #{tpu_custom_call.1} parent=11 // pred_check_branch
        %145 = sbr.rel (%p143) target = $region20
      $region19: #{tpu_custom_call.1} parent=11 // pred_region
        _
      $region20: #{tpu_custom_call.1} parent=11 // pred_fallthru
        _
      // Predicated region
      $region21: #{tpu_custom_call.1} parent=11 // pred_check
        %p146 = pneg %p99
      $region22: #{tpu_custom_call.1} parent=11 // pred_check_branch
        %148 = sbr.rel (%p146) target = $region24
      $region23: #{tpu_custom_call.1} parent=11 // pred_region
        _
      $region24: #{tpu_custom_call.1} parent=11 // pred_fallthru
        _
    $region12: #{tpu_custom_call.1} parent=5 // pred_fallthru
      _
    %p149 = scmp.lt.s32.totalorder %s10, 3
    // Predicated region
    $region25: #{tpu_custom_call.1} parent=5 // pred_check
      %p150 = pneg %p149
    $region26: #{tpu_custom_call.1} parent=5 // pred_check_branch
      %152 = sbr.rel (%p150) target = $region28
    $region27: #{tpu_custom_call.1} parent=5 // pred_region
      // Predicated region
      $region29: #{tpu_custom_call.1} parent=27 // pred_check
        %p153 = pneg %p30
      $region30: #{tpu_custom_call.1} parent=27 // pred_check_branch
        %155 = sbr.rel (%p153) target = $region32
      $region31: #{tpu_custom_call.1} parent=27 // pred_region
        %s156 = smul.u32 32, %s10
        %p157 = scmp.lt.s32.totalorder %s156, 95
        %s158 = scalar_select %p157, %s156, 95
        %s159 = smul.addr %s158, 8
        %s160 = scalar_lea.vmem %s0, %s159
        %s161 = smul.u32 32, %s10
      $region32: #{tpu_custom_call.1} parent=27 // pred_fallthru
        _
    $region28: #{tpu_custom_call.1} parent=5 // pred_fallthru
      _
    %p162 = scmp.le.s32.totalorder 1, %s10
    %p163 = scmp.lt.s32.totalorder %s10, 4
    %p164 = pnand %p162, %p163
    %p165 = pneg %p164
    // Predicated region
    $region33: #{tpu_custom_call.1} parent=5 // pred_check
      _
    $region34: #{tpu_custom_call.1} parent=5 // pred_check_branch
      %167 = sbr.rel (%p164) target = $region36
    $region35: #{tpu_custom_call.1} parent=5 // pred_region
      %s168 = ssub.s32 %s10, 1
      %s169 = smul.u32 32, %s15
      %p170 = scmp.lt.s32.totalorder %s169, 95
      %s171 = scalar_select %p170, %s169, 95
      %s172 = smul.addr %s171, 8
      %s173 = scalar_lea.vmem %s0, %s172
      %p174 = pneg %p36
      %p175 = pneg %p33
      %p176 = pneg %p57
      %p177 = pneg %p54
      %p178 = pneg %p78
      %p179 = pneg %p75
      %p180 = pneg %p99
      %p181 = pneg %p96
      %p182 = pneg %p125
      %p183 = pneg %p122
      %s184 = smul.u32 32, %s15
      %p185 = scmp.lt.s32.totalorder %s184, 95
      %s186 = scalar_select %p185, %s184, 95
      %s187 = smul.addr %s186, 8
      %s188 = scalar_lea.vmem %s4, %s187
      %s189 = smul.u32 32, %s15
      %p190 = scmp.lt.s32.totalorder %s189, 95
      %s191 = scalar_select %p190, %s189, 95
      %s192 = smul.addr %s191, 8
      %s193 = scalar_lea.vmem %s0, %s192
      %s194 = smul.u32 32, %s15
      %s195 = smul.u32 32, %s15
      %p196 = scmp.lt.s32.totalorder %s195, 95
      %s197 = scalar_select %p196, %s195, 95
      %s198 = smul.addr %s197, 8
      %s199 = scalar_lea.vmem %s4, %s198
      %s200 = smul.u32 32, %s15
      %v201 = vld [vmem:[%s193] sm:$0xff]
      %v202 = vld [vmem:[%s193 + $0x8] sm:$0xff]
      %v203 = vld [vmem:[%s193 + $0x10] sm:$0xff]
      %v204 = vld [vmem:[%s193 + $0x18] sm:$0xff]
      %v205 = vld [vmem:[%s193 + $0x20] sm:$0xff]
      %v206 = vld [vmem:[%s193 + $0x28] sm:$0xff]
      %v207 = vld [vmem:[%s193 + $0x30] sm:$0xff]
      %v208 = vld [vmem:[%s193 + $0x38] sm:$0xff]
      %v209 = vld [vmem:[%s193 + $0x40] sm:$0xff]
      %v210 = vld [vmem:[%s193 + $0x48] sm:$0xff]
      %v211 = vld [vmem:[%s193 + $0x50] sm:$0xff]
      %v212 = vld [vmem:[%s193 + $0x58] sm:$0xff]
      %v213 = vld [vmem:[%s193 + $0x60] sm:$0xff]
      %v214 = vld [vmem:[%s193 + $0x68] sm:$0xff]
      %v215 = vld [vmem:[%s193 + $0x70] sm:$0xff]
      %v216 = vld [vmem:[%s193 + $0x78] sm:$0xff]
      %v217 = vld [vmem:[%s193 + $0x80] sm:$0xff]
      %v218 = vld [vmem:[%s193 + $0x88] sm:$0xff]
      %v219 = vld [vmem:[%s193 + $0x90] sm:$0xff]
      %v220 = vld [vmem:[%s193 + $0x98] sm:$0xff]
      %v221 = vld [vmem:[%s193 + $0xa0] sm:$0xff]
      %v222 = vld [vmem:[%s193 + $0xa8] sm:$0xff]
      %v223 = vld [vmem:[%s193 + $0xb0] sm:$0xff]
      %v224 = vld [vmem:[%s193 + $0xb8] sm:$0xff]
      %v225 = vld [vmem:[%s193 + $0xc0] sm:$0xff]
      %v226 = vld [vmem:[%s193 + $0xc8] sm:$0xff]
      %v227 = vld [vmem:[%s193 + $0xd0] sm:$0xff]
      %v228 = vld [vmem:[%s193 + $0xd8] sm:$0xff]
      %v229 = vld [vmem:[%s193 + $0xe0] sm:$0xff]
      %v230 = vld [vmem:[%s193 + $0xe8] sm:$0xff]
      %v231 = vld [vmem:[%s193 + $0xf0] sm:$0xff]
      %v232 = vld [vmem:[%s193 + $0xf8] sm:$0xff]
      %v233 = vld [vmem:[%s1] sm:$0xff]
      %v234 = vld [vmem:[%s1 + $0x8] sm:$0xff]
      %v235 = vld [vmem:[%s1 + $0x10] sm:$0xff]
      %v236 = vld [vmem:[%s1 + $0x18] sm:$0xff]
      %vm237 = vcmask 261120
      %v239 = vsel %vm237, %v201, 0
      %v242 = vsel %vm237, %v202, 0
      %v245 = vsel %vm237, %v203, 0
      %v248 = vsel %vm237, %v204, 0
      %v251 = vsel %vm237, %v205, 0
      %v254 = vsel %vm237, %v206, 0
      %v257 = vsel %vm237, %v207, 0
      %v260 = vsel %vm237, %v208, 0
      %v263 = vsel %vm237, %v209, 0
      %v266 = vsel %vm237, %v210, 0
      %v269 = vsel %vm237, %v211, 0
      %v272 = vsel %vm237, %v212, 0
      %v275 = vsel %vm237, %v213, 0
      %v278 = vsel %vm237, %v214, 0
      %v281 = vsel %vm237, %v215, 0
      %v284 = vsel %vm237, %v216, 0
      %v287 = vsel %vm237, %v217, 0
      %v290 = vsel %vm237, %v218, 0
      %v293 = vsel %vm237, %v219, 0
      %v296 = vsel %vm237, %v220, 0
      %v299 = vsel %vm237, %v221, 0
      %v302 = vsel %vm237, %v222, 0
      %v305 = vsel %vm237, %v223, 0
      %v308 = vsel %vm237, %v224, 0
      %v311 = vsel %vm237, %v225, 0
      %v314 = vsel %vm237, %v226, 0
      %v317 = vsel %vm237, %v227, 0
      %v320 = vsel %vm237, %v228, 0
      %v323 = vsel %vm237, %v229, 0
      %v326 = vsel %vm237, %v230, 0
      %v329 = vsel %vm237, %v231, 0
      %v332 = vsel %vm237, %v232, 0
      %334 = vmatprep.subr.mxu0 0.0
      %335 = vmatpush1.msra.mxu0 %v233
      %336 = vmatprep.subr.mxu0 0.0
      %337 = vmatpush1.msra.mxu0 %v234
      %338 = vmatprep.subr.mxu0 0.0
      %339 = vmatpush1.msra.mxu0 %v235
      %340 = vmatprep.subr.mxu0 0.0
      %341 = vmatpush1.msra.mxu0 %v236
      %342 = vmatprep.subr.mxu0 0.0
      %343 = vmatpush1.msra.mxu0 0.0
      %344 = vmatprep.subr.mxu0 0.0
      %345 = vmatpush1.msra.mxu0 0.0
      %346 = vmatprep.subr.mxu0 0.0
      %347 = vmatpush1.msra.mxu0 0.0
      %348 = vmatprep.subr.mxu0 0.0
      %349 = vmatpush1.msra.mxu0 0.0
      %350 = vmatprep.subr.mxu0 0.0
      %351 = vmatpush1.msra.mxu0 0.0
      %352 = vmatprep.subr.mxu0 0.0
      %353 = vmatpush1.msra.mxu0 0.0
      %354 = vmatprep.subr.mxu0 0.0
      %355 = vmatpush1.msra.mxu0 0.0
      %356 = vmatprep.subr.mxu0 0.0
      %357 = vmatpush1.msra.mxu0 0.0
      %358 = vmatprep.subr.mxu0 0.0
      %359 = vmatpush1.msra.mxu0 0.0
      %360 = vmatprep.subr.mxu0 0.0
      %361 = vmatpush1.msra.mxu0 0.0
      %362 = vmatprep.subr.mxu0 0.0
      %363 = vmatpush1.msra.mxu0 0.0
      %364 = vmatprep.subr.mxu0 0.0
      %365 = vmatpush1.msra.mxu0 0.0
      %366 = vmatprep.subr.mxu0 0.0
      %367 = vmatpush1.msra.mxu0 0.0
      %368 = vmatprep.subr.mxu0 0.0
      %369 = vmatpush1.msra.mxu0 0.0
      %370 = vmatprep.subr.mxu0 0.0
      %371 = vmatpush1.msra.mxu0 0.0
      %372 = vmatprep.subr.mxu0 0.0
      %373 = vmatpush1.msra.mxu0 0.0
      %374 = vmatprep.subr.mxu0 0.0
      %375 = vmatpush1.msra.mxu0 0.0
      %376 = vmatprep.subr.mxu0 0.0
      %377 = vmatpush1.msra.mxu0 0.0
      %378 = vmatprep.subr.mxu0 0.0
      %379 = vmatpush1.msra.mxu0 0.0
      %380 = vmatprep.subr.mxu0 0.0
      %381 = vmatpush1.msra.mxu0 0.0
      %382 = vmatprep.subr.mxu0 0.0
      %383 = vmatpush1.msra.mxu0 0.0
      %384 = vmatprep.subr.mxu0 0.0
      %385 = vmatpush1.msra.mxu0 0.0
      %386 = vmatprep.subr.mxu0 0.0
      %387 = vmatpush1.msra.mxu0 0.0
      %388 = vmatprep.subr.mxu0 0.0
      %389 = vmatpush1.msra.mxu0 0.0
      %390 = vmatprep.subr.mxu0 0.0
      %391 = vmatpush1.msra.mxu0 0.0
      %392 = vmatprep.subr.mxu0 0.0
      %393 = vmatpush1.msra.mxu0 0.0
      %394 = vmatprep.subr.mxu0 0.0
      %395 = vmatpush1.msra.mxu0 0.0
      %396 = vmatprep.subr.mxu0 0.0
      %397 = vmatpush1.msra.mxu0 0.0
      %398 = vmatprep.mubr.f32.mxu0 0.0
      %399 = vmatmul.mubr.f32.gmra.mrb[0].mxu0 %v239
      %v400 = vpop.f32.mrb[0].mxu0
      %v401 = vadd.f32 0.0, %v400
      %v402 = vpop.f32.mrb[0].mxu0
      %403 = vmatprep.mubr.f32.mxu0 0.0
      %404 = vmatmul.mubr.f32.gmra.mrb[0].mxu0 %v242
      %v405 = vpop.f32.mrb[0].mxu0
      %v406 = vadd.f32 0.0, %v405
      %v407 = vpop.f32.mrb[0].mxu0
      %408 = vmatprep.mubr.f32.mxu0 0.0
      %409 = vmatmul.mubr.f32.gmra.mrb[0].mxu0 %v245
      %v410 = vpop.f32.mrb[0].mxu0
      %v411 = vadd.f32 0.0, %v410
      %v412 = vpop.f32.mrb[0].mxu0
      %413 = vmatprep.mubr.f32.mxu0 0.0
      %414 = vmatmul.mubr.f32.gmra.mrb[0].mxu0 %v248
      %v415 = vpop.f32.mrb[0].mxu0
      %v416 = vadd.f32 0.0, %v415
      %v417 = vpop.f32.mrb[0].mxu0
      %418 = vmatprep.mubr.f32.mxu0 0.0
      %419 = vmatmul.mubr.f32.gmra.mrb[0].mxu0 %v251
      %v420 = vpop.f32.mrb[0].mxu0
      %v421 = vadd.f32 0.0, %v420
      %v422 = vpop.f32.mrb[0].mxu0
      %423 = vmatprep.mubr.f32.mxu0 0.0
      %424 = vmatmul.mubr.f32.gmra.mrb[0].mxu0 %v254
      %v425 = vpop.f32.mrb[0].mxu0
      %v426 = vadd.f32 0.0, %v425
      %v427 = vpop.f32.mrb[0].mxu0
      %428 = vmatprep.mubr.f32.mxu0 0.0
      %429 = vmatmul.mubr.f32.gmra.mrb[0].mxu0 %v257
      %v430 = vpop.f32.mrb[0].mxu0
      %v431 = vadd.f32 0.0, %v430
      %v432 = vpop.f32.mrb[0].mxu0
      %433 = vmatprep.mubr.f32.mxu0 0.0
      %434 = vmatmul.mubr.f32.gmra.mrb[0].mxu0 %v260
      %v435 = vpop.f32.mrb[0].mxu0
      %v436 = vadd.f32 0.0, %v435
      %v437 = vpop.f32.mrb[0].mxu0
      %438 = vmatprep.mubr.f32.mxu0 0.0
      %439 = vmatmul.mubr.f32.gmra.mrb[0].mxu0 %v263
      %v440 = vpop.f32.mrb[0].mxu0
      %v441 = vadd.f32 0.0, %v440
      %v442 = vpop.f32.mrb[0].mxu0
      %443 = vmatprep.mubr.f32.mxu0 0.0
      %444 = vmatmul.mubr.f32.gmra.mrb[0].mxu0 %v266
      %v445 = vpop.f32.mrb[0].mxu0
      %v446 = vadd.f32 0.0, %v445
      %v447 = vpop.f32.mrb[0].mxu0
      %448 = vmatprep.mubr.f32.mxu0 0.0
      %449 = vmatmul.mubr.f32.gmra.mrb[0].mxu0 %v269
      %v450 = vpop.f32.mrb[0].mxu0
      %v451 = vadd.f32 0.0, %v450
      %v452 = vpop.f32.mrb[0].mxu0
      %453 = vmatprep.mubr.f32.mxu0 0.0
      %454 = vmatmul.mubr.f32.gmra.mrb[0].mxu0 %v272
      %v455 = vpop.f32.mrb[0].mxu0
      %v456 = vadd.f32 0.0, %v455
      %v457 = vpop.f32.mrb[0].mxu0
      %458 = vmatprep.mubr.f32.mxu0 0.0
      %459 = vmatmul.mubr.f32.gmra.mrb[0].mxu0 %v275
      %v460 = vpop.f32.mrb[0].mxu0
      %v461 = vadd.f32 0.0, %v460
      %v462 = vpop.f32.mrb[0].mxu0
      %463 = vmatprep.mubr.f32.mxu0 0.0
      %464 = vmatmul.mubr.f32.gmra.mrb[0].mxu0 %v278
      %v465 = vpop.f32.mrb[0].mxu0
      %v466 = vadd.f32 0.0, %v465
      %v467 = vpop.f32.mrb[0].mxu0
      %468 = vmatprep.mubr.f32.mxu0 0.0
      %469 = vmatmul.mubr.f32.gmra.mrb[0].mxu0 %v281
      %v470 = vpop.f32.mrb[0].mxu0
      %v471 = vadd.f32 0.0, %v470
      %v472 = vpop.f32.mrb[0].mxu0
      %473 = vmatprep.mubr.f32.mxu0 0.0
      %474 = vmatmul.mubr.f32.gmra.mrb[0].mxu0 %v284
      %v475 = vpop.f32.mrb[0].mxu0
      %v476 = vadd.f32 0.0, %v475
      %v477 = vpop.f32.mrb[0].mxu0
      %478 = vmatprep.mubr.f32.mxu0 0.0
      %479 = vmatmul.mubr.f32.gmra.mrb[0].mxu0 %v287
      %v480 = vpop.f32.mrb[0].mxu0
      %v481 = vadd.f32 0.0, %v480
      %v482 = vpop.f32.mrb[0].mxu0
      %483 = vmatprep.mubr.f32.mxu0 0.0
      %484 = vmatmul.mubr.f32.gmra.mrb[0].mxu0 %v290
      %v485 = vpop.f32.mrb[0].mxu0
      %v486 = vadd.f32 0.0, %v485
      %v487 = vpop.f32.mrb[0].mxu0
      %488 = vmatprep.mubr.f32.mxu0 0.0
      %489 = vmatmul.mubr.f32.gmra.mrb[0].mxu0 %v293
      %v490 = vpop.f32.mrb[0].mxu0
      %v491 = vadd.f32 0.0, %v490
      %v492 = vpop.f32.mrb[0].mxu0
      %493 = vmatprep.mubr.f32.mxu0 0.0
      %494 = vmatmul.mubr.f32.gmra.mrb[0].mxu0 %v296
      %v495 = vpop.f32.mrb[0].mxu0
      %v496 = vadd.f32 0.0, %v495
      %v497 = vpop.f32.mrb[0].mxu0
      %498 = vmatprep.mubr.f32.mxu0 0.0
      %499 = vmatmul.mubr.f32.gmra.mrb[0].mxu0 %v299
      %v500 = vpop.f32.mrb[0].mxu0
      %v501 = vadd.f32 0.0, %v500
      %v502 = vpop.f32.mrb[0].mxu0
      %503 = vmatprep.mubr.f32.mxu0 0.0
      %504 = vmatmul.mubr.f32.gmra.mrb[0].mxu0 %v302
      %v505 = vpop.f32.mrb[0].mxu0
      %v506 = vadd.f32 0.0, %v505
      %v507 = vpop.f32.mrb[0].mxu0
      %508 = vmatprep.mubr.f32.mxu0 0.0
      %509 = vmatmul.mubr.f32.gmra.mrb[0].mxu0 %v305
      %v510 = vpop.f32.mrb[0].mxu0
      %v511 = vadd.f32 0.0, %v510
      %v512 = vpop.f32.mrb[0].mxu0
      %513 = vmatprep.mubr.f32.mxu0 0.0
      %514 = vmatmul.mubr.f32.gmra.mrb[0].mxu0 %v308
      %v515 = vpop.f32.mrb[0].mxu0
      %v516 = vadd.f32 0.0, %v515
      %v517 = vpop.f32.mrb[0].mxu0
      %518 = vmatprep.mubr.f32.mxu0 0.0
      %519 = vmatmul.mubr.f32.gmra.mrb[0].mxu0 %v311
      %v520 = vpop.f32.mrb[0].mxu0
      %v521 = vadd.f32 0.0, %v520
      %v522 = vpop.f32.mrb[0].mxu0
      %523 = vmatprep.mubr.f32.mxu0 0.0
      %524 = vmatmul.mubr.f32.gmra.mrb[0].mxu0 %v314
      %v525 = vpop.f32.mrb[0].mxu0
      %v526 = vadd.f32 0.0, %v525
      %v527 = vpop.f32.mrb[0].mxu0
      %528 = vmatprep.mubr.f32.mxu0 0.0
      %529 = vmatmul.mubr.f32.gmra.mrb[0].mxu0 %v317
      %v530 = vpop.f32.mrb[0].mxu0
      %v531 = vadd.f32 0.0, %v530
      %v532 = vpop.f32.mrb[0].mxu0
      %533 = vmatprep.mubr.f32.mxu0 0.0
      %534 = vmatmul.mubr.f32.gmra.mrb[0].mxu0 %v320
      %v535 = vpop.f32.mrb[0].mxu0
      %v536 = vadd.f32 0.0, %v535
      %v537 = vpop.f32.mrb[0].mxu0
      %538 = vmatprep.mubr.f32.mxu0 0.0
      %539 = vmatmul.mubr.f32.gmra.mrb[0].mxu0 %v323
      %v540 = vpop.f32.mrb[0].mxu0
      %v541 = vadd.f32 0.0, %v540
      %v542 = vpop.f32.mrb[0].mxu0
      %543 = vmatprep.mubr.f32.mxu0 0.0
      %544 = vmatmul.mubr.f32.gmra.mrb[0].mxu0 %v326
      %v545 = vpop.f32.mrb[0].mxu0
      %v546 = vadd.f32 0.0, %v545
      %v547 = vpop.f32.mrb[0].mxu0
      %548 = vmatprep.mubr.f32.mxu0 0.0
      %549 = vmatmul.mubr.f32.gmra.mrb[0].mxu0 %v329
      %v550 = vpop.f32.mrb[0].mxu0
      %v551 = vadd.f32 0.0, %v550
      %v552 = vpop.f32.mrb[0].mxu0
      %553 = vmatprep.mubr.f32.mxu0 0.0
      %554 = vmatmul.mubr.f32.gmra.mrb[0].mxu0 %v332
      %v555 = vpop.f32.mrb[0].mxu0
      %v556 = vadd.f32 0.0, %v555
      %v557 = vpop.f32.mrb[0].mxu0
      %558 = vdwg.mxu0
      %vm559 = vcmask 785408
      %560 = vst.msk [vmem:[#allocation2] sm:$0xff] %vm559, %v401
      %561 = vst.msk [vmem:[#allocation2 + $0x8] sm:$0xff] %vm559, %v406
      %562 = vst.msk [vmem:[#allocation2 + $0x10] sm:$0xff] %vm559, %v411
      %563 = vst.msk [vmem:[#allocation2 + $0x18] sm:$0xff] %vm559, %v416
      %564 = vst.msk [vmem:[#allocation2 + $0x20] sm:$0xff] %vm559, %v421
      %565 = vst.msk [vmem:[#allocation2 + $0x28] sm:$0xff] %vm559, %v426
      %566 = vst.msk [vmem:[#allocation2 + $0x30] sm:$0xff] %vm559, %v431
      %567 = vst.msk [vmem:[#allocation2 + $0x38] sm:$0xff] %vm559, %v436
      %568 = vst.msk [vmem:[#allocation2 + $0x40] sm:$0xff] %vm559, %v441
      %569 = vst.msk [vmem:[#allocation2 + $0x48] sm:$0xff] %vm559, %v446
      %570 = vst.msk [vmem:[#allocation2 + $0x50] sm:$0xff] %vm559, %v451
      %571 = vst.msk [vmem:[#allocation2 + $0x58] sm:$0xff] %vm559, %v456
      %572 = vst.msk [vmem:[#allocation2 + $0x60] sm:$0xff] %vm559, %v461
      %573 = vst.msk [vmem:[#allocation2 + $0x68] sm:$0xff] %vm559, %v466
      %574 = vst.msk [vmem:[#allocation2 + $0x70] sm:$0xff] %vm559, %v471
      %575 = vst.msk [vmem:[#allocation2 + $0x78] sm:$0xff] %vm559, %v476
      %576 = vst.msk [vmem:[#allocation2 + $0x80] sm:$0xff] %vm559, %v481
      %577 = vst.msk [vmem:[#allocation2 + $0x88] sm:$0xff] %vm559, %v486
      %578 = vst.msk [vmem:[#allocation2 + $0x90] sm:$0xff] %vm559, %v491
      %579 = vst.msk [vmem:[#allocation2 + $0x98] sm:$0xff] %vm559, %v496
      %580 = vst.msk [vmem:[#allocation2 + $0xa0] sm:$0xff] %vm559, %v501
      %581 = vst.msk [vmem:[#allocation2 + $0xa8] sm:$0xff] %vm559, %v506
      %582 = vst.msk [vmem:[#allocation2 + $0xb0] sm:$0xff] %vm559, %v511
      %583 = vst.msk [vmem:[#allocation2 + $0xb8] sm:$0xff] %vm559, %v516
      %584 = vst.msk [vmem:[#allocation2 + $0xc0] sm:$0xff] %vm559, %v521
      %585 = vst.msk [vmem:[#allocation2 + $0xc8] sm:$0xff] %vm559, %v526
      %586 = vst.msk [vmem:[#allocation2 + $0xd0] sm:$0xff] %vm559, %v531
      %587 = vst.msk [vmem:[#allocation2 + $0xd8] sm:$0xff] %vm559, %v536
      %588 = vst.msk [vmem:[#allocation2 + $0xe0] sm:$0xff] %vm559, %v541
      %589 = vst.msk [vmem:[#allocation2 + $0xe8] sm:$0xff] %vm559, %v546
      %590 = vst.msk [vmem:[#allocation2 + $0xf0] sm:$0xff] %vm559, %v551
      %591 = vst.msk [vmem:[#allocation2 + $0xf8] sm:$0xff] %vm559, %v556
      %v592 = vld [vmem:[#allocation2] sm:$0xff]
      %v593 = vld [vmem:[#allocation2 + $0x8] sm:$0xff]
      %v594 = vld [vmem:[#allocation2 + $0x10] sm:$0xff]
      %v595 = vld [vmem:[#allocation2 + $0x18] sm:$0xff]
      %v596 = vld [vmem:[#allocation2 + $0x20] sm:$0xff]
      %v597 = vld [vmem:[#allocation2 + $0x28] sm:$0xff]
      %v598 = vld [vmem:[#allocation2 + $0x30] sm:$0xff]
      %v599 = vld [vmem:[#allocation2 + $0x38] sm:$0xff]
      %v600 = vld [vmem:[#allocation2 + $0x40] sm:$0xff]
      %v601 = vld [vmem:[#allocation2 + $0x48] sm:$0xff]
      %v602 = vld [vmem:[#allocation2 + $0x50] sm:$0xff]
      %v603 = vld [vmem:[#allocation2 + $0x58] sm:$0xff]
      %v604 = vld [vmem:[#allocation2 + $0x60] sm:$0xff]
      %v605 = vld [vmem:[#allocation2 + $0x68] sm:$0xff]
      %v606 = vld [vmem:[#allocation2 + $0x70] sm:$0xff]
      %v607 = vld [vmem:[#allocation2 + $0x78] sm:$0xff]
      %v608 = vld [vmem:[%s2] sm:$0xff]
      %v609 = vld [vmem:[%s2 + $0x8] sm:$0xff]
      %v610 = vld [vmem:[%s2 + $0x10] sm:$0xff]
      %v611 = vld [vmem:[%s2 + $0x18] sm:$0xff]
      %v612 = vld [vmem:[%s2 + $0x20] sm:$0xff]
      %v613 = vld [vmem:[%s2 + $0x28] sm:$0xff]
      %v614 = vld [vmem:[%s2 + $0x30] sm:$0xff]
      %v615 = vld [vmem:[%s2 + $0x38] sm:$0xff]
      %v616 = vld [vmem:[%s2 + $0x40] sm:$0xff]
      %v617 = vld [vmem:[%s2 + $0x48] sm:$0xff]
      %v618 = vld [vmem:[%s2 + $0x50] sm:$0xff]
      %v619 = vld [vmem:[%s2 + $0x58] sm:$0xff]
      %v620 = vld [vmem:[%s2 + $0x60] sm:$0xff]
      %v621 = vld [vmem:[%s2 + $0x68] sm:$0xff]
      %v622 = vld [vmem:[%s2 + $0x70] sm:$0xff]
      %v623 = vld [vmem:[%s2 + $0x78] sm:$0xff]
      %640 = vrot.lane.b32.xlu0 %v592, 96
      %v641 = vpop.permute.xlu0 %640
      %642 = vrot.lane.b32.xlu0 %v593, 96
      %v643 = vpop.permute.xlu0 %642
      %644 = vrot.lane.b32.xlu0 %v594, 96
      %v645 = vpop.permute.xlu0 %644
      %646 = vrot.lane.b32.xlu0 %v595, 96
      %v647 = vpop.permute.xlu0 %646
      %648 = vrot.lane.b32.xlu0 %v596, 96
      %v649 = vpop.permute.xlu0 %648
      %650 = vrot.lane.b32.xlu0 %v597, 96
      %v651 = vpop.permute.xlu0 %650
      %652 = vrot.lane.b32.xlu0 %v598, 96
      %v653 = vpop.permute.xlu0 %652
      %654 = vrot.lane.b32.xlu0 %v599, 96
      %v655 = vpop.permute.xlu0 %654
      %656 = vrot.lane.b32.xlu0 %v600, 96
      %v657 = vpop.permute.xlu0 %656
      %658 = vrot.lane.b32.xlu0 %v601, 96
      %v659 = vpop.permute.xlu0 %658
      %660 = vrot.lane.b32.xlu0 %v602, 96
      %v661 = vpop.permute.xlu0 %660
      %662 = vrot.lane.b32.xlu0 %v603, 96
      %v663 = vpop.permute.xlu0 %662
      %664 = vrot.lane.b32.xlu0 %v604, 96
      %v665 = vpop.permute.xlu0 %664
      %666 = vrot.lane.b32.xlu0 %v605, 96
      %v667 = vpop.permute.xlu0 %666
      %668 = vrot.lane.b32.xlu0 %v606, 96
      %v669 = vpop.permute.xlu0 %668
      %670 = vrot.lane.b32.xlu0 %v607, 96
      %v671 = vpop.permute.xlu0 %670
      %vm672 = vcmask 130048
      %v673 = vsel %vm672, %v592, 0
      %v675 = vsel %vm672, %v593, 0
      %v677 = vsel %vm672, %v594, 0
      %v679 = vsel %vm672, %v595, 0
      %v681 = vsel %vm672, %v596, 0
      %v683 = vsel %vm672, %v597, 0
      %v685 = vsel %vm672, %v598, 0
      %v687 = vsel %vm672, %v599, 0
      %v689 = vsel %vm672, %v600, 0
      %v691 = vsel %vm672, %v601, 0
      %v693 = vsel %vm672, %v602, 0
      %v695 = vsel %vm672, %v603, 0
      %v697 = vsel %vm672, %v604, 0
      %v699 = vsel %vm672, %v605, 0
      %v701 = vsel %vm672, %v606, 0
      %v703 = vsel %vm672, %v607, 0
      %v705 = vsel %vm672, %v641, 0
      %v707 = vsel %vm672, %v643, 0
      %v709 = vsel %vm672, %v645, 0
      %v711 = vsel %vm672, %v647, 0
      %v713 = vsel %vm672, %v649, 0
      %v715 = vsel %vm672, %v651, 0
      %v717 = vsel %vm672, %v653, 0
      %v719 = vsel %vm672, %v655, 0
      %v721 = vsel %vm672, %v657, 0
      %v723 = vsel %vm672, %v659, 0
      %v725 = vsel %vm672, %v661, 0
      %v727 = vsel %vm672, %v663, 0
      %v729 = vsel %vm672, %v665, 0
      %v731 = vsel %vm672, %v667, 0
      %v733 = vsel %vm672, %v669, 0
      %v735 = vsel %vm672, %v671, 0
      %737 = vmatprep.subr.mxu0 0.0
      %738 = vmatpush1.xpose.msra.mxu0 %v705
      %739 = vmatprep.subr.mxu0 0.0
      %740 = vmatpush1.xpose.msra.mxu0 %v707
      %741 = vmatprep.subr.mxu0 0.0
      %742 = vmatpush1.xpose.msra.mxu0 %v709
      %743 = vmatprep.subr.mxu0 0.0
      %744 = vmatpush1.xpose.msra.mxu0 %v711
      %745 = vmatprep.subr.mxu0 0.0
      %746 = vmatpush1.xpose.msra.mxu0 %v713
      %747 = vmatprep.subr.mxu0 0.0
      %748 = vmatpush1.xpose.msra.mxu0 %v715
      %749 = vmatprep.subr.mxu0 0.0
      %750 = vmatpush1.xpose.msra.mxu0 %v717
      %751 = vmatprep.subr.mxu0 0.0
      %752 = vmatpush1.xpose.msra.mxu0 %v719
      %753 = vmatprep.subr.mxu0 0.0
      %754 = vmatpush1.xpose.msra.mxu0 %v721
      %755 = vmatprep.subr.mxu0 0.0
      %756 = vmatpush1.xpose.msra.mxu0 %v723
      %757 = vmatprep.subr.mxu0 0.0
      %758 = vmatpush1.xpose.msra.mxu0 %v725
      %759 = vmatprep.subr.mxu0 0.0
      %760 = vmatpush1.xpose.msra.mxu0 %v727
      %761 = vmatprep.subr.mxu0 0.0
      %762 = vmatpush1.xpose.msra.mxu0 %v729
      %763 = vmatprep.subr.mxu0 0.0
      %764 = vmatpush1.xpose.msra.mxu0 %v731
      %765 = vmatprep.subr.mxu0 0.0
      %766 = vmatpush1.xpose.msra.mxu0 %v733
      %767 = vmatprep.subr.mxu0 0.0
      %768 = vmatpush1.xpose.msra.mxu0 %v735
      %769 = vmatprep.subr.mxu0 0.0
      %770 = vmatpush1.xpose.msra.mxu0 0.0
      %771 = vmatprep.subr.mxu0 0.0
      %772 = vmatpush1.xpose.msra.mxu0 0.0
      %773 = vmatprep.subr.mxu0 0.0
      %774 = vmatpush1.xpose.msra.mxu0 0.0
      %775 = vmatprep.subr.mxu0 0.0
      %776 = vmatpush1.xpose.msra.mxu0 0.0
      %777 = vmatprep.subr.mxu0 0.0
      %778 = vmatpush1.xpose.msra.mxu0 0.0
      %779 = vmatprep.subr.mxu0 0.0
      %780 = vmatpush1.xpose.msra.mxu0 0.0
      %781 = vmatprep.subr.mxu0 0.0
      %782 = vmatpush1.xpose.msra.mxu0 0.0
      %783 = vmatprep.subr.mxu0 0.0
      %784 = vmatpush1.xpose.msra.mxu0 0.0
      %785 = vmatprep.subr.mxu0 0.0
      %786 = vmatpush1.xpose.msra.mxu0 0.0
      %787 = vmatprep.subr.mxu0 0.0
      %788 = vmatpush1.xpose.msra.mxu0 0.0
      %789 = vmatprep.subr.mxu0 0.0
      %790 = vmatpush1.xpose.msra.mxu0 0.0
      %791 = vmatprep.subr.mxu0 0.0
      %792 = vmatpush1.xpose.msra.mxu0 0.0
      %793 = vmatprep.subr.mxu0 0.0
      %794 = vmatpush1.xpose.msra.mxu0 0.0
      %795 = vmatprep.subr.mxu0 0.0
      %796 = vmatpush1.xpose.msra.mxu0 0.0
      %797 = vmatprep.subr.mxu0 0.0
      %798 = vmatpush1.xpose.msra.mxu0 0.0
      %799 = vmatprep.subr.mxu0 0.0
      %800 = vmatpush1.xpose.msra.mxu0 0.0
      %801 = vmatprep.mubr.f32.mxu0 0.0
      %802 = vmatmul.mubr.f32.gmra.mrb[0].mxu0 %v673
      %v803 = vpop.f32.mrb[0].mxu0
      %v804 = vadd.f32 %v608, %v803
      %v805 = vpop.f32.mrb[0].mxu0
      %806 = vmatprep.mubr.f32.mxu0 0.0
      %807 = vmatmul.mubr.f32.gmra.mrb[0].mxu0 %v675
      %v808 = vpop.f32.mrb[0].mxu0
      %v809 = vadd.f32 %v609, %v808
      %v810 = vpop.f32.mrb[0].mxu0
      %811 = vmatprep.mubr.f32.mxu0 0.0
      %812 = vmatmul.mubr.f32.gmra.mrb[0].mxu0 %v677
      %v813 = vpop.f32.mrb[0].mxu0
      %v814 = vadd.f32 %v610, %v813
      %v815 = vpop.f32.mrb[0].mxu0
      %816 = vmatprep.mubr.f32.mxu0 0.0
      %817 = vmatmul.mubr.f32.gmra.mrb[0].mxu0 %v679
      %v818 = vpop.f32.mrb[0].mxu0
      %v819 = vadd.f32 %v611, %v818
      %v820 = vpop.f32.mrb[0].mxu0
      %821 = vmatprep.mubr.f32.mxu0 0.0
      %822 = vmatmul.mubr.f32.gmra.mrb[0].mxu0 %v681
      %v823 = vpop.f32.mrb[0].mxu0
      %v824 = vadd.f32 %v612, %v823
      %v825 = vpop.f32.mrb[0].mxu0
      %826 = vmatprep.mubr.f32.mxu0 0.0
      %827 = vmatmul.mubr.f32.gmra.mrb[0].mxu0 %v683
      %v828 = vpop.f32.mrb[0].mxu0
      %v829 = vadd.f32 %v613, %v828
      %v830 = vpop.f32.mrb[0].mxu0
      %831 = vmatprep.mubr.f32.mxu0 0.0
      %832 = vmatmul.mubr.f32.gmra.mrb[0].mxu0 %v685
      %v833 = vpop.f32.mrb[0].mxu0
      %v834 = vadd.f32 %v614, %v833
      %v835 = vpop.f32.mrb[0].mxu0
      %836 = vmatprep.mubr.f32.mxu0 0.0
      %837 = vmatmul.mubr.f32.gmra.mrb[0].mxu0 %v687
      %v838 = vpop.f32.mrb[0].mxu0
      %v839 = vadd.f32 %v615, %v838
      %v840 = vpop.f32.mrb[0].mxu0
      %841 = vmatprep.mubr.f32.mxu0 0.0
      %842 = vmatmul.mubr.f32.gmra.mrb[0].mxu0 %v689
      %v843 = vpop.f32.mrb[0].mxu0
      %v844 = vadd.f32 %v616, %v843
      %v845 = vpop.f32.mrb[0].mxu0
      %846 = vmatprep.mubr.f32.mxu0 0.0
      %847 = vmatmul.mubr.f32.gmra.mrb[0].mxu0 %v691
      %v848 = vpop.f32.mrb[0].mxu0
      %v849 = vadd.f32 %v617, %v848
      %v850 = vpop.f32.mrb[0].mxu0
      %851 = vmatprep.mubr.f32.mxu0 0.0
      %852 = vmatmul.mubr.f32.gmra.mrb[0].mxu0 %v693
      %v853 = vpop.f32.mrb[0].mxu0
      %v854 = vadd.f32 %v618, %v853
      %v855 = vpop.f32.mrb[0].mxu0
      %856 = vmatprep.mubr.f32.mxu0 0.0
      %857 = vmatmul.mubr.f32.gmra.mrb[0].mxu0 %v695
      %v858 = vpop.f32.mrb[0].mxu0
      %v859 = vadd.f32 %v619, %v858
      %v860 = vpop.f32.mrb[0].mxu0
      %861 = vmatprep.mubr.f32.mxu0 0.0
      %862 = vmatmul.mubr.f32.gmra.mrb[0].mxu0 %v697
      %v863 = vpop.f32.mrb[0].mxu0
      %v864 = vadd.f32 %v620, %v863
      %v865 = vpop.f32.mrb[0].mxu0
      %866 = vmatprep.mubr.f32.mxu0 0.0
      %867 = vmatmul.mubr.f32.gmra.mrb[0].mxu0 %v699
      %v868 = vpop.f32.mrb[0].mxu0
      %v869 = vadd.f32 %v621, %v868
      %v870 = vpop.f32.mrb[0].mxu0
      %871 = vmatprep.mubr.f32.mxu0 0.0
      %872 = vmatmul.mubr.f32.gmra.mrb[0].mxu0 %v701
      %v873 = vpop.f32.mrb[0].mxu0
      %v874 = vadd.f32 %v622, %v873
      %v875 = vpop.f32.mrb[0].mxu0
      %876 = vmatprep.mubr.f32.mxu0 0.0
      %877 = vmatmul.mubr.f32.gmra.mrb[0].mxu0 %v703
      %v878 = vpop.f32.mrb[0].mxu0
      %v879 = vadd.f32 %v623, %v878
      %v880 = vpop.f32.mrb[0].mxu0
      %881 = vdwg.mxu0
      %882 = vmax.xlane.f32.xlu0 %v804
      %v883 = vpop.xlane.xlu0 %882
      %884 = vmax.xlane.f32.xlu0 %v809
      %v885 = vpop.xlane.xlu0 %884
      %886 = vmax.xlane.f32.xlu0 %v814
      %v887 = vpop.xlane.xlu0 %886
      %888 = vmax.xlane.f32.xlu0 %v819
      %v889 = vpop.xlane.xlu0 %888
      %890 = vmax.xlane.f32.xlu0 %v824
      %v891 = vpop.xlane.xlu0 %890
      %892 = vmax.xlane.f32.xlu0 %v829
      %v893 = vpop.xlane.xlu0 %892
      %894 = vmax.xlane.f32.xlu0 %v834
      %v895 = vpop.xlane.xlu0 %894
      %896 = vmax.xlane.f32.xlu0 %v839
      %v897 = vpop.xlane.xlu0 %896
      %898 = vmax.xlane.f32.xlu0 %v844
      %v899 = vpop.xlane.xlu0 %898
      %900 = vmax.xlane.f32.xlu0 %v849
      %v901 = vpop.xlane.xlu0 %900
      %902 = vmax.xlane.f32.xlu0 %v854
      %v903 = vpop.xlane.xlu0 %902
      %904 = vmax.xlane.f32.xlu0 %v859
      %v905 = vpop.xlane.xlu0 %904
      %906 = vmax.xlane.f32.xlu0 %v864
      %v907 = vpop.xlane.xlu0 %906
      %908 = vmax.xlane.f32.xlu0 %v869
      %v909 = vpop.xlane.xlu0 %908
      %910 = vmax.xlane.f32.xlu0 %v874
      %v911 = vpop.xlane.xlu0 %910
      %912 = vmax.xlane.f32.xlu0 %v879
      %v913 = vpop.xlane.xlu0 %912
      %v914 = vsub.f32 %v804, %v883
      %v915 = vsub.f32 %v809, %v885
      %v916 = vsub.f32 %v814, %v887
      %v917 = vsub.f32 %v819, %v889
      %v918 = vsub.f32 %v824, %v891
      %v919 = vsub.f32 %v829, %v893
      %v920 = vsub.f32 %v834, %v895
      %v921 = vsub.f32 %v839, %v897
      %v922 = vsub.f32 %v844, %v899
      %v923 = vsub.f32 %v849, %v901
      %v924 = vsub.f32 %v854, %v903
      %v925 = vsub.f32 %v859, %v905
      %v926 = vsub.f32 %v864, %v907
      %v927 = vsub.f32 %v869, %v909
      %v928 = vsub.f32 %v874, %v911
      %v929 = vsub.f32 %v879, %v913
      %v930 = vmul.f32 %v914, 1.442695
      %v931 = vpow.pop %v930
      %v932 = vmul.f32 %v915, 1.442695
      %v933 = vpow.pop %v932
      %v934 = vmul.f32 %v916, 1.442695
      %v935 = vpow.pop %v934
      %v936 = vmul.f32 %v917, 1.442695
      %v937 = vpow.pop %v936
      %v938 = vmul.f32 %v918, 1.442695
      %v939 = vpow.pop %v938
      %v940 = vmul.f32 %v919, 1.442695
      %v941 = vpow.pop %v940
      %v942 = vmul.f32 %v920, 1.442695
      %v943 = vpow.pop %v942
      %v944 = vmul.f32 %v921, 1.442695
      %v945 = vpow.pop %v944
      %v946 = vmul.f32 %v922, 1.442695
      %v947 = vpow.pop %v946
      %v948 = vmul.f32 %v923, 1.442695
      %v949 = vpow.pop %v948
      %v950 = vmul.f32 %v924, 1.442695
      %v951 = vpow.pop %v950
      %v952 = vmul.f32 %v925, 1.442695
      %v953 = vpow.pop %v952
      %v954 = vmul.f32 %v926, 1.442695
      %v955 = vpow.pop %v954
      %v956 = vmul.f32 %v927, 1.442695
      %v957 = vpow.pop %v956
      %v958 = vmul.f32 %v928, 1.442695
      %v959 = vpow.pop %v958
      %v960 = vmul.f32 %v929, 1.442695
      %v961 = vpow.pop %v960
      %962 = vadd.xlane.f32.xlu0 %v931
      %v963 = vpop.xlane.xlu0 %962
      %964 = vadd.xlane.f32.xlu0 %v933
      %v965 = vpop.xlane.xlu0 %964
      %966 = vadd.xlane.f32.xlu0 %v935
      %v967 = vpop.xlane.xlu0 %966
      %968 = vadd.xlane.f32.xlu0 %v937
      %v969 = vpop.xlane.xlu0 %968
      %970 = vadd.xlane.f32.xlu0 %v939
      %v971 = vpop.xlane.xlu0 %970
      %972 = vadd.xlane.f32.xlu0 %v941
      %v973 = vpop.xlane.xlu0 %972
      %974 = vadd.xlane.f32.xlu0 %v943
      %v975 = vpop.xlane.xlu0 %974
      %976 = vadd.xlane.f32.xlu0 %v945
      %v977 = vpop.xlane.xlu0 %976
      %978 = vadd.xlane.f32.xlu0 %v947
      %v979 = vpop.xlane.xlu0 %978
      %980 = vadd.xlane.f32.xlu0 %v949
      %v981 = vpop.xlane.xlu0 %980
      %982 = vadd.xlane.f32.xlu0 %v951
      %v983 = vpop.xlane.xlu0 %982
      %984 = vadd.xlane.f32.xlu0 %v953
      %v985 = vpop.xlane.xlu0 %984
      %986 = vadd.xlane.f32.xlu0 %v955
      %v987 = vpop.xlane.xlu0 %986
      %988 = vadd.xlane.f32.xlu0 %v957
      %v989 = vpop.xlane.xlu0 %988
      %990 = vadd.xlane.f32.xlu0 %v959
      %v991 = vpop.xlane.xlu0 %990
      %992 = vadd.xlane.f32.xlu0 %v961
      %v993 = vpop.xlane.xlu0 %992
      %v994 = vrcp.pop %v963
      %v995 = vrcp.pop %v965
      %v996 = vrcp.pop %v967
      %v997 = vrcp.pop %v969
      %v998 = vrcp.pop %v971
      %v999 = vrcp.pop %v973
      %v1000 = vrcp.pop %v975
      %v1001 = vrcp.pop %v977
      %v1002 = vrcp.pop %v979
      %v1003 = vrcp.pop %v981
      %v1004 = vrcp.pop %v983
      %v1005 = vrcp.pop %v985
      %v1006 = vrcp.pop %v987
      %v1007 = vrcp.pop %v989
      %v1008 = vrcp.pop %v991
      %v1009 = vrcp.pop %v993
      %v1010 = vmul.f32 %v931, %v994
      %v1011 = vmul.f32 %v933, %v995
      %v1012 = vmul.f32 %v935, %v996
      %v1013 = vmul.f32 %v937, %v997
      %v1014 = vmul.f32 %v939, %v998
      %v1015 = vmul.f32 %v941, %v999
      %v1016 = vmul.f32 %v943, %v1000
      %v1017 = vmul.f32 %v945, %v1001
      %v1018 = vmul.f32 %v947, %v1002
      %v1019 = vmul.f32 %v949, %v1003
      %v1020 = vmul.f32 %v951, %v1004
      %v1021 = vmul.f32 %v953, %v1005
      %v1022 = vmul.f32 %v955, %v1006
      %v1023 = vmul.f32 %v957, %v1007
      %v1024 = vmul.f32 %v959, %v1008
      %v1025 = vmul.f32 %v961, %v1009
      %1026 = vrot.lane.b32.xlu0 %v592, 64
      %v1027 = vpop.permute.xlu0 %1026
      %1028 = vrot.lane.b32.xlu0 %v593, 64
      %v1029 = vpop.permute.xlu0 %1028
      %1030 = vrot.lane.b32.xlu0 %v594, 64
      %v1031 = vpop.permute.xlu0 %1030
      %1032 = vrot.lane.b32.xlu0 %v595, 64
      %v1033 = vpop.permute.xlu0 %1032
      %1034 = vrot.lane.b32.xlu0 %v596, 64
      %v1035 = vpop.permute.xlu0 %1034
      %1036 = vrot.lane.b32.xlu0 %v597, 64
      %v1037 = vpop.permute.xlu0 %1036
      %1038 = vrot.lane.b32.xlu0 %v598, 64
      %v1039 = vpop.permute.xlu0 %1038
      %1040 = vrot.lane.b32.xlu0 %v599, 64
      %v1041 = vpop.permute.xlu0 %1040
      %1042 = vrot.lane.b32.xlu0 %v600, 64
      %v1043 = vpop.permute.xlu0 %1042
      %1044 = vrot.lane.b32.xlu0 %v601, 64
      %v1045 = vpop.permute.xlu0 %1044
      %1046 = vrot.lane.b32.xlu0 %v602, 64
      %v1047 = vpop.permute.xlu0 %1046
      %1048 = vrot.lane.b32.xlu0 %v603, 64
      %v1049 = vpop.permute.xlu0 %1048
      %1050 = vrot.lane.b32.xlu0 %v604, 64
      %v1051 = vpop.permute.xlu0 %1050
      %1052 = vrot.lane.b32.xlu0 %v605, 64
      %v1053 = vpop.permute.xlu0 %1052
      %1054 = vrot.lane.b32.xlu0 %v606, 64
      %v1055 = vpop.permute.xlu0 %1054
      %1056 = vrot.lane.b32.xlu0 %v607, 64
      %v1057 = vpop.permute.xlu0 %1056
      %1074 = vmatprep.subr.mxu0 0.0
      %1075 = vmatpush1.msra.mxu0 %v1027
      %1076 = vmatprep.subr.mxu0 0.0
      %1077 = vmatpush1.msra.mxu0 %v1029
      %1078 = vmatprep.subr.mxu0 0.0
      %1079 = vmatpush1.msra.mxu0 %v1031
      %1080 = vmatprep.subr.mxu0 0.0
      %1081 = vmatpush1.msra.mxu0 %v1033
      %1082 = vmatprep.subr.mxu0 0.0
      %1083 = vmatpush1.msra.mxu0 %v1035
      %1084 = vmatprep.subr.mxu0 0.0
      %1085 = vmatpush1.msra.mxu0 %v1037
      %1086 = vmatprep.subr.mxu0 0.0
      %1087 = vmatpush1.msra.mxu0 %v1039
      %1088 = vmatprep.subr.mxu0 0.0
      %1089 = vmatpush1.msra.mxu0 %v1041
      %1090 = vmatprep.subr.mxu0 0.0
      %1091 = vmatpush1.msra.mxu0 %v1043
      %1092 = vmatprep.subr.mxu0 0.0
      %1093 = vmatpush1.msra.mxu0 %v1045
      %1094 = vmatprep.subr.mxu0 0.0
      %1095 = vmatpush1.msra.mxu0 %v1047
      %1096 = vmatprep.subr.mxu0 0.0
      %1097 = vmatpush1.msra.mxu0 %v1049
      %1098 = vmatprep.subr.mxu0 0.0
      %1099 = vmatpush1.msra.mxu0 %v1051
      %1100 = vmatprep.subr.mxu0 0.0
      %1101 = vmatpush1.msra.mxu0 %v1053
      %1102 = vmatprep.subr.mxu0 0.0
      %1103 = vmatpush1.msra.mxu0 %v1055
      %1104 = vmatprep.subr.mxu0 0.0
      %1105 = vmatpush1.msra.mxu0 %v1057
      %1106 = vmatprep.subr.mxu0 0.0
      %1107 = vmatpush1.msra.mxu0 0.0
      %1108 = vmatprep.subr.mxu0 0.0
      %1109 = vmatpush1.msra.mxu0 0.0
      %1110 = vmatprep.subr.mxu0 0.0
      %1111 = vmatpush1.msra.mxu0 0.0
      %1112 = vmatprep.subr.mxu0 0.0
      %1113 = vmatpush1.msra.mxu0 0.0
      %1114 = vmatprep.subr.mxu0 0.0
      %1115 = vmatpush1.msra.mxu0 0.0
      %1116 = vmatprep.subr.mxu0 0.0
      %1117 = vmatpush1.msra.mxu0 0.0
      %1118 = vmatprep.subr.mxu0 0.0
      %1119 = vmatpush1.msra.mxu0 0.0
      %1120 = vmatprep.subr.mxu0 0.0
      %1121 = vmatpush1.msra.mxu0 0.0
      %1122 = vmatprep.subr.mxu0 0.0
      %1123 = vmatpush1.msra.mxu0 0.0
      %1124 = vmatprep.subr.mxu0 0.0
      %1125 = vmatpush1.msra.mxu0 0.0
      %1126 = vmatprep.subr.mxu0 0.0
      %1127 = vmatpush1.msra.mxu0 0.0
      %1128 = vmatprep.subr.mxu0 0.0
      %1129 = vmatpush1.msra.mxu0 0.0
      %1130 = vmatprep.subr.mxu0 0.0
      %1131 = vmatpush1.msra.mxu0 0.0
      %1132 = vmatprep.subr.mxu0 0.0
      %1133 = vmatpush1.msra.mxu0 0.0
      %1134 = vmatprep.subr.mxu0 0.0
      %1135 = vmatpush1.msra.mxu0 0.0
      %1136 = vmatprep.subr.mxu0 0.0
      %1137 = vmatpush1.msra.mxu0 0.0
      %1138 = vmatprep.mubr.f32.mxu0 0.0
      %1139 = vmatmul.mubr.f32.gmra.mrb[0].mxu0 %v1010
      %v1140 = vpop.f32.mrb[0].mxu0
      %v1141 = vadd.f32 0.0, %v1140
      %v1142 = vpop.f32.mrb[0].mxu0
      %1143 = vmatprep.mubr.f32.mxu0 0.0
      %1144 = vmatmul.mubr.f32.gmra.mrb[0].mxu0 %v1011
      %v1145 = vpop.f32.mrb[0].mxu0
      %v1146 = vadd.f32 0.0, %v1145
      %v1147 = vpop.f32.mrb[0].mxu0
      %1148 = vmatprep.mubr.f32.mxu0 0.0
      %1149 = vmatmul.mubr.f32.gmra.mrb[0].mxu0 %v1012
      %v1150 = vpop.f32.mrb[0].mxu0
      %v1151 = vadd.f32 0.0, %v1150
      %v1152 = vpop.f32.mrb[0].mxu0
      %1153 = vmatprep.mubr.f32.mxu0 0.0
      %1154 = vmatmul.mubr.f32.gmra.mrb[0].mxu0 %v1013
      %v1155 = vpop.f32.mrb[0].mxu0
      %v1156 = vadd.f32 0.0, %v1155
      %v1157 = vpop.f32.mrb[0].mxu0
      %1158 = vmatprep.mubr.f32.mxu0 0.0
      %1159 = vmatmul.mubr.f32.gmra.mrb[0].mxu0 %v1014
      %v1160 = vpop.f32.mrb[0].mxu0
      %v1161 = vadd.f32 0.0, %v1160
      %v1162 = vpop.f32.mrb[0].mxu0
      %1163 = vmatprep.mubr.f32.mxu0 0.0
      %1164 = vmatmul.mubr.f32.gmra.mrb[0].mxu0 %v1015
      %v1165 = vpop.f32.mrb[0].mxu0
      %v1166 = vadd.f32 0.0, %v1165
      %v1167 = vpop.f32.mrb[0].mxu0
      %1168 = vmatprep.mubr.f32.mxu0 0.0
      %1169 = vmatmul.mubr.f32.gmra.mrb[0].mxu0 %v1016
      %v1170 = vpop.f32.mrb[0].mxu0
      %v1171 = vadd.f32 0.0, %v1170
      %v1172 = vpop.f32.mrb[0].mxu0
      %1173 = vmatprep.mubr.f32.mxu0 0.0
      %1174 = vmatmul.mubr.f32.gmra.mrb[0].mxu0 %v1017
      %v1175 = vpop.f32.mrb[0].mxu0
      %v1176 = vadd.f32 0.0, %v1175
      %v1177 = vpop.f32.mrb[0].mxu0
      %1178 = vmatprep.mubr.f32.mxu0 0.0
      %1179 = vmatmul.mubr.f32.gmra.mrb[0].mxu0 %v1018
      %v1180 = vpop.f32.mrb[0].mxu0
      %v1181 = vadd.f32 0.0, %v1180
      %v1182 = vpop.f32.mrb[0].mxu0
      %1183 = vmatprep.mubr.f32.mxu0 0.0
      %1184 = vmatmul.mubr.f32.gmra.mrb[0].mxu0 %v1019
      %v1185 = vpop.f32.mrb[0].mxu0
      %v1186 = vadd.f32 0.0, %v1185
      %v1187 = vpop.f32.mrb[0].mxu0
      %1188 = vmatprep.mubr.f32.mxu0 0.0
      %1189 = vmatmul.mubr.f32.gmra.mrb[0].mxu0 %v1020
      %v1190 = vpop.f32.mrb[0].mxu0
      %v1191 = vadd.f32 0.0, %v1190
      %v1192 = vpop.f32.mrb[0].mxu0
      %1193 = vmatprep.mubr.f32.mxu0 0.0
      %1194 = vmatmul.mubr.f32.gmra.mrb[0].mxu0 %v1021
      %v1195 = vpop.f32.mrb[0].mxu0
      %v1196 = vadd.f32 0.0, %v1195
      %v1197 = vpop.f32.mrb[0].mxu0
      %1198 = vmatprep.mubr.f32.mxu0 0.0
      %1199 = vmatmul.mubr.f32.gmra.mrb[0].mxu0 %v1022
      %v1200 = vpop.f32.mrb[0].mxu0
      %v1201 = vadd.f32 0.0, %v1200
      %v1202 = vpop.f32.mrb[0].mxu0
      %1203 = vmatprep.mubr.f32.mxu0 0.0
      %1204 = vmatmul.mubr.f32.gmra.mrb[0].mxu0 %v1023
      %v1205 = vpop.f32.mrb[0].mxu0
      %v1206 = vadd.f32 0.0, %v1205
      %v1207 = vpop.f32.mrb[0].mxu0
      %1208 = vmatprep.mubr.f32.mxu0 0.0
      %1209 = vmatmul.mubr.f32.gmra.mrb[0].mxu0 %v1024
      %v1210 = vpop.f32.mrb[0].mxu0
      %v1211 = vadd.f32 0.0, %v1210
      %v1212 = vpop.f32.mrb[0].mxu0
      %1213 = vmatprep.mubr.f32.mxu0 0.0
      %1214 = vmatmul.mubr.f32.gmra.mrb[0].mxu0 %v1025
      %v1215 = vpop.f32.mrb[0].mxu0
      %v1216 = vadd.f32 0.0, %v1215
      %v1217 = vpop.f32.mrb[0].mxu0
      %1218 = vdwg.mxu0
      %1219 = vst.msk [vmem:[#allocation3] sm:$0xff] %vm672, %v1141
      %1220 = vst.msk [vmem:[#allocation3 + $0x8] sm:$0xff] %vm672, %v1146
      %1221 = vst.msk [vmem:[#allocation3 + $0x10] sm:$0xff] %vm672, %v1151
      %1222 = vst.msk [vmem:[#allocation3 + $0x18] sm:$0xff] %vm672, %v1156
      %1223 = vst.msk [vmem:[#allocation3 + $0x20] sm:$0xff] %vm672, %v1161
      %1224 = vst.msk [vmem:[#allocation3 + $0x28] sm:$0xff] %vm672, %v1166
      %1225 = vst.msk [vmem:[#allocation3 + $0x30] sm:$0xff] %vm672, %v1171
      %1226 = vst.msk [vmem:[#allocation3 + $0x38] sm:$0xff] %vm672, %v1176
      %1227 = vst.msk [vmem:[#allocation3 + $0x40] sm:$0xff] %vm672, %v1181
      %1228 = vst.msk [vmem:[#allocation3 + $0x48] sm:$0xff] %vm672, %v1186
      %1229 = vst.msk [vmem:[#allocation3 + $0x50] sm:$0xff] %vm672, %v1191
      %1230 = vst.msk [vmem:[#allocation3 + $0x58] sm:$0xff] %vm672, %v1196
      %1231 = vst.msk [vmem:[#allocation3 + $0x60] sm:$0xff] %vm672, %v1201
      %1232 = vst.msk [vmem:[#allocation3 + $0x68] sm:$0xff] %vm672, %v1206
      %1233 = vst.msk [vmem:[#allocation3 + $0x70] sm:$0xff] %vm672, %v1211
      %1234 = vst.msk [vmem:[#allocation3 + $0x78] sm:$0xff] %vm672, %v1216
      %v1235 = vld [vmem:[#allocation2] sm:$0xff]
      %v1236 = vld [vmem:[#allocation2 + $0x8] sm:$0xff]
      %v1237 = vld [vmem:[#allocation2 + $0x10] sm:$0xff]
      %v1238 = vld [vmem:[#allocation2 + $0x18] sm:$0xff]
      %v1239 = vld [vmem:[#allocation2 + $0x20] sm:$0xff]
      %v1240 = vld [vmem:[#allocation2 + $0x28] sm:$0xff]
      %v1241 = vld [vmem:[#allocation2 + $0x30] sm:$0xff]
      %v1242 = vld [vmem:[#allocation2 + $0x38] sm:$0xff]
      %v1243 = vld [vmem:[#allocation2 + $0x40] sm:$0xff]
      %v1244 = vld [vmem:[#allocation2 + $0x48] sm:$0xff]
      %v1245 = vld [vmem:[#allocation2 + $0x50] sm:$0xff]
      %v1246 = vld [vmem:[#allocation2 + $0x58] sm:$0xff]
      %v1247 = vld [vmem:[#allocation2 + $0x60] sm:$0xff]
      %v1248 = vld [vmem:[#allocation2 + $0x68] sm:$0xff]
      %v1249 = vld [vmem:[#allocation2 + $0x70] sm:$0xff]
      %v1250 = vld [vmem:[#allocation2 + $0x78] sm:$0xff]
      %s1251 = scalar_lea.vmem %s2, 128
      %v1252 = vld [vmem:[%s1251] sm:$0xff]
      %v1253 = vld [vmem:[%s1251 + $0x8] sm:$0xff]
      %v1254 = vld [vmem:[%s1251 + $0x10] sm:$0xff]
      %v1255 = vld [vmem:[%s1251 + $0x18] sm:$0xff]
      %v1256 = vld [vmem:[%s1251 + $0x20] sm:$0xff]
      %v1257 = vld [vmem:[%s1251 + $0x28] sm:$0xff]
      %v1258 = vld [vmem:[%s1251 + $0x30] sm:$0xff]
      %v1259 = vld [vmem:[%s1251 + $0x38] sm:$0xff]
      %v1260 = vld [vmem:[%s1251 + $0x40] sm:$0xff]
      %v1261 = vld [vmem:[%s1251 + $0x48] sm:$0xff]
      %v1262 = vld [vmem:[%s1251 + $0x50] sm:$0xff]
      %v1263 = vld [vmem:[%s1251 + $0x58] sm:$0xff]
      %v1264 = vld [vmem:[%s1251 + $0x60] sm:$0xff]
      %v1265 = vld [vmem:[%s1251 + $0x68] sm:$0xff]
      %v1266 = vld [vmem:[%s1251 + $0x70] sm:$0xff]
      %v1267 = vld [vmem:[%s1251 + $0x78] sm:$0xff]
      %1284 = vrot.lane.b32.xlu0 %v1235, 112
      %v1285 = vpop.permute.xlu0 %1284
      %1286 = vrot.lane.b32.xlu0 %v1236, 112
      %v1287 = vpop.permute.xlu0 %1286
      %1288 = vrot.lane.b32.xlu0 %v1237, 112
      %v1289 = vpop.permute.xlu0 %1288
      %1290 = vrot.lane.b32.xlu0 %v1238, 112
      %v1291 = vpop.permute.xlu0 %1290
      %1292 = vrot.lane.b32.xlu0 %v1239, 112
      %v1293 = vpop.permute.xlu0 %1292
      %1294 = vrot.lane.b32.xlu0 %v1240, 112
      %v1295 = vpop.permute.xlu0 %1294
      %1296 = vrot.lane.b32.xlu0 %v1241, 112
      %v1297 = vpop.permute.xlu0 %1296
      %1298 = vrot.lane.b32.xlu0 %v1242, 112
      %v1299 = vpop.permute.xlu0 %1298
      %1300 = vrot.lane.b32.xlu0 %v1243, 112
      %v1301 = vpop.permute.xlu0 %1300
      %1302 = vrot.lane.b32.xlu0 %v1244, 112
      %v1303 = vpop.permute.xlu0 %1302
      %1304 = vrot.lane.b32.xlu0 %v1245, 112
      %v1305 = vpop.permute.xlu0 %1304
      %1306 = vrot.lane.b32.xlu0 %v1246, 112
      %v1307 = vpop.permute.xlu0 %1306
      %1308 = vrot.lane.b32.xlu0 %v1247, 112
      %v1309 = vpop.permute.xlu0 %1308
      %1310 = vrot.lane.b32.xlu0 %v1248, 112
      %v1311 = vpop.permute.xlu0 %1310
      %1312 = vrot.lane.b32.xlu0 %v1249, 112
      %v1313 = vpop.permute.xlu0 %1312
      %1314 = vrot.lane.b32.xlu0 %v1250, 112
      %v1315 = vpop.permute.xlu0 %1314
      %1316 = vrot.lane.b32.xlu0 %v1235, 80
      %v1317 = vpop.permute.xlu0 %1316
      %1318 = vrot.lane.b32.xlu0 %v1236, 80
      %v1319 = vpop.permute.xlu0 %1318
      %1320 = vrot.lane.b32.xlu0 %v1237, 80
      %v1321 = vpop.permute.xlu0 %1320
      %1322 = vrot.lane.b32.xlu0 %v1238, 80
      %v1323 = vpop.permute.xlu0 %1322
      %1324 = vrot.lane.b32.xlu0 %v1239, 80
      %v1325 = vpop.permute.xlu0 %1324
      %1326 = vrot.lane.b32.xlu0 %v1240, 80
      %v1327 = vpop.permute.xlu0 %1326
      %1328 = vrot.lane.b32.xlu0 %v1241, 80
      %v1329 = vpop.permute.xlu0 %1328
      %1330 = vrot.lane.b32.xlu0 %v1242, 80
      %v1331 = vpop.permute.xlu0 %1330
      %1332 = vrot.lane.b32.xlu0 %v1243, 80
      %v1333 = vpop.permute.xlu0 %1332
      %1334 = vrot.lane.b32.xlu0 %v1244, 80
      %v1335 = vpop.permute.xlu0 %1334
      %1336 = vrot.lane.b32.xlu0 %v1245, 80
      %v1337 = vpop.permute.xlu0 %1336
      %1338 = vrot.lane.b32.xlu0 %v1246, 80
      %v1339 = vpop.permute.xlu0 %1338
      %1340 = vrot.lane.b32.xlu0 %v1247, 80
      %v1341 = vpop.permute.xlu0 %1340
      %1342 = vrot.lane.b32.xlu0 %v1248, 80
      %v1343 = vpop.permute.xlu0 %1342
      %1344 = vrot.lane.b32.xlu0 %v1249, 80
      %v1345 = vpop.permute.xlu0 %1344
      %1346 = vrot.lane.b32.xlu0 %v1250, 80
      %v1347 = vpop.permute.xlu0 %1346
      %v1348 = vsel %vm672, %v1285, 0
      %v1350 = vsel %vm672, %v1287, 0
      %v1352 = vsel %vm672, %v1289, 0
      %v1354 = vsel %vm672, %v1291, 0
      %v1356 = vsel %vm672, %v1293, 0
      %v1358 = vsel %vm672, %v1295, 0
      %v1360 = vsel %vm672, %v1297, 0
      %v1362 = vsel %vm672, %v1299, 0
      %v1364 = vsel %vm672, %v1301, 0
      %v1366 = vsel %vm672, %v1303, 0
      %v1368 = vsel %vm672, %v1305, 0
      %v1370 = vsel %vm672, %v1307, 0
      %v1372 = vsel %vm672, %v1309, 0
      %v1374 = vsel %vm672, %v1311, 0
      %v1376 = vsel %vm672, %v1313, 0
      %v1378 = vsel %vm672, %v1315, 0
      %v1380 = vsel %vm672, %v1317, 0
      %v1382 = vsel %vm672, %v1319, 0
      %v1384 = vsel %vm672, %v1321, 0
      %v1386 = vsel %vm672, %v1323, 0
      %v1388 = vsel %vm672, %v1325, 0
      %v1390 = vsel %vm672, %v1327, 0
      %v1392 = vsel %vm672, %v1329, 0
      %v1394 = vsel %vm672, %v1331, 0
      %v1396 = vsel %vm672, %v1333, 0
      %v1398 = vsel %vm672, %v1335, 0
      %v1400 = vsel %vm672, %v1337, 0
      %v1402 = vsel %vm672, %v1339, 0
      %v1404 = vsel %vm672, %v1341, 0
      %v1406 = vsel %vm672, %v1343, 0
      %v1408 = vsel %vm672, %v1345, 0
      %v1410 = vsel %vm672, %v1347, 0
      %1412 = vmatprep.subr.mxu0 0.0
      %1413 = vmatpush1.xpose.msra.mxu0 %v1380
      %1414 = vmatprep.subr.mxu0 0.0
      %1415 = vmatpush1.xpose.msra.mxu0 %v1382
      %1416 = vmatprep.subr.mxu0 0.0
      %1417 = vmatpush1.xpose.msra.mxu0 %v1384
      %1418 = vmatprep.subr.mxu0 0.0
      %1419 = vmatpush1.xpose.msra.mxu0 %v1386
      %1420 = vmatprep.subr.mxu0 0.0
      %1421 = vmatpush1.xpose.msra.mxu0 %v1388
      %1422 = vmatprep.subr.mxu0 0.0
      %1423 = vmatpush1.xpose.msra.mxu0 %v1390
      %1424 = vmatprep.subr.mxu0 0.0
      %1425 = vmatpush1.xpose.msra.mxu0 %v1392
      %1426 = vmatprep.subr.mxu0 0.0
      %1427 = vmatpush1.xpose.msra.mxu0 %v1394
      %1428 = vmatprep.subr.mxu0 0.0
      %1429 = vmatpush1.xpose.msra.mxu0 %v1396
      %1430 = vmatprep.subr.mxu0 0.0
      %1431 = vmatpush1.xpose.msra.mxu0 %v1398
      %1432 = vmatprep.subr.mxu0 0.0
      %1433 = vmatpush1.xpose.msra.mxu0 %v1400
      %1434 = vmatprep.subr.mxu0 0.0
      %1435 = vmatpush1.xpose.msra.mxu0 %v1402
      %1436 = vmatprep.subr.mxu0 0.0
      %1437 = vmatpush1.xpose.msra.mxu0 %v1404
      %1438 = vmatprep.subr.mxu0 0.0
      %1439 = vmatpush1.xpose.msra.mxu0 %v1406
      %1440 = vmatprep.subr.mxu0 0.0
      %1441 = vmatpush1.xpose.msra.mxu0 %v1408
      %1442 = vmatprep.subr.mxu0 0.0
      %1443 = vmatpush1.xpose.msra.mxu0 %v1410
      %1444 = vmatprep.subr.mxu0 0.0
      %1445 = vmatpush1.xpose.msra.mxu0 0.0
      %1446 = vmatprep.subr.mxu0 0.0
      %1447 = vmatpush1.xpose.msra.mxu0 0.0
      %1448 = vmatprep.subr.mxu0 0.0
      %1449 = vmatpush1.xpose.msra.mxu0 0.0
      %1450 = vmatprep.subr.mxu0 0.0
      %1451 = vmatpush1.xpose.msra.mxu0 0.0
      %1452 = vmatprep.subr.mxu0 0.0
      %1453 = vmatpush1.xpose.msra.mxu0 0.0
      %1454 = vmatprep.subr.mxu0 0.0
      %1455 = vmatpush1.xpose.msra.mxu0 0.0
      %1456 = vmatprep.subr.mxu0 0.0
      %1457 = vmatpush1.xpose.msra.mxu0 0.0
      %1458 = vmatprep.subr.mxu0 0.0
      %1459 = vmatpush1.xpose.msra.mxu0 0.0
      %1460 = vmatprep.subr.mxu0 0.0
      %1461 = vmatpush1.xpose.msra.mxu0 0.0
      %1462 = vmatprep.subr.mxu0 0.0
      %1463 = vmatpush1.xpose.msra.mxu0 0.0
      %1464 = vmatprep.subr.mxu0 0.0
      %1465 = vmatpush1.xpose.msra.mxu0 0.0
      %1466 = vmatprep.subr.mxu0 0.0
      %1467 = vmatpush1.xpose.msra.mxu0 0.0
      %1468 = vmatprep.subr.mxu0 0.0
      %1469 = vmatpush1.xpose.msra.mxu0 0.0
      %1470 = vmatprep.subr.mxu0 0.0
      %1471 = vmatpush1.xpose.msra.mxu0 0.0
      %1472 = vmatprep.subr.mxu0 0.0
      %1473 = vmatpush1.xpose.msra.mxu0 0.0
      %1474 = vmatprep.subr.mxu0 0.0
      %1475 = vmatpush1.xpose.msra.mxu0 0.0
      %1476 = vmatprep.mubr.f32.mxu0 0.0
      %1477 = vmatmul.mubr.f32.gmra.mrb[0].mxu0 %v1348
      %v1478 = vpop.f32.mrb[0].mxu0
      %v1479 = vadd.f32 %v1252, %v1478
      %v1480 = vpop.f32.mrb[0].mxu0
      %1481 = vmatprep.mubr.f32.mxu0 0.0
      %1482 = vmatmul.mubr.f32.gmra.mrb[0].mxu0 %v1350
      %v1483 = vpop.f32.mrb[0].mxu0
      %v1484 = vadd.f32 %v1253, %v1483
      %v1485 = vpop.f32.mrb[0].mxu0
      %1486 = vmatprep.mubr.f32.mxu0 0.0
      %1487 = vmatmul.mubr.f32.gmra.mrb[0].mxu0 %v1352
      %v1488 = vpop.f32.mrb[0].mxu0
      %v1489 = vadd.f32 %v1254, %v1488
      %v1490 = vpop.f32.mrb[0].mxu0
      %1491 = vmatprep.mubr.f32.mxu0 0.0
      %1492 = vmatmul.mubr.f32.gmra.mrb[0].mxu0 %v1354
      %v1493 = vpop.f32.mrb[0].mxu0
      %v1494 = vadd.f32 %v1255, %v1493
      %v1495 = vpop.f32.mrb[0].mxu0
      %1496 = vmatprep.mubr.f32.mxu0 0.0
      %1497 = vmatmul.mubr.f32.gmra.mrb[0].mxu0 %v1356
      %v1498 = vpop.f32.mrb[0].mxu0
      %v1499 = vadd.f32 %v1256, %v1498
      %v1500 = vpop.f32.mrb[0].mxu0
      %1501 = vmatprep.mubr.f32.mxu0 0.0
      %1502 = vmatmul.mubr.f32.gmra.mrb[0].mxu0 %v1358
      %v1503 = vpop.f32.mrb[0].mxu0
      %v1504 = vadd.f32 %v1257, %v1503
      %v1505 = vpop.f32.mrb[0].mxu0
      %1506 = vmatprep.mubr.f32.mxu0 0.0
      %1507 = vmatmul.mubr.f32.gmra.mrb[0].mxu0 %v1360
      %v1508 = vpop.f32.mrb[0].mxu0
      %v1509 = vadd.f32 %v1258, %v1508
      %v1510 = vpop.f32.mrb[0].mxu0
      %1511 = vmatprep.mubr.f32.mxu0 0.0
      %1512 = vmatmul.mubr.f32.gmra.mrb[0].mxu0 %v1362
      %v1513 = vpop.f32.mrb[0].mxu0
      %v1514 = vadd.f32 %v1259, %v1513
      %v1515 = vpop.f32.mrb[0].mxu0
      %1516 = vmatprep.mubr.f32.mxu0 0.0
      %1517 = vmatmul.mubr.f32.gmra.mrb[0].mxu0 %v1364
      %v1518 = vpop.f32.mrb[0].mxu0
      %v1519 = vadd.f32 %v1260, %v1518
      %v1520 = vpop.f32.mrb[0].mxu0
      %1521 = vmatprep.mubr.f32.mxu0 0.0
      %1522 = vmatmul.mubr.f32.gmra.mrb[0].mxu0 %v1366
      %v1523 = vpop.f32.mrb[0].mxu0
      %v1524 = vadd.f32 %v1261, %v1523
      %v1525 = vpop.f32.mrb[0].mxu0
      %1526 = vmatprep.mubr.f32.mxu0 0.0
      %1527 = vmatmul.mubr.f32.gmra.mrb[0].mxu0 %v1368
      %v1528 = vpop.f32.mrb[0].mxu0
      %v1529 = vadd.f32 %v1262, %v1528
      %v1530 = vpop.f32.mrb[0].mxu0
      %1531 = vmatprep.mubr.f32.mxu0 0.0
      %1532 = vmatmul.mubr.f32.gmra.mrb[0].mxu0 %v1370
      %v1533 = vpop.f32.mrb[0].mxu0
      %v1534 = vadd.f32 %v1263, %v1533
      %v1535 = vpop.f32.mrb[0].mxu0
      %1536 = vmatprep.mubr.f32.mxu0 0.0
      %1537 = vmatmul.mubr.f32.gmra.mrb[0].mxu0 %v1372
      %v1538 = vpop.f32.mrb[0].mxu0
      %v1539 = vadd.f32 %v1264, %v1538
      %v1540 = vpop.f32.mrb[0].mxu0
      %1541 = vmatprep.mubr.f32.mxu0 0.0
      %1542 = vmatmul.mubr.f32.gmra.mrb[0].mxu0 %v1374
      %v1543 = vpop.f32.mrb[0].mxu0
      %v1544 = vadd.f32 %v1265, %v1543
      %v1545 = vpop.f32.mrb[0].mxu0
      %1546 = vmatprep.mubr.f32.mxu0 0.0
      %1547 = vmatmul.mubr.f32.gmra.mrb[0].mxu0 %v1376
      %v1548 = vpop.f32.mrb[0].mxu0
      %v1549 = vadd.f32 %v1266, %v1548
      %v1550 = vpop.f32.mrb[0].mxu0
      %1551 = vmatprep.mubr.f32.mxu0 0.0
      %1552 = vmatmul.mubr.f32.gmra.mrb[0].mxu0 %v1378
      %v1553 = vpop.f32.mrb[0].mxu0
      %v1554 = vadd.f32 %v1267, %v1553
      %v1555 = vpop.f32.mrb[0].mxu0
      %1556 = vdwg.mxu0
      %1557 = vmax.xlane.f32.xlu0 %v1479
      %v1558 = vpop.xlane.xlu0 %1557
      %1559 = vmax.xlane.f32.xlu0 %v1484
      %v1560 = vpop.xlane.xlu0 %1559
      %1561 = vmax.xlane.f32.xlu0 %v1489
      %v1562 = vpop.xlane.xlu0 %1561
      %1563 = vmax.xlane.f32.xlu0 %v1494
      %v1564 = vpop.xlane.xlu0 %1563
      %1565 = vmax.xlane.f32.xlu0 %v1499
      %v1566 = vpop.xlane.xlu0 %1565
      %1567 = vmax.xlane.f32.xlu0 %v1504
      %v1568 = vpop.xlane.xlu0 %1567
      %1569 = vmax.xlane.f32.xlu0 %v1509
      %v1570 = vpop.xlane.xlu0 %1569
      %1571 = vmax.xlane.f32.xlu0 %v1514
      %v1572 = vpop.xlane.xlu0 %1571
      %1573 = vmax.xlane.f32.xlu0 %v1519
      %v1574 = vpop.xlane.xlu0 %1573
      %1575 = vmax.xlane.f32.xlu0 %v1524
      %v1576 = vpop.xlane.xlu0 %1575
      %1577 = vmax.xlane.f32.xlu0 %v1529
      %v1578 = vpop.xlane.xlu0 %1577
      %1579 = vmax.xlane.f32.xlu0 %v1534
      %v1580 = vpop.xlane.xlu0 %1579
      %1581 = vmax.xlane.f32.xlu0 %v1539
      %v1582 = vpop.xlane.xlu0 %1581
      %1583 = vmax.xlane.f32.xlu0 %v1544
      %v1584 = vpop.xlane.xlu0 %1583
      %1585 = vmax.xlane.f32.xlu0 %v1549
      %v1586 = vpop.xlane.xlu0 %1585
      %1587 = vmax.xlane.f32.xlu0 %v1554
      %v1588 = vpop.xlane.xlu0 %1587
      %v1589 = vsub.f32 %v1479, %v1558
      %v1590 = vsub.f32 %v1484, %v1560
      %v1591 = vsub.f32 %v1489, %v1562
      %v1592 = vsub.f32 %v1494, %v1564
      %v1593 = vsub.f32 %v1499, %v1566
      %v1594 = vsub.f32 %v1504, %v1568
      %v1595 = vsub.f32 %v1509, %v1570
      %v1596 = vsub.f32 %v1514, %v1572
      %v1597 = vsub.f32 %v1519, %v1574
      %v1598 = vsub.f32 %v1524, %v1576
      %v1599 = vsub.f32 %v1529, %v1578
      %v1600 = vsub.f32 %v1534, %v1580
      %v1601 = vsub.f32 %v1539, %v1582
      %v1602 = vsub.f32 %v1544, %v1584
      %v1603 = vsub.f32 %v1549, %v1586
      %v1604 = vsub.f32 %v1554, %v1588
      %v1605 = vmul.f32 %v1589, 1.442695
      %v1606 = vpow.pop %v1605
      %v1607 = vmul.f32 %v1590, 1.442695
      %v1608 = vpow.pop %v1607
      %v1609 = vmul.f32 %v1591, 1.442695
      %v1610 = vpow.pop %v1609
      %v1611 = vmul.f32 %v1592, 1.442695
      %v1612 = vpow.pop %v1611
      %v1613 = vmul.f32 %v1593, 1.442695
      %v1614 = vpow.pop %v1613
      %v1615 = vmul.f32 %v1594, 1.442695
      %v1616 = vpow.pop %v1615
      %v1617 = vmul.f32 %v1595, 1.442695
      %v1618 = vpow.pop %v1617
      %v1619 = vmul.f32 %v1596, 1.442695
      %v1620 = vpow.pop %v1619
      %v1621 = vmul.f32 %v1597, 1.442695
      %v1622 = vpow.pop %v1621
      %v1623 = vmul.f32 %v1598, 1.442695
      %v1624 = vpow.pop %v1623
      %v1625 = vmul.f32 %v1599, 1.442695
      %v1626 = vpow.pop %v1625
      %v1627 = vmul.f32 %v1600, 1.442695
      %v1628 = vpow.pop %v1627
      %v1629 = vmul.f32 %v1601, 1.442695
      %v1630 = vpow.pop %v1629
      %v1631 = vmul.f32 %v1602, 1.442695
      %v1632 = vpow.pop %v1631
      %v1633 = vmul.f32 %v1603, 1.442695
      %v1634 = vpow.pop %v1633
      %v1635 = vmul.f32 %v1604, 1.442695
      %v1636 = vpow.pop %v1635
      %1637 = vadd.xlane.f32.xlu0 %v1606
      %v1638 = vpop.xlane.xlu0 %1637
      %1639 = vadd.xlane.f32.xlu0 %v1608
      %v1640 = vpop.xlane.xlu0 %1639
      %1641 = vadd.xlane.f32.xlu0 %v1610
      %v1642 = vpop.xlane.xlu0 %1641
      %1643 = vadd.xlane.f32.xlu0 %v1612
      %v1644 = vpop.xlane.xlu0 %1643
      %1645 = vadd.xlane.f32.xlu0 %v1614
      %v1646 = vpop.xlane.xlu0 %1645
      %1647 = vadd.xlane.f32.xlu0 %v1616
      %v1648 = vpop.xlane.xlu0 %1647
      %1649 = vadd.xlane.f32.xlu0 %v1618
      %v1650 = vpop.xlane.xlu0 %1649
      %1651 = vadd.xlane.f32.xlu0 %v1620
      %v1652 = vpop.xlane.xlu0 %1651
      %1653 = vadd.xlane.f32.xlu0 %v1622
      %v1654 = vpop.xlane.xlu0 %1653
      %1655 = vadd.xlane.f32.xlu0 %v1624
      %v1656 = vpop.xlane.xlu0 %1655
      %1657 = vadd.xlane.f32.xlu0 %v1626
      %v1658 = vpop.xlane.xlu0 %1657
      %1659 = vadd.xlane.f32.xlu0 %v1628
      %v1660 = vpop.xlane.xlu0 %1659
      %1661 = vadd.xlane.f32.xlu0 %v1630
      %v1662 = vpop.xlane.xlu0 %1661
      %1663 = vadd.xlane.f32.xlu0 %v1632
      %v1664 = vpop.xlane.xlu0 %1663
      %1665 = vadd.xlane.f32.xlu0 %v1634
      %v1666 = vpop.xlane.xlu0 %1665
      %1667 = vadd.xlane.f32.xlu0 %v1636
      %v1668 = vpop.xlane.xlu0 %1667
      %v1669 = vrcp.pop %v1638
      %v1670 = vrcp.pop %v1640
      %v1671 = vrcp.pop %v1642
      %v1672 = vrcp.pop %v1644
      %v1673 = vrcp.pop %v1646
      %v1674 = vrcp.pop %v1648
      %v1675 = vrcp.pop %v1650
      %v1676 = vrcp.pop %v1652
      %v1677 = vrcp.pop %v1654
      %v1678 = vrcp.pop %v1656
      %v1679 = vrcp.pop %v1658
      %v1680 = vrcp.pop %v1660
      %v1681 = vrcp.pop %v1662
      %v1682 = vrcp.pop %v1664
      %v1683 = vrcp.pop %v1666
      %v1684 = vrcp.pop %v1668
      %v1685 = vmul.f32 %v1606, %v1669
      %v1686 = vmul.f32 %v1608, %v1670
      %v1687 = vmul.f32 %v1610, %v1671
      %v1688 = vmul.f32 %v1612, %v1672
      %v1689 = vmul.f32 %v1614, %v1673
      %v1690 = vmul.f32 %v1616, %v1674
      %v1691 = vmul.f32 %v1618, %v1675
      %v1692 = vmul.f32 %v1620, %v1676
      %v1693 = vmul.f32 %v1622, %v1677
      %v1694 = vmul.f32 %v1624, %v1678
      %v1695 = vmul.f32 %v1626, %v1679
      %v1696 = vmul.f32 %v1628, %v1680
      %v1697 = vmul.f32 %v1630, %v1681
      %v1698 = vmul.f32 %v1632, %v1682
      %v1699 = vmul.f32 %v1634, %v1683
      %v1700 = vmul.f32 %v1636, %v1684
      %1701 = vrot.lane.b32.xlu0 %v1235, 48
      %v1702 = vpop.permute.xlu0 %1701
      %1703 = vrot.lane.b32.xlu0 %v1236, 48
      %v1704 = vpop.permute.xlu0 %1703
      %1705 = vrot.lane.b32.xlu0 %v1237, 48
      %v1706 = vpop.permute.xlu0 %1705
      %1707 = vrot.lane.b32.xlu0 %v1238, 48
      %v1708 = vpop.permute.xlu0 %1707
      %1709 = vrot.lane.b32.xlu0 %v1239, 48
      %v1710 = vpop.permute.xlu0 %1709
      %1711 = vrot.lane.b32.xlu0 %v1240, 48
      %v1712 = vpop.permute.xlu0 %1711
      %1713 = vrot.lane.b32.xlu0 %v1241, 48
      %v1714 = vpop.permute.xlu0 %1713
      %1715 = vrot.lane.b32.xlu0 %v1242, 48
      %v1716 = vpop.permute.xlu0 %1715
      %1717 = vrot.lane.b32.xlu0 %v1243, 48
      %v1718 = vpop.permute.xlu0 %1717
      %1719 = vrot.lane.b32.xlu0 %v1244, 48
      %v1720 = vpop.permute.xlu0 %1719
      %1721 = vrot.lane.b32.xlu0 %v1245, 48
      %v1722 = vpop.permute.xlu0 %1721
      %1723 = vrot.lane.b32.xlu0 %v1246, 48
      %v1724 = vpop.permute.xlu0 %1723
      %1725 = vrot.lane.b32.xlu0 %v1247, 48
      %v1726 = vpop.permute.xlu0 %1725
      %1727 = vrot.lane.b32.xlu0 %v1248, 48
      %v1728 = vpop.permute.xlu0 %1727
      %1729 = vrot.lane.b32.xlu0 %v1249, 48
      %v1730 = vpop.permute.xlu0 %1729
      %1731 = vrot.lane.b32.xlu0 %v1250, 48
      %v1732 = vpop.permute.xlu0 %1731
      %1749 = vmatprep.subr.mxu0 0.0
      %1750 = vmatpush1.msra.mxu0 %v1702
      %1751 = vmatprep.subr.mxu0 0.0
      %1752 = vmatpush1.msra.mxu0 %v1704
      %1753 = vmatprep.subr.mxu0 0.0
      %1754 = vmatpush1.msra.mxu0 %v1706
      %1755 = vmatprep.subr.mxu0 0.0
      %1756 = vmatpush1.msra.mxu0 %v1708
      %1757 = vmatprep.subr.mxu0 0.0
      %1758 = vmatpush1.msra.mxu0 %v1710
      %1759 = vmatprep.subr.mxu0 0.0
      %1760 = vmatpush1.msra.mxu0 %v1712
      %1761 = vmatprep.subr.mxu0 0.0
      %1762 = vmatpush1.msra.mxu0 %v1714
      %1763 = vmatprep.subr.mxu0 0.0
      %1764 = vmatpush1.msra.mxu0 %v1716
      %1765 = vmatprep.subr.mxu0 0.0
      %1766 = vmatpush1.msra.mxu0 %v1718
      %1767 = vmatprep.subr.mxu0 0.0
      %1768 = vmatpush1.msra.mxu0 %v1720
      %1769 = vmatprep.subr.mxu0 0.0
      %1770 = vmatpush1.msra.mxu0 %v1722
      %1771 = vmatprep.subr.mxu0 0.0
      %1772 = vmatpush1.msra.mxu0 %v1724
      %1773 = vmatprep.subr.mxu0 0.0
      %1774 = vmatpush1.msra.mxu0 %v1726
      %1775 = vmatprep.subr.mxu0 0.0
      %1776 = vmatpush1.msra.mxu0 %v1728
      %1777 = vmatprep.subr.mxu0 0.0
      %1778 = vmatpush1.msra.mxu0 %v1730
      %1779 = vmatprep.subr.mxu0 0.0
      %1780 = vmatpush1.msra.mxu0 %v1732
      %1781 = vmatprep.subr.mxu0 0.0
      %1782 = vmatpush1.msra.mxu0 0.0
      %1783 = vmatprep.subr.mxu0 0.0
      %1784 = vmatpush1.msra.mxu0 0.0
      %1785 = vmatprep.subr.mxu0 0.0
      %1786 = vmatpush1.msra.mxu0 0.0
      %1787 = vmatprep.subr.mxu0 0.0
      %1788 = vmatpush1.msra.mxu0 0.0
      %1789 = vmatprep.subr.mxu0 0.0
      %1790 = vmatpush1.msra.mxu0 0.0
      %1791 = vmatprep.subr.mxu0 0.0
      %1792 = vmatpush1.msra.mxu0 0.0
      %1793 = vmatprep.subr.mxu0 0.0
      %1794 = vmatpush1.msra.mxu0 0.0
      %1795 = vmatprep.subr.mxu0 0.0
      %1796 = vmatpush1.msra.mxu0 0.0
      %1797 = vmatprep.subr.mxu0 0.0
      %1798 = vmatpush1.msra.mxu0 0.0
      %1799 = vmatprep.subr.mxu0 0.0
      %1800 = vmatpush1.msra.mxu0 0.0
      %1801 = vmatprep.subr.mxu0 0.0
      %1802 = vmatpush1.msra.mxu0 0.0
      %1803 = vmatprep.subr.mxu0 0.0
      %1804 = vmatpush1.msra.mxu0 0.0
      %1805 = vmatprep.subr.mxu0 0.0
      %1806 = vmatpush1.msra.mxu0 0.0
      %1807 = vmatprep.subr.mxu0 0.0
      %1808 = vmatpush1.msra.mxu0 0.0
      %1809 = vmatprep.subr.mxu0 0.0
      %1810 = vmatpush1.msra.mxu0 0.0
      %1811 = vmatprep.subr.mxu0 0.0
      %1812 = vmatpush1.msra.mxu0 0.0
      %1813 = vmatprep.mubr.f32.mxu0 0.0
      %1814 = vmatmul.mubr.f32.gmra.mrb[0].mxu0 %v1685
      %v1815 = vpop.f32.mrb[0].mxu0
      %v1816 = vadd.f32 0.0, %v1815
      %v1817 = vpop.f32.mrb[0].mxu0
      %1818 = vmatprep.mubr.f32.mxu0 0.0
      %1819 = vmatmul.mubr.f32.gmra.mrb[0].mxu0 %v1686
      %v1820 = vpop.f32.mrb[0].mxu0
      %v1821 = vadd.f32 0.0, %v1820
      %v1822 = vpop.f32.mrb[0].mxu0
      %1823 = vmatprep.mubr.f32.mxu0 0.0
      %1824 = vmatmul.mubr.f32.gmra.mrb[0].mxu0 %v1687
      %v1825 = vpop.f32.mrb[0].mxu0
      %v1826 = vadd.f32 0.0, %v1825
      %v1827 = vpop.f32.mrb[0].mxu0
      %1828 = vmatprep.mubr.f32.mxu0 0.0
      %1829 = vmatmul.mubr.f32.gmra.mrb[0].mxu0 %v1688
      %v1830 = vpop.f32.mrb[0].mxu0
      %v1831 = vadd.f32 0.0, %v1830
      %v1832 = vpop.f32.mrb[0].mxu0
      %1833 = vmatprep.mubr.f32.mxu0 0.0
      %1834 = vmatmul.mubr.f32.gmra.mrb[0].mxu0 %v1689
      %v1835 = vpop.f32.mrb[0].mxu0
      %v1836 = vadd.f32 0.0, %v1835
      %v1837 = vpop.f32.mrb[0].mxu0
      %1838 = vmatprep.mubr.f32.mxu0 0.0
      %1839 = vmatmul.mubr.f32.gmra.mrb[0].mxu0 %v1690
      %v1840 = vpop.f32.mrb[0].mxu0
      %v1841 = vadd.f32 0.0, %v1840
      %v1842 = vpop.f32.mrb[0].mxu0
      %1843 = vmatprep.mubr.f32.mxu0 0.0
      %1844 = vmatmul.mubr.f32.gmra.mrb[0].mxu0 %v1691
      %v1845 = vpop.f32.mrb[0].mxu0
      %v1846 = vadd.f32 0.0, %v1845
      %v1847 = vpop.f32.mrb[0].mxu0
      %1848 = vmatprep.mubr.f32.mxu0 0.0
      %1849 = vmatmul.mubr.f32.gmra.mrb[0].mxu0 %v1692
      %v1850 = vpop.f32.mrb[0].mxu0
      %v1851 = vadd.f32 0.0, %v1850
      %v1852 = vpop.f32.mrb[0].mxu0
      %1853 = vmatprep.mubr.f32.mxu0 0.0
      %1854 = vmatmul.mubr.f32.gmra.mrb[0].mxu0 %v1693
      %v1855 = vpop.f32.mrb[0].mxu0
      %v1856 = vadd.f32 0.0, %v1855
      %v1857 = vpop.f32.mrb[0].mxu0
      %1858 = vmatprep.mubr.f32.mxu0 0.0
      %1859 = vmatmul.mubr.f32.gmra.mrb[0].mxu0 %v1694
      %v1860 = vpop.f32.mrb[0].mxu0
      %v1861 = vadd.f32 0.0, %v1860
      %v1862 = vpop.f32.mrb[0].mxu0
      %1863 = vmatprep.mubr.f32.mxu0 0.0
      %1864 = vmatmul.mubr.f32.gmra.mrb[0].mxu0 %v1695
      %v1865 = vpop.f32.mrb[0].mxu0
      %v1866 = vadd.f32 0.0, %v1865
      %v1867 = vpop.f32.mrb[0].mxu0
      %1868 = vmatprep.mubr.f32.mxu0 0.0
      %1869 = vmatmul.mubr.f32.gmra.mrb[0].mxu0 %v1696
      %v1870 = vpop.f32.mrb[0].mxu0
      %v1871 = vadd.f32 0.0, %v1870
      %v1872 = vpop.f32.mrb[0].mxu0
      %1873 = vmatprep.mubr.f32.mxu0 0.0
      %1874 = vmatmul.mubr.f32.gmra.mrb[0].mxu0 %v1697
      %v1875 = vpop.f32.mrb[0].mxu0
      %v1876 = vadd.f32 0.0, %v1875
      %v1877 = vpop.f32.mrb[0].mxu0
      %1878 = vmatprep.mubr.f32.mxu0 0.0
      %1879 = vmatmul.mubr.f32.gmra.mrb[0].mxu0 %v1698
      %v1880 = vpop.f32.mrb[0].mxu0
      %v1881 = vadd.f32 0.0, %v1880
      %v1882 = vpop.f32.mrb[0].mxu0
      %1883 = vmatprep.mubr.f32.mxu0 0.0
      %1884 = vmatmul.mubr.f32.gmra.mrb[0].mxu0 %v1699
      %v1885 = vpop.f32.mrb[0].mxu0
      %v1886 = vadd.f32 0.0, %v1885
      %v1887 = vpop.f32.mrb[0].mxu0
      %1888 = vmatprep.mubr.f32.mxu0 0.0
      %1889 = vmatmul.mubr.f32.gmra.mrb[0].mxu0 %v1700
      %v1890 = vpop.f32.mrb[0].mxu0
      %v1891 = vadd.f32 0.0, %v1890
      %v1892 = vpop.f32.mrb[0].mxu0
      %1893 = vdwg.mxu0
      %1910 = vrot.lane.b32.xlu0 %v1816, 16
      %v1911 = vpop.permute.xlu0 %1910
      %1912 = vrot.lane.b32.xlu0 %v1821, 16
      %v1913 = vpop.permute.xlu0 %1912
      %1914 = vrot.lane.b32.xlu0 %v1826, 16
      %v1915 = vpop.permute.xlu0 %1914
      %1916 = vrot.lane.b32.xlu0 %v1831, 16
      %v1917 = vpop.permute.xlu0 %1916
      %1918 = vrot.lane.b32.xlu0 %v1836, 16
      %v1919 = vpop.permute.xlu0 %1918
      %1920 = vrot.lane.b32.xlu0 %v1841, 16
      %v1921 = vpop.permute.xlu0 %1920
      %1922 = vrot.lane.b32.xlu0 %v1846, 16
      %v1923 = vpop.permute.xlu0 %1922
      %1924 = vrot.lane.b32.xlu0 %v1851, 16
      %v1925 = vpop.permute.xlu0 %1924
      %1926 = vrot.lane.b32.xlu0 %v1856, 16
      %v1927 = vpop.permute.xlu0 %1926
      %1928 = vrot.lane.b32.xlu0 %v1861, 16
      %v1929 = vpop.permute.xlu0 %1928
      %1930 = vrot.lane.b32.xlu0 %v1866, 16
      %v1931 = vpop.permute.xlu0 %1930
      %1932 = vrot.lane.b32.xlu0 %v1871, 16
      %v1933 = vpop.permute.xlu0 %1932
      %1934 = vrot.lane.b32.xlu0 %v1876, 16
      %v1935 = vpop.permute.xlu0 %1934
      %1936 = vrot.lane.b32.xlu0 %v1881, 16
      %v1937 = vpop.permute.xlu0 %1936
      %1938 = vrot.lane.b32.xlu0 %v1886, 16
      %v1939 = vpop.permute.xlu0 %1938
      %1940 = vrot.lane.b32.xlu0 %v1891, 16
      %v1941 = vpop.permute.xlu0 %1940
      %vm1958 = vcmask 261248
      %1959 = vst.msk [vmem:[#allocation3] sm:$0xff] %vm1958, %v1911
      %1960 = vst.msk [vmem:[#allocation3 + $0x8] sm:$0xff] %vm1958, %v1913
      %1961 = vst.msk [vmem:[#allocation3 + $0x10] sm:$0xff] %vm1958, %v1915
      %1962 = vst.msk [vmem:[#allocation3 + $0x18] sm:$0xff] %vm1958, %v1917
      %1963 = vst.msk [vmem:[#allocation3 + $0x20] sm:$0xff] %vm1958, %v1919
      %1964 = vst.msk [vmem:[#allocation3 + $0x28] sm:$0xff] %vm1958, %v1921
      %1965 = vst.msk [vmem:[#allocation3 + $0x30] sm:$0xff] %vm1958, %v1923
      %1966 = vst.msk [vmem:[#allocation3 + $0x38] sm:$0xff] %vm1958, %v1925
      %1967 = vst.msk [vmem:[#allocation3 + $0x40] sm:$0xff] %vm1958, %v1927
      %1968 = vst.msk [vmem:[#allocation3 + $0x48] sm:$0xff] %vm1958, %v1929
      %1969 = vst.msk [vmem:[#allocation3 + $0x50] sm:$0xff] %vm1958, %v1931
      %1970 = vst.msk [vmem:[#allocation3 + $0x58] sm:$0xff] %vm1958, %v1933
      %1971 = vst.msk [vmem:[#allocation3 + $0x60] sm:$0xff] %vm1958, %v1935
      %1972 = vst.msk [vmem:[#allocation3 + $0x68] sm:$0xff] %vm1958, %v1937
      %1973 = vst.msk [vmem:[#allocation3 + $0x70] sm:$0xff] %vm1958, %v1939
      %1974 = vst.msk [vmem:[#allocation3 + $0x78] sm:$0xff] %vm1958, %v1941
      %s1975 = scalar_lea.vmem [#allocation2], 128
      %v1976 = vld [vmem:[%s1975] sm:$0xff]
      %v1977 = vld [vmem:[%s1975 + $0x8] sm:$0xff]
      %v1978 = vld [vmem:[%s1975 + $0x10] sm:$0xff]
      %v1979 = vld [vmem:[%s1975 + $0x18] sm:$0xff]
      %v1980 = vld [vmem:[%s1975 + $0x20] sm:$0xff]
      %v1981 = vld [vmem:[%s1975 + $0x28] sm:$0xff]
      %v1982 = vld [vmem:[%s1975 + $0x30] sm:$0xff]
      %v1983 = vld [vmem:[%s1975 + $0x38] sm:$0xff]
      %v1984 = vld [vmem:[%s1975 + $0x40] sm:$0xff]
      %v1985 = vld [vmem:[%s1975 + $0x48] sm:$0xff]
      %v1986 = vld [vmem:[%s1975 + $0x50] sm:$0xff]
      %v1987 = vld [vmem:[%s1975 + $0x58] sm:$0xff]
      %v1988 = vld [vmem:[%s1975 + $0x60] sm:$0xff]
      %v1989 = vld [vmem:[%s1975 + $0x68] sm:$0xff]
      %v1990 = vld [vmem:[%s1975 + $0x70] sm:$0xff]
      %v1991 = vld [vmem:[%s1975 + $0x78] sm:$0xff]
      %v1992 = vld [vmem:[%s2] sm:$0xff]
      %v1993 = vld [vmem:[%s2 + $0x8] sm:$0xff]
      %v1994 = vld [vmem:[%s2 + $0x10] sm:$0xff]
      %v1995 = vld [vmem:[%s2 + $0x18] sm:$0xff]
      %v1996 = vld [vmem:[%s2 + $0x20] sm:$0xff]
      %v1997 = vld [vmem:[%s2 + $0x28] sm:$0xff]
      %v1998 = vld [vmem:[%s2 + $0x30] sm:$0xff]
      %v1999 = vld [vmem:[%s2 + $0x38] sm:$0xff]
      %v2000 = vld [vmem:[%s2 + $0x40] sm:$0xff]
      %v2001 = vld [vmem:[%s2 + $0x48] sm:$0xff]
      %v2002 = vld [vmem:[%s2 + $0x50] sm:$0xff]
      %v2003 = vld [vmem:[%s2 + $0x58] sm:$0xff]
      %v2004 = vld [vmem:[%s2 + $0x60] sm:$0xff]
      %v2005 = vld [vmem:[%s2 + $0x68] sm:$0xff]
      %v2006 = vld [vmem:[%s2 + $0x70] sm:$0xff]
      %v2007 = vld [vmem:[%s2 + $0x78] sm:$0xff]
      %2024 = vrot.lane.b32.xlu0 %v1976, 96
      %v2025 = vpop.permute.xlu0 %2024
      %2026 = vrot.lane.b32.xlu0 %v1977, 96
      %v2027 = vpop.permute.xlu0 %2026
      %2028 = vrot.lane.b32.xlu0 %v1978, 96
      %v2029 = vpop.permute.xlu0 %2028
      %2030 = vrot.lane.b32.xlu0 %v1979, 96
      %v2031 = vpop.permute.xlu0 %2030
      %2032 = vrot.lane.b32.xlu0 %v1980, 96
      %v2033 = vpop.permute.xlu0 %2032
      %2034 = vrot.lane.b32.xlu0 %v1981, 96
      %v2035 = vpop.permute.xlu0 %2034
      %2036 = vrot.lane.b32.xlu0 %v1982, 96
      %v2037 = vpop.permute.xlu0 %2036
      %2038 = vrot.lane.b32.xlu0 %v1983, 96
      %v2039 = vpop.permute.xlu0 %2038
      %2040 = vrot.lane.b32.xlu0 %v1984, 96
      %v2041 = vpop.permute.xlu0 %2040
      %2042 = vrot.lane.b32.xlu0 %v1985, 96
      %v2043 = vpop.permute.xlu0 %2042
      %2044 = vrot.lane.b32.xlu0 %v1986, 96
      %v2045 = vpop.permute.xlu0 %2044
      %2046 = vrot.lane.b32.xlu0 %v1987, 96
      %v2047 = vpop.permute.xlu0 %2046
      %2048 = vrot.lane.b32.xlu0 %v1988, 96
      %v2049 = vpop.permute.xlu0 %2048
      %2050 = vrot.lane.b32.xlu0 %v1989, 96
      %v2051 = vpop.permute.xlu0 %2050
      %2052 = vrot.lane.b32.xlu0 %v1990, 96
      %v2053 = vpop.permute.xlu0 %2052
      %2054 = vrot.lane.b32.xlu0 %v1991, 96
      %v2055 = vpop.permute.xlu0 %2054
      %v2056 = vsel %vm672, %v1976, 0
      %v2058 = vsel %vm672, %v1977, 0
      %v2060 = vsel %vm672, %v1978, 0
      %v2062 = vsel %vm672, %v1979, 0
      %v2064 = vsel %vm672, %v1980, 0
      %v2066 = vsel %vm672, %v1981, 0
      %v2068 = vsel %vm672, %v1982, 0
      %v2070 = vsel %vm672, %v1983, 0
      %v2072 = vsel %vm672, %v1984, 0
      %v2074 = vsel %vm672, %v1985, 0
      %v2076 = vsel %vm672, %v1986, 0
      %v2078 = vsel %vm672, %v1987, 0
      %v2080 = vsel %vm672, %v1988, 0
      %v2082 = vsel %vm672, %v1989, 0
      %v2084 = vsel %vm672, %v1990, 0
      %v2086 = vsel %vm672, %v1991, 0
      %v2088 = vsel %vm672, %v2025, 0
      %v2090 = vsel %vm672, %v2027, 0
      %v2092 = vsel %vm672, %v2029, 0
      %v2094 = vsel %vm672, %v2031, 0
      %v2096 = vsel %vm672, %v2033, 0
      %v2098 = vsel %vm672, %v2035, 0
      %v2100 = vsel %vm672, %v2037, 0
      %v2102 = vsel %vm672, %v2039, 0
      %v2104 = vsel %vm672, %v2041, 0
      %v2106 = vsel %vm672, %v2043, 0
      %v2108 = vsel %vm672, %v2045, 0
      %v2110 = vsel %vm672, %v2047, 0
      %v2112 = vsel %vm672, %v2049, 0
      %v2114 = vsel %vm672, %v2051, 0
      %v2116 = vsel %vm672, %v2053, 0
      %v2118 = vsel %vm672, %v2055, 0
      %2120 = vmatprep.subr.mxu0 0.0
      %2121 = vmatpush1.xpose.msra.mxu0 %v2088
      %2122 = vmatprep.subr.mxu0 0.0
      %2123 = vmatpush1.xpose.msra.mxu0 %v2090
      %2124 = vmatprep.subr.mxu0 0.0
      %2125 = vmatpush1.xpose.msra.mxu0 %v2092
      %2126 = vmatprep.subr.mxu0 0.0
      %2127 = vmatpush1.xpose.msra.mxu0 %v2094
      %2128 = vmatprep.subr.mxu0 0.0
      %2129 = vmatpush1.xpose.msra.mxu0 %v2096
      %2130 = vmatprep.subr.mxu0 0.0
      %2131 = vmatpush1.xpose.msra.mxu0 %v2098
      %2132 = vmatprep.subr.mxu0 0.0
      %2133 = vmatpush1.xpose.msra.mxu0 %v2100
      %2134 = vmatprep.subr.mxu0 0.0
      %2135 = vmatpush1.xpose.msra.mxu0 %v2102
      %2136 = vmatprep.subr.mxu0 0.0
      %2137 = vmatpush1.xpose.msra.mxu0 %v2104
      %2138 = vmatprep.subr.mxu0 0.0
      %2139 = vmatpush1.xpose.msra.mxu0 %v2106
      %2140 = vmatprep.subr.mxu0 0.0
      %2141 = vmatpush1.xpose.msra.mxu0 %v2108
      %2142 = vmatprep.subr.mxu0 0.0
      %2143 = vmatpush1.xpose.msra.mxu0 %v2110
      %2144 = vmatprep.subr.mxu0 0.0
      %2145 = vmatpush1.xpose.msra.mxu0 %v2112
      %2146 = vmatprep.subr.mxu0 0.0
      %2147 = vmatpush1.xpose.msra.mxu0 %v2114
      %2148 = vmatprep.subr.mxu0 0.0
      %2149 = vmatpush1.xpose.msra.mxu0 %v2116
      %2150 = vmatprep.subr.mxu0 0.0
      %2151 = vmatpush1.xpose.msra.mxu0 %v2118
      %2152 = vmatprep.subr.mxu0 0.0
      %2153 = vmatpush1.xpose.msra.mxu0 0.0
      %2154 = vmatprep.subr.mxu0 0.0
      %2155 = vmatpush1.xpose.msra.mxu0 0.0
      %2156 = vmatprep.subr.mxu0 0.0
      %2157 = vmatpush1.xpose.msra.mxu0 0.0
      %2158 = vmatprep.subr.mxu0 0.0
      %2159 = vmatpush1.xpose.msra.mxu0 0.0
      %2160 = vmatprep.subr.mxu0 0.0
      %2161 = vmatpush1.xpose.msra.mxu0 0.0
      %2162 = vmatprep.subr.mxu0 0.0
      %2163 = vmatpush1.xpose.msra.mxu0 0.0
      %2164 = vmatprep.subr.mxu0 0.0
      %2165 = vmatpush1.xpose.msra.mxu0 0.0
      %2166 = vmatprep.subr.mxu0 0.0
      %2167 = vmatpush1.xpose.msra.mxu0 0.0
      %2168 = vmatprep.subr.mxu0 0.0
      %2169 = vmatpush1.xpose.msra.mxu0 0.0
      %2170 = vmatprep.subr.mxu0 0.0
      %2171 = vmatpush1.xpose.msra.mxu0 0.0
      %2172 = vmatprep.subr.mxu0 0.0
      %2173 = vmatpush1.xpose.msra.mxu0 0.0
      %2174 = vmatprep.subr.mxu0 0.0
      %2175 = vmatpush1.xpose.msra.mxu0 0.0
      %2176 = vmatprep.subr.mxu0 0.0
      %2177 = vmatpush1.xpose.msra.mxu0 0.0
      %2178 = vmatprep.subr.mxu0 0.0
      %2179 = vmatpush1.xpose.msra.mxu0 0.0
      %2180 = vmatprep.subr.mxu0 0.0
      %2181 = vmatpush1.xpose.msra.mxu0 0.0
      %2182 = vmatprep.subr.mxu0 0.0
      %2183 = vmatpush1.xpose.msra.mxu0 0.0
      %2184 = vmatprep.mubr.f32.mxu0 0.0
      %2185 = vmatmul.mubr.f32.gmra.mrb[0].mxu0 %v2056
      %v2186 = vpop.f32.mrb[0].mxu0
      %v2187 = vadd.f32 %v1992, %v2186
      %v2188 = vpop.f32.mrb[0].mxu0
      %2189 = vmatprep.mubr.f32.mxu0 0.0
      %2190 = vmatmul.mubr.f32.gmra.mrb[0].mxu0 %v2058
      %v2191 = vpop.f32.mrb[0].mxu0
      %v2192 = vadd.f32 %v1993, %v2191
      %v2193 = vpop.f32.mrb[0].mxu0
      %2194 = vmatprep.mubr.f32.mxu0 0.0
      %2195 = vmatmul.mubr.f32.gmra.mrb[0].mxu0 %v2060
      %v2196 = vpop.f32.mrb[0].mxu0
      %v2197 = vadd.f32 %v1994, %v2196
      %v2198 = vpop.f32.mrb[0].mxu0
      %2199 = vmatprep.mubr.f32.mxu0 0.0
      %2200 = vmatmul.mubr.f32.gmra.mrb[0].mxu0 %v2062
      %v2201 = vpop.f32.mrb[0].mxu0
      %v2202 = vadd.f32 %v1995, %v2201
      %v2203 = vpop.f32.mrb[0].mxu0
      %2204 = vmatprep.mubr.f32.mxu0 0.0
      %2205 = vmatmul.mubr.f32.gmra.mrb[0].mxu0 %v2064
      %v2206 = vpop.f32.mrb[0].mxu0
      %v2207 = vadd.f32 %v1996, %v2206
      %v2208 = vpop.f32.mrb[0].mxu0
      %2209 = vmatprep.mubr.f32.mxu0 0.0
      %2210 = vmatmul.mubr.f32.gmra.mrb[0].mxu0 %v2066
      %v2211 = vpop.f32.mrb[0].mxu0
      %v2212 = vadd.f32 %v1997, %v2211
      %v2213 = vpop.f32.mrb[0].mxu0
      %2214 = vmatprep.mubr.f32.mxu0 0.0
      %2215 = vmatmul.mubr.f32.gmra.mrb[0].mxu0 %v2068
      %v2216 = vpop.f32.mrb[0].mxu0
      %v2217 = vadd.f32 %v1998, %v2216
      %v2218 = vpop.f32.mrb[0].mxu0
      %2219 = vmatprep.mubr.f32.mxu0 0.0
      %2220 = vmatmul.mubr.f32.gmra.mrb[0].mxu0 %v2070
      %v2221 = vpop.f32.mrb[0].mxu0
      %v2222 = vadd.f32 %v1999, %v2221
      %v2223 = vpop.f32.mrb[0].mxu0
      %2224 = vmatprep.mubr.f32.mxu0 0.0
      %2225 = vmatmul.mubr.f32.gmra.mrb[0].mxu0 %v2072
      %v2226 = vpop.f32.mrb[0].mxu0
      %v2227 = vadd.f32 %v2000, %v2226
      %v2228 = vpop.f32.mrb[0].mxu0
      %2229 = vmatprep.mubr.f32.mxu0 0.0
      %2230 = vmatmul.mubr.f32.gmra.mrb[0].mxu0 %v2074
      %v2231 = vpop.f32.mrb[0].mxu0
      %v2232 = vadd.f32 %v2001, %v2231
      %v2233 = vpop.f32.mrb[0].mxu0
      %2234 = vmatprep.mubr.f32.mxu0 0.0
      %2235 = vmatmul.mubr.f32.gmra.mrb[0].mxu0 %v2076
      %v2236 = vpop.f32.mrb[0].mxu0
      %v2237 = vadd.f32 %v2002, %v2236
      %v2238 = vpop.f32.mrb[0].mxu0
      %2239 = vmatprep.mubr.f32.mxu0 0.0
      %2240 = vmatmul.mubr.f32.gmra.mrb[0].mxu0 %v2078
      %v2241 = vpop.f32.mrb[0].mxu0
      %v2242 = vadd.f32 %v2003, %v2241
      %v2243 = vpop.f32.mrb[0].mxu0
      %2244 = vmatprep.mubr.f32.mxu0 0.0
      %2245 = vmatmul.mubr.f32.gmra.mrb[0].mxu0 %v2080
      %v2246 = vpop.f32.mrb[0].mxu0
      %v2247 = vadd.f32 %v2004, %v2246
      %v2248 = vpop.f32.mrb[0].mxu0
      %2249 = vmatprep.mubr.f32.mxu0 0.0
      %2250 = vmatmul.mubr.f32.gmra.mrb[0].mxu0 %v2082
      %v2251 = vpop.f32.mrb[0].mxu0
      %v2252 = vadd.f32 %v2005, %v2251
      %v2253 = vpop.f32.mrb[0].mxu0
      %2254 = vmatprep.mubr.f32.mxu0 0.0
      %2255 = vmatmul.mubr.f32.gmra.mrb[0].mxu0 %v2084
      %v2256 = vpop.f32.mrb[0].mxu0
      %v2257 = vadd.f32 %v2006, %v2256
      %v2258 = vpop.f32.mrb[0].mxu0
      %2259 = vmatprep.mubr.f32.mxu0 0.0
      %2260 = vmatmul.mubr.f32.gmra.mrb[0].mxu0 %v2086
      %v2261 = vpop.f32.mrb[0].mxu0
      %v2262 = vadd.f32 %v2007, %v2261
      %v2263 = vpop.f32.mrb[0].mxu0
      %2264 = vdwg.mxu0
      %2265 = vmax.xlane.f32.xlu0 %v2187
      %v2266 = vpop.xlane.xlu0 %2265
      %2267 = vmax.xlane.f32.xlu0 %v2192
      %v2268 = vpop.xlane.xlu0 %2267
      %2269 = vmax.xlane.f32.xlu0 %v2197
      %v2270 = vpop.xlane.xlu0 %2269
      %2271 = vmax.xlane.f32.xlu0 %v2202
      %v2272 = vpop.xlane.xlu0 %2271
      %2273 = vmax.xlane.f32.xlu0 %v2207
      %v2274 = vpop.xlane.xlu0 %2273
      %2275 = vmax.xlane.f32.xlu0 %v2212
      %v2276 = vpop.xlane.xlu0 %2275
      %2277 = vmax.xlane.f32.xlu0 %v2217
      %v2278 = vpop.xlane.xlu0 %2277
      %2279 = vmax.xlane.f32.xlu0 %v2222
      %v2280 = vpop.xlane.xlu0 %2279
      %2281 = vmax.xlane.f32.xlu0 %v2227
      %v2282 = vpop.xlane.xlu0 %2281
      %2283 = vmax.xlane.f32.xlu0 %v2232
      %v2284 = vpop.xlane.xlu0 %2283
      %2285 = vmax.xlane.f32.xlu0 %v2237
      %v2286 = vpop.xlane.xlu0 %2285
      %2287 = vmax.xlane.f32.xlu0 %v2242
      %v2288 = vpop.xlane.xlu0 %2287
      %2289 = vmax.xlane.f32.xlu0 %v2247
      %v2290 = vpop.xlane.xlu0 %2289
      %2291 = vmax.xlane.f32.xlu0 %v2252
      %v2292 = vpop.xlane.xlu0 %2291
      %2293 = vmax.xlane.f32.xlu0 %v2257
      %v2294 = vpop.xlane.xlu0 %2293
      %2295 = vmax.xlane.f32.xlu0 %v2262
      %v2296 = vpop.xlane.xlu0 %2295
      %v2297 = vsub.f32 %v2187, %v2266
      %v2298 = vsub.f32 %v2192, %v2268
      %v2299 = vsub.f32 %v2197, %v2270
      %v2300 = vsub.f32 %v2202, %v2272
      %v2301 = vsub.f32 %v2207, %v2274
      %v2302 = vsub.f32 %v2212, %v2276
      %v2303 = vsub.f32 %v2217, %v2278
      %v2304 = vsub.f32 %v2222, %v2280
      %v2305 = vsub.f32 %v2227, %v2282
      %v2306 = vsub.f32 %v2232, %v2284
      %v2307 = vsub.f32 %v2237, %v2286
      %v2308 = vsub.f32 %v2242, %v2288
      %v2309 = vsub.f32 %v2247, %v2290
      %v2310 = vsub.f32 %v2252, %v2292
      %v2311 = vsub.f32 %v2257, %v2294
      %v2312 = vsub.f32 %v2262, %v2296
      %v2313 = vmul.f32 %v2297, 1.442695
      %v2314 = vpow.pop %v2313
      %v2315 = vmul.f32 %v2298, 1.442695
      %v2316 = vpow.pop %v2315
      %v2317 = vmul.f32 %v2299, 1.442695
      %v2318 = vpow.pop %v2317
      %v2319 = vmul.f32 %v2300, 1.442695
      %v2320 = vpow.pop %v2319
      %v2321 = vmul.f32 %v2301, 1.442695
      %v2322 = vpow.pop %v2321
      %v2323 = vmul.f32 %v2302, 1.442695
      %v2324 = vpow.pop %v2323
      %v2325 = vmul.f32 %v2303, 1.442695
      %v2326 = vpow.pop %v2325
      %v2327 = vmul.f32 %v2304, 1.442695
      %v2328 = vpow.pop %v2327
      %v2329 = vmul.f32 %v2305, 1.442695
      %v2330 = vpow.pop %v2329
      %v2331 = vmul.f32 %v2306, 1.442695
      %v2332 = vpow.pop %v2331
      %v2333 = vmul.f32 %v2307, 1.442695
      %v2334 = vpow.pop %v2333
      %v2335 = vmul.f32 %v2308, 1.442695
      %v2336 = vpow.pop %v2335
      %v2337 = vmul.f32 %v2309, 1.442695
      %v2338 = vpow.pop %v2337
      %v2339 = vmul.f32 %v2310, 1.442695
      %v2340 = vpow.pop %v2339
      %v2341 = vmul.f32 %v2311, 1.442695
      %v2342 = vpow.pop %v2341
      %v2343 = vmul.f32 %v2312, 1.442695
      %v2344 = vpow.pop %v2343
      %2345 = vadd.xlane.f32.xlu0 %v2314
      %v2346 = vpop.xlane.xlu0 %2345
      %2347 = vadd.xlane.f32.xlu0 %v2316
      %v2348 = vpop.xlane.xlu0 %2347
      %2349 = vadd.xlane.f32.xlu0 %v2318
      %v2350 = vpop.xlane.xlu0 %2349
      %2351 = vadd.xlane.f32.xlu0 %v2320
      %v2352 = vpop.xlane.xlu0 %2351
      %2353 = vadd.xlane.f32.xlu0 %v2322
      %v2354 = vpop.xlane.xlu0 %2353
      %2355 = vadd.xlane.f32.xlu0 %v2324
      %v2356 = vpop.xlane.xlu0 %2355
      %2357 = vadd.xlane.f32.xlu0 %v2326
      %v2358 = vpop.xlane.xlu0 %2357
      %2359 = vadd.xlane.f32.xlu0 %v2328
      %v2360 = vpop.xlane.xlu0 %2359
      %2361 = vadd.xlane.f32.xlu0 %v2330
      %v2362 = vpop.xlane.xlu0 %2361
      %2363 = vadd.xlane.f32.xlu0 %v2332
      %v2364 = vpop.xlane.xlu0 %2363
      %2365 = vadd.xlane.f32.xlu0 %v2334
      %v2366 = vpop.xlane.xlu0 %2365
      %2367 = vadd.xlane.f32.xlu0 %v2336
      %v2368 = vpop.xlane.xlu0 %2367
      %2369 = vadd.xlane.f32.xlu0 %v2338
      %v2370 = vpop.xlane.xlu0 %2369
      %2371 = vadd.xlane.f32.xlu0 %v2340
      %v2372 = vpop.xlane.xlu0 %2371
      %2373 = vadd.xlane.f32.xlu0 %v2342
      %v2374 = vpop.xlane.xlu0 %2373
      %2375 = vadd.xlane.f32.xlu0 %v2344
      %v2376 = vpop.xlane.xlu0 %2375
      %v2377 = vrcp.pop %v2346
      %v2378 = vrcp.pop %v2348
      %v2379 = vrcp.pop %v2350
      %v2380 = vrcp.pop %v2352
      %v2381 = vrcp.pop %v2354
      %v2382 = vrcp.pop %v2356
      %v2383 = vrcp.pop %v2358
      %v2384 = vrcp.pop %v2360
      %v2385 = vrcp.pop %v2362
      %v2386 = vrcp.pop %v2364
      %v2387 = vrcp.pop %v2366
      %v2388 = vrcp.pop %v2368
      %v2389 = vrcp.pop %v2370
      %v2390 = vrcp.pop %v2372
      %v2391 = vrcp.pop %v2374
      %v2392 = vrcp.pop %v2376
      %v2393 = vmul.f32 %v2314, %v2377
      %v2394 = vmul.f32 %v2316, %v2378
      %v2395 = vmul.f32 %v2318, %v2379
      %v2396 = vmul.f32 %v2320, %v2380
      %v2397 = vmul.f32 %v2322, %v2381
      %v2398 = vmul.f32 %v2324, %v2382
      %v2399 = vmul.f32 %v2326, %v2383
      %v2400 = vmul.f32 %v2328, %v2384
      %v2401 = vmul.f32 %v2330, %v2385
      %v2402 = vmul.f32 %v2332, %v2386
      %v2403 = vmul.f32 %v2334, %v2387
      %v2404 = vmul.f32 %v2336, %v2388
      %v2405 = vmul.f32 %v2338, %v2389
      %v2406 = vmul.f32 %v2340, %v2390
      %v2407 = vmul.f32 %v2342, %v2391
      %v2408 = vmul.f32 %v2344, %v2392
      %2409 = vrot.lane.b32.xlu0 %v1976, 64
      %v2410 = vpop.permute.xlu0 %2409
      %2411 = vrot.lane.b32.xlu0 %v1977, 64
      %v2412 = vpop.permute.xlu0 %2411
      %2413 = vrot.lane.b32.xlu0 %v1978, 64
      %v2414 = vpop.permute.xlu0 %2413
      %2415 = vrot.lane.b32.xlu0 %v1979, 64
      %v2416 = vpop.permute.xlu0 %2415
      %2417 = vrot.lane.b32.xlu0 %v1980, 64
      %v2418 = vpop.permute.xlu0 %2417
      %2419 = vrot.lane.b32.xlu0 %v1981, 64
      %v2420 = vpop.permute.xlu0 %2419
      %2421 = vrot.lane.b32.xlu0 %v1982, 64
      %v2422 = vpop.permute.xlu0 %2421
      %2423 = vrot.lane.b32.xlu0 %v1983, 64
      %v2424 = vpop.permute.xlu0 %2423
      %2425 = vrot.lane.b32.xlu0 %v1984, 64
      %v2426 = vpop.permute.xlu0 %2425
      %2427 = vrot.lane.b32.xlu0 %v1985, 64
      %v2428 = vpop.permute.xlu0 %2427
      %2429 = vrot.lane.b32.xlu0 %v1986, 64
      %v2430 = vpop.permute.xlu0 %2429
      %2431 = vrot.lane.b32.xlu0 %v1987, 64
      %v2432 = vpop.permute.xlu0 %2431
      %2433 = vrot.lane.b32.xlu0 %v1988, 64
      %v2434 = vpop.permute.xlu0 %2433
      %2435 = vrot.lane.b32.xlu0 %v1989, 64
      %v2436 = vpop.permute.xlu0 %2435
      %2437 = vrot.lane.b32.xlu0 %v1990, 64
      %v2438 = vpop.permute.xlu0 %2437
      %2439 = vrot.lane.b32.xlu0 %v1991, 64
      %v2440 = vpop.permute.xlu0 %2439
      %2457 = vmatprep.subr.mxu0 0.0
      %2458 = vmatpush1.msra.mxu0 %v2410
      %2459 = vmatprep.subr.mxu0 0.0
      %2460 = vmatpush1.msra.mxu0 %v2412
      %2461 = vmatprep.subr.mxu0 0.0
      %2462 = vmatpush1.msra.mxu0 %v2414
      %2463 = vmatprep.subr.mxu0 0.0
      %2464 = vmatpush1.msra.mxu0 %v2416
      %2465 = vmatprep.subr.mxu0 0.0
      %2466 = vmatpush1.msra.mxu0 %v2418
      %2467 = vmatprep.subr.mxu0 0.0
      %2468 = vmatpush1.msra.mxu0 %v2420
      %2469 = vmatprep.subr.mxu0 0.0
      %2470 = vmatpush1.msra.mxu0 %v2422
      %2471 = vmatprep.subr.mxu0 0.0
      %2472 = vmatpush1.msra.mxu0 %v2424
      %2473 = vmatprep.subr.mxu0 0.0
      %2474 = vmatpush1.msra.mxu0 %v2426
      %2475 = vmatprep.subr.mxu0 0.0
      %2476 = vmatpush1.msra.mxu0 %v2428
      %2477 = vmatprep.subr.mxu0 0.0
      %2478 = vmatpush1.msra.mxu0 %v2430
      %2479 = vmatprep.subr.mxu0 0.0
      %2480 = vmatpush1.msra.mxu0 %v2432
      %2481 = vmatprep.subr.mxu0 0.0
      %2482 = vmatpush1.msra.mxu0 %v2434
      %2483 = vmatprep.subr.mxu0 0.0
      %2484 = vmatpush1.msra.mxu0 %v2436
      %2485 = vmatprep.subr.mxu0 0.0
      %2486 = vmatpush1.msra.mxu0 %v2438
      %2487 = vmatprep.subr.mxu0 0.0
      %2488 = vmatpush1.msra.mxu0 %v2440
      %2489 = vmatprep.subr.mxu0 0.0
      %2490 = vmatpush1.msra.mxu0 0.0
      %2491 = vmatprep.subr.mxu0 0.0
      %2492 = vmatpush1.msra.mxu0 0.0
      %2493 = vmatprep.subr.mxu0 0.0
      %2494 = vmatpush1.msra.mxu0 0.0
      %2495 = vmatprep.subr.mxu0 0.0
      %2496 = vmatpush1.msra.mxu0 0.0
      %2497 = vmatprep.subr.mxu0 0.0
      %2498 = vmatpush1.msra.mxu0 0.0
      %2499 = vmatprep.subr.mxu0 0.0
      %2500 = vmatpush1.msra.mxu0 0.0
      %2501 = vmatprep.subr.mxu0 0.0
      %2502 = vmatpush1.msra.mxu0 0.0
      %2503 = vmatprep.subr.mxu0 0.0
      %2504 = vmatpush1.msra.mxu0 0.0
      %2505 = vmatprep.subr.mxu0 0.0
      %2506 = vmatpush1.msra.mxu0 0.0
      %2507 = vmatprep.subr.mxu0 0.0
      %2508 = vmatpush1.msra.mxu0 0.0
      %2509 = vmatprep.subr.mxu0 0.0
      %2510 = vmatpush1.msra.mxu0 0.0
      %2511 = vmatprep.subr.mxu0 0.0
      %2512 = vmatpush1.msra.mxu0 0.0
      %2513 = vmatprep.subr.mxu0 0.0
      %2514 = vmatpush1.msra.mxu0 0.0
      %2515 = vmatprep.subr.mxu0 0.0
      %2516 = vmatpush1.msra.mxu0 0.0
      %2517 = vmatprep.subr.mxu0 0.0
      %2518 = vmatpush1.msra.mxu0 0.0
      %2519 = vmatprep.subr.mxu0 0.0
      %2520 = vmatpush1.msra.mxu0 0.0
      %2521 = vmatprep.mubr.f32.mxu0 0.0
      %2522 = vmatmul.mubr.f32.gmra.mrb[0].mxu0 %v2393
      %v2523 = vpop.f32.mrb[0].mxu0
      %v2524 = vadd.f32 0.0, %v2523
      %v2525 = vpop.f32.mrb[0].mxu0
      %2526 = vmatprep.mubr.f32.mxu0 0.0
      %2527 = vmatmul.mubr.f32.gmra.mrb[0].mxu0 %v2394
      %v2528 = vpop.f32.mrb[0].mxu0
      %v2529 = vadd.f32 0.0, %v2528
      %v2530 = vpop.f32.mrb[0].mxu0
      %2531 = vmatprep.mubr.f32.mxu0 0.0
      %2532 = vmatmul.mubr.f32.gmra.mrb[0].mxu0 %v2395
      %v2533 = vpop.f32.mrb[0].mxu0
      %v2534 = vadd.f32 0.0, %v2533
      %v2535 = vpop.f32.mrb[0].mxu0
      %2536 = vmatprep.mubr.f32.mxu0 0.0
      %2537 = vmatmul.mubr.f32.gmra.mrb[0].mxu0 %v2396
      %v2538 = vpop.f32.mrb[0].mxu0
      %v2539 = vadd.f32 0.0, %v2538
      %v2540 = vpop.f32.mrb[0].mxu0
      %2541 = vmatprep.mubr.f32.mxu0 0.0
      %2542 = vmatmul.mubr.f32.gmra.mrb[0].mxu0 %v2397
      %v2543 = vpop.f32.mrb[0].mxu0
      %v2544 = vadd.f32 0.0, %v2543
      %v2545 = vpop.f32.mrb[0].mxu0
      %2546 = vmatprep.mubr.f32.mxu0 0.0
      %2547 = vmatmul.mubr.f32.gmra.mrb[0].mxu0 %v2398
      %v2548 = vpop.f32.mrb[0].mxu0
      %v2549 = vadd.f32 0.0, %v2548
      %v2550 = vpop.f32.mrb[0].mxu0
      %2551 = vmatprep.mubr.f32.mxu0 0.0
      %2552 = vmatmul.mubr.f32.gmra.mrb[0].mxu0 %v2399
      %v2553 = vpop.f32.mrb[0].mxu0
      %v2554 = vadd.f32 0.0, %v2553
      %v2555 = vpop.f32.mrb[0].mxu0
      %2556 = vmatprep.mubr.f32.mxu0 0.0
      %2557 = vmatmul.mubr.f32.gmra.mrb[0].mxu0 %v2400
      %v2558 = vpop.f32.mrb[0].mxu0
      %v2559 = vadd.f32 0.0, %v2558
      %v2560 = vpop.f32.mrb[0].mxu0
      %2561 = vmatprep.mubr.f32.mxu0 0.0
      %2562 = vmatmul.mubr.f32.gmra.mrb[0].mxu0 %v2401
      %v2563 = vpop.f32.mrb[0].mxu0
      %v2564 = vadd.f32 0.0, %v2563
      %v2565 = vpop.f32.mrb[0].mxu0
      %2566 = vmatprep.mubr.f32.mxu0 0.0
      %2567 = vmatmul.mubr.f32.gmra.mrb[0].mxu0 %v2402
      %v2568 = vpop.f32.mrb[0].mxu0
      %v2569 = vadd.f32 0.0, %v2568
      %v2570 = vpop.f32.mrb[0].mxu0
      %2571 = vmatprep.mubr.f32.mxu0 0.0
      %2572 = vmatmul.mubr.f32.gmra.mrb[0].mxu0 %v2403
      %v2573 = vpop.f32.mrb[0].mxu0
      %v2574 = vadd.f32 0.0, %v2573
      %v2575 = vpop.f32.mrb[0].mxu0
      %2576 = vmatprep.mubr.f32.mxu0 0.0
      %2577 = vmatmul.mubr.f32.gmra.mrb[0].mxu0 %v2404
      %v2578 = vpop.f32.mrb[0].mxu0
      %v2579 = vadd.f32 0.0, %v2578
      %v2580 = vpop.f32.mrb[0].mxu0
      %2581 = vmatprep.mubr.f32.mxu0 0.0
      %2582 = vmatmul.mubr.f32.gmra.mrb[0].mxu0 %v2405
      %v2583 = vpop.f32.mrb[0].mxu0
      %v2584 = vadd.f32 0.0, %v2583
      %v2585 = vpop.f32.mrb[0].mxu0
      %2586 = vmatprep.mubr.f32.mxu0 0.0
      %2587 = vmatmul.mubr.f32.gmra.mrb[0].mxu0 %v2406
      %v2588 = vpop.f32.mrb[0].mxu0
      %v2589 = vadd.f32 0.0, %v2588
      %v2590 = vpop.f32.mrb[0].mxu0
      %2591 = vmatprep.mubr.f32.mxu0 0.0
      %2592 = vmatmul.mubr.f32.gmra.mrb[0].mxu0 %v2407
      %v2593 = vpop.f32.mrb[0].mxu0
      %v2594 = vadd.f32 0.0, %v2593
      %v2595 = vpop.f32.mrb[0].mxu0
      %2596 = vmatprep.mubr.f32.mxu0 0.0
      %2597 = vmatmul.mubr.f32.gmra.mrb[0].mxu0 %v2408
      %v2598 = vpop.f32.mrb[0].mxu0
      %v2599 = vadd.f32 0.0, %v2598
      %v2600 = vpop.f32.mrb[0].mxu0
      %2601 = vdwg.mxu0
      %s2602 = scalar_lea.vmem [#allocation3], 128
      %2603 = vst.msk [vmem:[%s2602] sm:$0xff] %vm672, %v2524
      %2604 = vst.msk [vmem:[%s2602 + $0x8] sm:$0xff] %vm672, %v2529
      %2605 = vst.msk [vmem:[%s2602 + $0x10] sm:$0xff] %vm672, %v2534
      %2606 = vst.msk [vmem:[%s2602 + $0x18] sm:$0xff] %vm672, %v2539
      %2607 = vst.msk [vmem:[%s2602 + $0x20] sm:$0xff] %vm672, %v2544
      %2608 = vst.msk [vmem:[%s2602 + $0x28] sm:$0xff] %vm672, %v2549
      %2609 = vst.msk [vmem:[%s2602 + $0x30] sm:$0xff] %vm672, %v2554
      %2610 = vst.msk [vmem:[%s2602 + $0x38] sm:$0xff] %vm672, %v2559
      %2611 = vst.msk [vmem:[%s2602 + $0x40] sm:$0xff] %vm672, %v2564
      %2612 = vst.msk [vmem:[%s2602 + $0x48] sm:$0xff] %vm672, %v2569
      %2613 = vst.msk [vmem:[%s2602 + $0x50] sm:$0xff] %vm672, %v2574
      %2614 = vst.msk [vmem:[%s2602 + $0x58] sm:$0xff] %vm672, %v2579
      %2615 = vst.msk [vmem:[%s2602 + $0x60] sm:$0xff] %vm672, %v2584
      %2616 = vst.msk [vmem:[%s2602 + $0x68] sm:$0xff] %vm672, %v2589
      %2617 = vst.msk [vmem:[%s2602 + $0x70] sm:$0xff] %vm672, %v2594
      %2618 = vst.msk [vmem:[%s2602 + $0x78] sm:$0xff] %vm672, %v2599
      %v2619 = vld [vmem:[%s1975] sm:$0xff]
      %v2620 = vld [vmem:[%s1975 + $0x8] sm:$0xff]
      %v2621 = vld [vmem:[%s1975 + $0x10] sm:$0xff]
      %v2622 = vld [vmem:[%s1975 + $0x18] sm:$0xff]
      %v2623 = vld [vmem:[%s1975 + $0x20] sm:$0xff]
      %v2624 = vld [vmem:[%s1975 + $0x28] sm:$0xff]
      %v2625 = vld [vmem:[%s1975 + $0x30] sm:$0xff]
      %v2626 = vld [vmem:[%s1975 + $0x38] sm:$0xff]
      %v2627 = vld [vmem:[%s1975 + $0x40] sm:$0xff]
      %v2628 = vld [vmem:[%s1975 + $0x48] sm:$0xff]
      %v2629 = vld [vmem:[%s1975 + $0x50] sm:$0xff]
      %v2630 = vld [vmem:[%s1975 + $0x58] sm:$0xff]
      %v2631 = vld [vmem:[%s1975 + $0x60] sm:$0xff]
      %v2632 = vld [vmem:[%s1975 + $0x68] sm:$0xff]
      %v2633 = vld [vmem:[%s1975 + $0x70] sm:$0xff]
      %v2634 = vld [vmem:[%s1975 + $0x78] sm:$0xff]
      %v2635 = vld [vmem:[%s1251] sm:$0xff]
      %v2636 = vld [vmem:[%s1251 + $0x8] sm:$0xff]
      %v2637 = vld [vmem:[%s1251 + $0x10] sm:$0xff]
      %v2638 = vld [vmem:[%s1251 + $0x18] sm:$0xff]
      %v2639 = vld [vmem:[%s1251 + $0x20] sm:$0xff]
      %v2640 = vld [vmem:[%s1251 + $0x28] sm:$0xff]
      %v2641 = vld [vmem:[%s1251 + $0x30] sm:$0xff]
      %v2642 = vld [vmem:[%s1251 + $0x38] sm:$0xff]
      %v2643 = vld [vmem:[%s1251 + $0x40] sm:$0xff]
      %v2644 = vld [vmem:[%s1251 + $0x48] sm:$0xff]
      %v2645 = vld [vmem:[%s1251 + $0x50] sm:$0xff]
      %v2646 = vld [vmem:[%s1251 + $0x58] sm:$0xff]
      %v2647 = vld [vmem:[%s1251 + $0x60] sm:$0xff]
      %v2648 = vld [vmem:[%s1251 + $0x68] sm:$0xff]
      %v2649 = vld [vmem:[%s1251 + $0x70] sm:$0xff]
      %v2650 = vld [vmem:[%s1251 + $0x78] sm:$0xff]
      %2667 = vrot.lane.b32.xlu0 %v2619, 112
      %v2668 = vpop.permute.xlu0 %2667
      %2669 = vrot.lane.b32.xlu0 %v2620, 112
      %v2670 = vpop.permute.xlu0 %2669
      %2671 = vrot.lane.b32.xlu0 %v2621, 112
      %v2672 = vpop.permute.xlu0 %2671
      %2673 = vrot.lane.b32.xlu0 %v2622, 112
      %v2674 = vpop.permute.xlu0 %2673
      %2675 = vrot.lane.b32.xlu0 %v2623, 112
      %v2676 = vpop.permute.xlu0 %2675
      %2677 = vrot.lane.b32.xlu0 %v2624, 112
      %v2678 = vpop.permute.xlu0 %2677
      %2679 = vrot.lane.b32.xlu0 %v2625, 112
      %v2680 = vpop.permute.xlu0 %2679
      %2681 = vrot.lane.b32.xlu0 %v2626, 112
      %v2682 = vpop.permute.xlu0 %2681
      %2683 = vrot.lane.b32.xlu0 %v2627, 112
      %v2684 = vpop.permute.xlu0 %2683
      %2685 = vrot.lane.b32.xlu0 %v2628, 112
      %v2686 = vpop.permute.xlu0 %2685
      %2687 = vrot.lane.b32.xlu0 %v2629, 112
      %v2688 = vpop.permute.xlu0 %2687
      %2689 = vrot.lane.b32.xlu0 %v2630, 112
      %v2690 = vpop.permute.xlu0 %2689
      %2691 = vrot.lane.b32.xlu0 %v2631, 112
      %v2692 = vpop.permute.xlu0 %2691
      %2693 = vrot.lane.b32.xlu0 %v2632, 112
      %v2694 = vpop.permute.xlu0 %2693
      %2695 = vrot.lane.b32.xlu0 %v2633, 112
      %v2696 = vpop.permute.xlu0 %2695
      %2697 = vrot.lane.b32.xlu0 %v2634, 112
      %v2698 = vpop.permute.xlu0 %2697
      %2699 = vrot.lane.b32.xlu0 %v2619, 80
      %v2700 = vpop.permute.xlu0 %2699
      %2701 = vrot.lane.b32.xlu0 %v2620, 80
      %v2702 = vpop.permute.xlu0 %2701
      %2703 = vrot.lane.b32.xlu0 %v2621, 80
      %v2704 = vpop.permute.xlu0 %2703
      %2705 = vrot.lane.b32.xlu0 %v2622, 80
      %v2706 = vpop.permute.xlu0 %2705
      %2707 = vrot.lane.b32.xlu0 %v2623, 80
      %v2708 = vpop.permute.xlu0 %2707
      %2709 = vrot.lane.b32.xlu0 %v2624, 80
      %v2710 = vpop.permute.xlu0 %2709
      %2711 = vrot.lane.b32.xlu0 %v2625, 80
      %v2712 = vpop.permute.xlu0 %2711
      %2713 = vrot.lane.b32.xlu0 %v2626, 80
      %v2714 = vpop.permute.xlu0 %2713
      %2715 = vrot.lane.b32.xlu0 %v2627, 80
      %v2716 = vpop.permute.xlu0 %2715
      %2717 = vrot.lane.b32.xlu0 %v2628, 80
      %v2718 = vpop.permute.xlu0 %2717
      %2719 = vrot.lane.b32.xlu0 %v2629, 80
      %v2720 = vpop.permute.xlu0 %2719
      %2721 = vrot.lane.b32.xlu0 %v2630, 80
      %v2722 = vpop.permute.xlu0 %2721
      %2723 = vrot.lane.b32.xlu0 %v2631, 80
      %v2724 = vpop.permute.xlu0 %2723
      %2725 = vrot.lane.b32.xlu0 %v2632, 80
      %v2726 = vpop.permute.xlu0 %2725
      %2727 = vrot.lane.b32.xlu0 %v2633, 80
      %v2728 = vpop.permute.xlu0 %2727
      %2729 = vrot.lane.b32.xlu0 %v2634, 80
      %v2730 = vpop.permute.xlu0 %2729
      %v2731 = vsel %vm672, %v2668, 0
      %v2733 = vsel %vm672, %v2670, 0
      %v2735 = vsel %vm672, %v2672, 0
      %v2737 = vsel %vm672, %v2674, 0
      %v2739 = vsel %vm672, %v2676, 0
      %v2741 = vsel %vm672, %v2678, 0
      %v2743 = vsel %vm672, %v2680, 0
      %v2745 = vsel %vm672, %v2682, 0
      %v2747 = vsel %vm672, %v2684, 0
      %v2749 = vsel %vm672, %v2686, 0
      %v2751 = vsel %vm672, %v2688, 0
      %v2753 = vsel %vm672, %v2690, 0
      %v2755 = vsel %vm672, %v2692, 0
      %v2757 = vsel %vm672, %v2694, 0
      %v2759 = vsel %vm672, %v2696, 0
      %v2761 = vsel %vm672, %v2698, 0
      %v2763 = vsel %vm672, %v2700, 0
      %v2765 = vsel %vm672, %v2702, 0
      %v2767 = vsel %vm672, %v2704, 0
      %v2769 = vsel %vm672, %v2706, 0
      %v2771 = vsel %vm672, %v2708, 0
      %v2773 = vsel %vm672, %v2710, 0
      %v2775 = vsel %vm672, %v2712, 0
      %v2777 = vsel %vm672, %v2714, 0
      %v2779 = vsel %vm672, %v2716, 0
      %v2781 = vsel %vm672, %v2718, 0
      %v2783 = vsel %vm672, %v2720, 0
      %v2785 = vsel %vm672, %v2722, 0
      %v2787 = vsel %vm672, %v2724, 0
      %v2789 = vsel %vm672, %v2726, 0
      %v2791 = vsel %vm672, %v2728, 0
      %v2793 = vsel %vm672, %v2730, 0
      %2795 = vmatprep.subr.mxu0 0.0
      %2796 = vmatpush1.xpose.msra.mxu0 %v2763
      %2797 = vmatprep.subr.mxu0 0.0
      %2798 = vmatpush1.xpose.msra.mxu0 %v2765
      %2799 = vmatprep.subr.mxu0 0.0
      %2800 = vmatpush1.xpose.msra.mxu0 %v2767
      %2801 = vmatprep.subr.mxu0 0.0
      %2802 = vmatpush1.xpose.msra.mxu0 %v2769
      %2803 = vmatprep.subr.mxu0 0.0
      %2804 = vmatpush1.xpose.msra.mxu0 %v2771
      %2805 = vmatprep.subr.mxu0 0.0
      %2806 = vmatpush1.xpose.msra.mxu0 %v2773
      %2807 = vmatprep.subr.mxu0 0.0
      %2808 = vmatpush1.xpose.msra.mxu0 %v2775
      %2809 = vmatprep.subr.mxu0 0.0
      %2810 = vmatpush1.xpose.msra.mxu0 %v2777
      %2811 = vmatprep.subr.mxu0 0.0
      %2812 = vmatpush1.xpose.msra.mxu0 %v2779
      %2813 = vmatprep.subr.mxu0 0.0
      %2814 = vmatpush1.xpose.msra.mxu0 %v2781
      %2815 = vmatprep.subr.mxu0 0.0
      %2816 = vmatpush1.xpose.msra.mxu0 %v2783
      %2817 = vmatprep.subr.mxu0 0.0
      %2818 = vmatpush1.xpose.msra.mxu0 %v2785
      %2819 = vmatprep.subr.mxu0 0.0
      %2820 = vmatpush1.xpose.msra.mxu0 %v2787
      %2821 = vmatprep.subr.mxu0 0.0
      %2822 = vmatpush1.xpose.msra.mxu0 %v2789
      %2823 = vmatprep.subr.mxu0 0.0
      %2824 = vmatpush1.xpose.msra.mxu0 %v2791
      %2825 = vmatprep.subr.mxu0 0.0
      %2826 = vmatpush1.xpose.msra.mxu0 %v2793
      %2827 = vmatprep.subr.mxu0 0.0
      %2828 = vmatpush1.xpose.msra.mxu0 0.0
      %2829 = vmatprep.subr.mxu0 0.0
      %2830 = vmatpush1.xpose.msra.mxu0 0.0
      %2831 = vmatprep.subr.mxu0 0.0
      %2832 = vmatpush1.xpose.msra.mxu0 0.0
      %2833 = vmatprep.subr.mxu0 0.0
      %2834 = vmatpush1.xpose.msra.mxu0 0.0
      %2835 = vmatprep.subr.mxu0 0.0
      %2836 = vmatpush1.xpose.msra.mxu0 0.0
      %2837 = vmatprep.subr.mxu0 0.0
      %2838 = vmatpush1.xpose.msra.mxu0 0.0
      %2839 = vmatprep.subr.mxu0 0.0
      %2840 = vmatpush1.xpose.msra.mxu0 0.0
      %2841 = vmatprep.subr.mxu0 0.0
      %2842 = vmatpush1.xpose.msra.mxu0 0.0
      %2843 = vmatprep.subr.mxu0 0.0
      %2844 = vmatpush1.xpose.msra.mxu0 0.0
      %2845 = vmatprep.subr.mxu0 0.0
      %2846 = vmatpush1.xpose.msra.mxu0 0.0
      %2847 = vmatprep.subr.mxu0 0.0
      %2848 = vmatpush1.xpose.msra.mxu0 0.0
      %2849 = vmatprep.subr.mxu0 0.0
      %2850 = vmatpush1.xpose.msra.mxu0 0.0
      %2851 = vmatprep.subr.mxu0 0.0
      %2852 = vmatpush1.xpose.msra.mxu0 0.0
      %2853 = vmatprep.subr.mxu0 0.0
      %2854 = vmatpush1.xpose.msra.mxu0 0.0
      %2855 = vmatprep.subr.mxu0 0.0
      %2856 = vmatpush1.xpose.msra.mxu0 0.0
      %2857 = vmatprep.subr.mxu0 0.0
      %2858 = vmatpush1.xpose.msra.mxu0 0.0
      %2859 = vmatprep.mubr.f32.mxu0 0.0
      %2860 = vmatmul.mubr.f32.gmra.mrb[0].mxu0 %v2731
      %v2861 = vpop.f32.mrb[0].mxu0
      %v2862 = vadd.f32 %v2635, %v2861
      %v2863 = vpop.f32.mrb[0].mxu0
      %2864 = vmatprep.mubr.f32.mxu0 0.0
      %2865 = vmatmul.mubr.f32.gmra.mrb[0].mxu0 %v2733
      %v2866 = vpop.f32.mrb[0].mxu0
      %v2867 = vadd.f32 %v2636, %v2866
      %v2868 = vpop.f32.mrb[0].mxu0
      %2869 = vmatprep.mubr.f32.mxu0 0.0
      %2870 = vmatmul.mubr.f32.gmra.mrb[0].mxu0 %v2735
      %v2871 = vpop.f32.mrb[0].mxu0
      %v2872 = vadd.f32 %v2637, %v2871
      %v2873 = vpop.f32.mrb[0].mxu0
      %2874 = vmatprep.mubr.f32.mxu0 0.0
      %2875 = vmatmul.mubr.f32.gmra.mrb[0].mxu0 %v2737
      %v2876 = vpop.f32.mrb[0].mxu0
      %v2877 = vadd.f32 %v2638, %v2876
      %v2878 = vpop.f32.mrb[0].mxu0
      %2879 = vmatprep.mubr.f32.mxu0 0.0
      %2880 = vmatmul.mubr.f32.gmra.mrb[0].mxu0 %v2739
      %v2881 = vpop.f32.mrb[0].mxu0
      %v2882 = vadd.f32 %v2639, %v2881
      %v2883 = vpop.f32.mrb[0].mxu0
      %2884 = vmatprep.mubr.f32.mxu0 0.0
      %2885 = vmatmul.mubr.f32.gmra.mrb[0].mxu0 %v2741
      %v2886 = vpop.f32.mrb[0].mxu0
      %v2887 = vadd.f32 %v2640, %v2886
      %v2888 = vpop.f32.mrb[0].mxu0
      %2889 = vmatprep.mubr.f32.mxu0 0.0
      %2890 = vmatmul.mubr.f32.gmra.mrb[0].mxu0 %v2743
      %v2891 = vpop.f32.mrb[0].mxu0
      %v2892 = vadd.f32 %v2641, %v2891
      %v2893 = vpop.f32.mrb[0].mxu0
      %2894 = vmatprep.mubr.f32.mxu0 0.0
      %2895 = vmatmul.mubr.f32.gmra.mrb[0].mxu0 %v2745
      %v2896 = vpop.f32.mrb[0].mxu0
      %v2897 = vadd.f32 %v2642, %v2896
      %v2898 = vpop.f32.mrb[0].mxu0
      %2899 = vmatprep.mubr.f32.mxu0 0.0
      %2900 = vmatmul.mubr.f32.gmra.mrb[0].mxu0 %v2747
      %v2901 = vpop.f32.mrb[0].mxu0
      %v2902 = vadd.f32 %v2643, %v2901
      %v2903 = vpop.f32.mrb[0].mxu0
      %2904 = vmatprep.mubr.f32.mxu0 0.0
      %2905 = vmatmul.mubr.f32.gmra.mrb[0].mxu0 %v2749
      %v2906 = vpop.f32.mrb[0].mxu0
      %v2907 = vadd.f32 %v2644, %v2906
      %v2908 = vpop.f32.mrb[0].mxu0
      %2909 = vmatprep.mubr.f32.mxu0 0.0
      %2910 = vmatmul.mubr.f32.gmra.mrb[0].mxu0 %v2751
      %v2911 = vpop.f32.mrb[0].mxu0
      %v2912 = vadd.f32 %v2645, %v2911
      %v2913 = vpop.f32.mrb[0].mxu0
      %2914 = vmatprep.mubr.f32.mxu0 0.0
      %2915 = vmatmul.mubr.f32.gmra.mrb[0].mxu0 %v2753
      %v2916 = vpop.f32.mrb[0].mxu0
      %v2917 = vadd.f32 %v2646, %v2916
      %v2918 = vpop.f32.mrb[0].mxu0
      %2919 = vmatprep.mubr.f32.mxu0 0.0
      %2920 = vmatmul.mubr.f32.gmra.mrb[0].mxu0 %v2755
      %v2921 = vpop.f32.mrb[0].mxu0
      %v2922 = vadd.f32 %v2647, %v2921
      %v2923 = vpop.f32.mrb[0].mxu0
      %2924 = vmatprep.mubr.f32.mxu0 0.0
      %2925 = vmatmul.mubr.f32.gmra.mrb[0].mxu0 %v2757
      %v2926 = vpop.f32.mrb[0].mxu0
      %v2927 = vadd.f32 %v2648, %v2926
      %v2928 = vpop.f32.mrb[0].mxu0
      %2929 = vmatprep.mubr.f32.mxu0 0.0
      %2930 = vmatmul.mubr.f32.gmra.mrb[0].mxu0 %v2759
      %v2931 = vpop.f32.mrb[0].mxu0
      %v2932 = vadd.f32 %v2649, %v2931
      %v2933 = vpop.f32.mrb[0].mxu0
      %2934 = vmatprep.mubr.f32.mxu0 0.0
      %2935 = vmatmul.mubr.f32.gmra.mrb[0].mxu0 %v2761
      %v2936 = vpop.f32.mrb[0].mxu0
      %v2937 = vadd.f32 %v2650, %v2936
      %v2938 = vpop.f32.mrb[0].mxu0
      %2939 = vdwg.mxu0
      %2940 = vmax.xlane.f32.xlu0 %v2862
      %v2941 = vpop.xlane.xlu0 %2940
      %2942 = vmax.xlane.f32.xlu0 %v2867
      %v2943 = vpop.xlane.xlu0 %2942
      %2944 = vmax.xlane.f32.xlu0 %v2872
      %v2945 = vpop.xlane.xlu0 %2944
      %2946 = vmax.xlane.f32.xlu0 %v2877
      %v2947 = vpop.xlane.xlu0 %2946
      %2948 = vmax.xlane.f32.xlu0 %v2882
      %v2949 = vpop.xlane.xlu0 %2948
      %2950 = vmax.xlane.f32.xlu0 %v2887
      %v2951 = vpop.xlane.xlu0 %2950
      %2952 = vmax.xlane.f32.xlu0 %v2892
      %v2953 = vpop.xlane.xlu0 %2952
      %2954 = vmax.xlane.f32.xlu0 %v2897
      %v2955 = vpop.xlane.xlu0 %2954
      %2956 = vmax.xlane.f32.xlu0 %v2902
      %v2957 = vpop.xlane.xlu0 %2956
      %2958 = vmax.xlane.f32.xlu0 %v2907
      %v2959 = vpop.xlane.xlu0 %2958
      %2960 = vmax.xlane.f32.xlu0 %v2912
      %v2961 = vpop.xlane.xlu0 %2960
      %2962 = vmax.xlane.f32.xlu0 %v2917
      %v2963 = vpop.xlane.xlu0 %2962
      %2964 = vmax.xlane.f32.xlu0 %v2922
      %v2965 = vpop.xlane.xlu0 %2964
      %2966 = vmax.xlane.f32.xlu0 %v2927
      %v2967 = vpop.xlane.xlu0 %2966
      %2968 = vmax.xlane.f32.xlu0 %v2932
      %v2969 = vpop.xlane.xlu0 %2968
      %2970 = vmax.xlane.f32.xlu0 %v2937
      %v2971 = vpop.xlane.xlu0 %2970
      %v2972 = vsub.f32 %v2862, %v2941
      %v2973 = vsub.f32 %v2867, %v2943
      %v2974 = vsub.f32 %v2872, %v2945
      %v2975 = vsub.f32 %v2877, %v2947
      %v2976 = vsub.f32 %v2882, %v2949
      %v2977 = vsub.f32 %v2887, %v2951
      %v2978 = vsub.f32 %v2892, %v2953
      %v2979 = vsub.f32 %v2897, %v2955
      %v2980 = vsub.f32 %v2902, %v2957
      %v2981 = vsub.f32 %v2907, %v2959
      %v2982 = vsub.f32 %v2912, %v2961
      %v2983 = vsub.f32 %v2917, %v2963
      %v2984 = vsub.f32 %v2922, %v2965
      %v2985 = vsub.f32 %v2927, %v2967
      %v2986 = vsub.f32 %v2932, %v2969
      %v2987 = vsub.f32 %v2937, %v2971
      %v2988 = vmul.f32 %v2972, 1.442695
      %v2989 = vpow.pop %v2988
      %v2990 = vmul.f32 %v2973, 1.442695
      %v2991 = vpow.pop %v2990
      %v2992 = vmul.f32 %v2974, 1.442695
      %v2993 = vpow.pop %v2992
      %v2994 = vmul.f32 %v2975, 1.442695
      %v2995 = vpow.pop %v2994
      %v2996 = vmul.f32 %v2976, 1.442695
      %v2997 = vpow.pop %v2996
      %v2998 = vmul.f32 %v2977, 1.442695
      %v2999 = vpow.pop %v2998
      %v3000 = vmul.f32 %v2978, 1.442695
      %v3001 = vpow.pop %v3000
      %v3002 = vmul.f32 %v2979, 1.442695
      %v3003 = vpow.pop %v3002
      %v3004 = vmul.f32 %v2980, 1.442695
      %v3005 = vpow.pop %v3004
      %v3006 = vmul.f32 %v2981, 1.442695
      %v3007 = vpow.pop %v3006
      %v3008 = vmul.f32 %v2982, 1.442695
      %v3009 = vpow.pop %v3008
      %v3010 = vmul.f32 %v2983, 1.442695
      %v3011 = vpow.pop %v3010
      %v3012 = vmul.f32 %v2984, 1.442695
      %v3013 = vpow.pop %v3012
      %v3014 = vmul.f32 %v2985, 1.442695
      %v3015 = vpow.pop %v3014
      %v3016 = vmul.f32 %v2986, 1.442695
      %v3017 = vpow.pop %v3016
      %v3018 = vmul.f32 %v2987, 1.442695
      %v3019 = vpow.pop %v3018
      %3020 = vadd.xlane.f32.xlu0 %v2989
      %v3021 = vpop.xlane.xlu0 %3020
      %3022 = vadd.xlane.f32.xlu0 %v2991
      %v3023 = vpop.xlane.xlu0 %3022
      %3024 = vadd.xlane.f32.xlu0 %v2993
      %v3025 = vpop.xlane.xlu0 %3024
      %3026 = vadd.xlane.f32.xlu0 %v2995
      %v3027 = vpop.xlane.xlu0 %3026
      %3028 = vadd.xlane.f32.xlu0 %v2997
      %v3029 = vpop.xlane.xlu0 %3028
      %3030 = vadd.xlane.f32.xlu0 %v2999
      %v3031 = vpop.xlane.xlu0 %3030
      %3032 = vadd.xlane.f32.xlu0 %v3001
      %v3033 = vpop.xlane.xlu0 %3032
      %3034 = vadd.xlane.f32.xlu0 %v3003
      %v3035 = vpop.xlane.xlu0 %3034
      %3036 = vadd.xlane.f32.xlu0 %v3005
      %v3037 = vpop.xlane.xlu0 %3036
      %3038 = vadd.xlane.f32.xlu0 %v3007
      %v3039 = vpop.xlane.xlu0 %3038
      %3040 = vadd.xlane.f32.xlu0 %v3009
      %v3041 = vpop.xlane.xlu0 %3040
      %3042 = vadd.xlane.f32.xlu0 %v3011
      %v3043 = vpop.xlane.xlu0 %3042
      %3044 = vadd.xlane.f32.xlu0 %v3013
      %v3045 = vpop.xlane.xlu0 %3044
      %3046 = vadd.xlane.f32.xlu0 %v3015
      %v3047 = vpop.xlane.xlu0 %3046
      %3048 = vadd.xlane.f32.xlu0 %v3017
      %v3049 = vpop.xlane.xlu0 %3048
      %3050 = vadd.xlane.f32.xlu0 %v3019
      %v3051 = vpop.xlane.xlu0 %3050
      %v3052 = vrcp.pop %v3021
      %v3053 = vrcp.pop %v3023
      %v3054 = vrcp.pop %v3025
      %v3055 = vrcp.pop %v3027
      %v3056 = vrcp.pop %v3029
      %v3057 = vrcp.pop %v3031
      %v3058 = vrcp.pop %v3033
      %v3059 = vrcp.pop %v3035
      %v3060 = vrcp.pop %v3037
      %v3061 = vrcp.pop %v3039
      %v3062 = vrcp.pop %v3041
      %v3063 = vrcp.pop %v3043
      %v3064 = vrcp.pop %v3045
      %v3065 = vrcp.pop %v3047
      %v3066 = vrcp.pop %v3049
      %v3067 = vrcp.pop %v3051
      %v3068 = vmul.f32 %v2989, %v3052
      %v3069 = vmul.f32 %v2991, %v3053
      %v3070 = vmul.f32 %v2993, %v3054
      %v3071 = vmul.f32 %v2995, %v3055
      %v3072 = vmul.f32 %v2997, %v3056
      %v3073 = vmul.f32 %v2999, %v3057
      %v3074 = vmul.f32 %v3001, %v3058
      %v3075 = vmul.f32 %v3003, %v3059
      %v3076 = vmul.f32 %v3005, %v3060
      %v3077 = vmul.f32 %v3007, %v3061
      %v3078 = vmul.f32 %v3009, %v3062
      %v3079 = vmul.f32 %v3011, %v3063
      %v3080 = vmul.f32 %v3013, %v3064
      %v3081 = vmul.f32 %v3015, %v3065
      %v3082 = vmul.f32 %v3017, %v3066
      %v3083 = vmul.f32 %v3019, %v3067
      %3084 = vrot.lane.b32.xlu0 %v2619, 48
      %v3085 = vpop.permute.xlu0 %3084
      %3086 = vrot.lane.b32.xlu0 %v2620, 48
      %v3087 = vpop.permute.xlu0 %3086
      %3088 = vrot.lane.b32.xlu0 %v2621, 48
      %v3089 = vpop.permute.xlu0 %3088
      %3090 = vrot.lane.b32.xlu0 %v2622, 48
      %v3091 = vpop.permute.xlu0 %3090
      %3092 = vrot.lane.b32.xlu0 %v2623, 48
      %v3093 = vpop.permute.xlu0 %3092
      %3094 = vrot.lane.b32.xlu0 %v2624, 48
      %v3095 = vpop.permute.xlu0 %3094
      %3096 = vrot.lane.b32.xlu0 %v2625, 48
      %v3097 = vpop.permute.xlu0 %3096
      %3098 = vrot.lane.b32.xlu0 %v2626, 48
      %v3099 = vpop.permute.xlu0 %3098
      %3100 = vrot.lane.b32.xlu0 %v2627, 48
      %v3101 = vpop.permute.xlu0 %3100
      %3102 = vrot.lane.b32.xlu0 %v2628, 48
      %v3103 = vpop.permute.xlu0 %3102
      %3104 = vrot.lane.b32.xlu0 %v2629, 48
      %v3105 = vpop.permute.xlu0 %3104
      %3106 = vrot.lane.b32.xlu0 %v2630, 48
      %v3107 = vpop.permute.xlu0 %3106
      %3108 = vrot.lane.b32.xlu0 %v2631, 48
      %v3109 = vpop.permute.xlu0 %3108
      %3110 = vrot.lane.b32.xlu0 %v2632, 48
      %v3111 = vpop.permute.xlu0 %3110
      %3112 = vrot.lane.b32.xlu0 %v2633, 48
      %v3113 = vpop.permute.xlu0 %3112
      %3114 = vrot.lane.b32.xlu0 %v2634, 48
      %v3115 = vpop.permute.xlu0 %3114
      %3132 = vmatprep.subr.mxu0 0.0
      %3133 = vmatpush1.msra.mxu0 %v3085
      %3134 = vmatprep.subr.mxu0 0.0
      %3135 = vmatpush1.msra.mxu0 %v3087
      %3136 = vmatprep.subr.mxu0 0.0
      %3137 = vmatpush1.msra.mxu0 %v3089
      %3138 = vmatprep.subr.mxu0 0.0
      %3139 = vmatpush1.msra.mxu0 %v3091
      %3140 = vmatprep.subr.mxu0 0.0
      %3141 = vmatpush1.msra.mxu0 %v3093
      %3142 = vmatprep.subr.mxu0 0.0
      %3143 = vmatpush1.msra.mxu0 %v3095
      %3144 = vmatprep.subr.mxu0 0.0
      %3145 = vmatpush1.msra.mxu0 %v3097
      %3146 = vmatprep.subr.mxu0 0.0
      %3147 = vmatpush1.msra.mxu0 %v3099
      %3148 = vmatprep.subr.mxu0 0.0
      %3149 = vmatpush1.msra.mxu0 %v3101
      %3150 = vmatprep.subr.mxu0 0.0
      %3151 = vmatpush1.msra.mxu0 %v3103
      %3152 = vmatprep.subr.mxu0 0.0
      %3153 = vmatpush1.msra.mxu0 %v3105
      %3154 = vmatprep.subr.mxu0 0.0
      %3155 = vmatpush1.msra.mxu0 %v3107
      %3156 = vmatprep.subr.mxu0 0.0
      %3157 = vmatpush1.msra.mxu0 %v3109
      %3158 = vmatprep.subr.mxu0 0.0
      %3159 = vmatpush1.msra.mxu0 %v3111
      %3160 = vmatprep.subr.mxu0 0.0
      %3161 = vmatpush1.msra.mxu0 %v3113
      %3162 = vmatprep.subr.mxu0 0.0
      %3163 = vmatpush1.msra.mxu0 %v3115
      %3164 = vmatprep.subr.mxu0 0.0
      %3165 = vmatpush1.msra.mxu0 0.0
      %3166 = vmatprep.subr.mxu0 0.0
      %3167 = vmatpush1.msra.mxu0 0.0
      %3168 = vmatprep.subr.mxu0 0.0
      %3169 = vmatpush1.msra.mxu0 0.0
      %3170 = vmatprep.subr.mxu0 0.0
      %3171 = vmatpush1.msra.mxu0 0.0
      %3172 = vmatprep.subr.mxu0 0.0
      %3173 = vmatpush1.msra.mxu0 0.0
      %3174 = vmatprep.subr.mxu0 0.0
      %3175 = vmatpush1.msra.mxu0 0.0
      %3176 = vmatprep.subr.mxu0 0.0
      %3177 = vmatpush1.msra.mxu0 0.0
      %3178 = vmatprep.subr.mxu0 0.0
      %3179 = vmatpush1.msra.mxu0 0.0
      %3180 = vmatprep.subr.mxu0 0.0
      %3181 = vmatpush1.msra.mxu0 0.0
      %3182 = vmatprep.subr.mxu0 0.0
      %3183 = vmatpush1.msra.mxu0 0.0
      %3184 = vmatprep.subr.mxu0 0.0
      %3185 = vmatpush1.msra.mxu0 0.0
      %3186 = vmatprep.subr.mxu0 0.0
      %3187 = vmatpush1.msra.mxu0 0.0
      %3188 = vmatprep.subr.mxu0 0.0
      %3189 = vmatpush1.msra.mxu0 0.0
      %3190 = vmatprep.subr.mxu0 0.0
      %3191 = vmatpush1.msra.mxu0 0.0
      %3192 = vmatprep.subr.mxu0 0.0
      %3193 = vmatpush1.msra.mxu0 0.0
      %3194 = vmatprep.subr.mxu0 0.0
      %3195 = vmatpush1.msra.mxu0 0.0
      %3196 = vmatprep.mubr.f32.mxu0 0.0
      %3197 = vmatmul.mubr.f32.gmra.mrb[0].mxu0 %v3068
      %v3198 = vpop.f32.mrb[0].mxu0
      %v3199 = vadd.f32 0.0, %v3198
      %v3200 = vpop.f32.mrb[0].mxu0
      %3201 = vmatprep.mubr.f32.mxu0 0.0
      %3202 = vmatmul.mubr.f32.gmra.mrb[0].mxu0 %v3069
      %v3203 = vpop.f32.mrb[0].mxu0
      %v3204 = vadd.f32 0.0, %v3203
      %v3205 = vpop.f32.mrb[0].mxu0
      %3206 = vmatprep.mubr.f32.mxu0 0.0
      %3207 = vmatmul.mubr.f32.gmra.mrb[0].mxu0 %v3070
      %v3208 = vpop.f32.mrb[0].mxu0
      %v3209 = vadd.f32 0.0, %v3208
      %v3210 = vpop.f32.mrb[0].mxu0
      %3211 = vmatprep.mubr.f32.mxu0 0.0
      %3212 = vmatmul.mubr.f32.gmra.mrb[0].mxu0 %v3071
      %v3213 = vpop.f32.mrb[0].mxu0
      %v3214 = vadd.f32 0.0, %v3213
      %v3215 = vpop.f32.mrb[0].mxu0
      %3216 = vmatprep.mubr.f32.mxu0 0.0
      %3217 = vmatmul.mubr.f32.gmra.mrb[0].mxu0 %v3072
      %v3218 = vpop.f32.mrb[0].mxu0
      %v3219 = vadd.f32 0.0, %v3218
      %v3220 = vpop.f32.mrb[0].mxu0
      %3221 = vmatprep.mubr.f32.mxu0 0.0
      %3222 = vmatmul.mubr.f32.gmra.mrb[0].mxu0 %v3073
      %v3223 = vpop.f32.mrb[0].mxu0
      %v3224 = vadd.f32 0.0, %v3223
      %v3225 = vpop.f32.mrb[0].mxu0
      %3226 = vmatprep.mubr.f32.mxu0 0.0
      %3227 = vmatmul.mubr.f32.gmra.mrb[0].mxu0 %v3074
      %v3228 = vpop.f32.mrb[0].mxu0
      %v3229 = vadd.f32 0.0, %v3228
      %v3230 = vpop.f32.mrb[0].mxu0
      %3231 = vmatprep.mubr.f32.mxu0 0.0
      %3232 = vmatmul.mubr.f32.gmra.mrb[0].mxu0 %v3075
      %v3233 = vpop.f32.mrb[0].mxu0
      %v3234 = vadd.f32 0.0, %v3233
      %v3235 = vpop.f32.mrb[0].mxu0
      %3236 = vmatprep.mubr.f32.mxu0 0.0
      %3237 = vmatmul.mubr.f32.gmra.mrb[0].mxu0 %v3076
      %v3238 = vpop.f32.mrb[0].mxu0
      %v3239 = vadd.f32 0.0, %v3238
      %v3240 = vpop.f32.mrb[0].mxu0
      %3241 = vmatprep.mubr.f32.mxu0 0.0
      %3242 = vmatmul.mubr.f32.gmra.mrb[0].mxu0 %v3077
      %v3243 = vpop.f32.mrb[0].mxu0
      %v3244 = vadd.f32 0.0, %v3243
      %v3245 = vpop.f32.mrb[0].mxu0
      %3246 = vmatprep.mubr.f32.mxu0 0.0
      %3247 = vmatmul.mubr.f32.gmra.mrb[0].mxu0 %v3078
      %v3248 = vpop.f32.mrb[0].mxu0
      %v3249 = vadd.f32 0.0, %v3248
      %v3250 = vpop.f32.mrb[0].mxu0
      %3251 = vmatprep.mubr.f32.mxu0 0.0
      %3252 = vmatmul.mubr.f32.gmra.mrb[0].mxu0 %v3079
      %v3253 = vpop.f32.mrb[0].mxu0
      %v3254 = vadd.f32 0.0, %v3253
      %v3255 = vpop.f32.mrb[0].mxu0
      %3256 = vmatprep.mubr.f32.mxu0 0.0
      %3257 = vmatmul.mubr.f32.gmra.mrb[0].mxu0 %v3080
      %v3258 = vpop.f32.mrb[0].mxu0
      %v3259 = vadd.f32 0.0, %v3258
      %v3260 = vpop.f32.mrb[0].mxu0
      %3261 = vmatprep.mubr.f32.mxu0 0.0
      %3262 = vmatmul.mubr.f32.gmra.mrb[0].mxu0 %v3081
      %v3263 = vpop.f32.mrb[0].mxu0
      %v3264 = vadd.f32 0.0, %v3263
      %v3265 = vpop.f32.mrb[0].mxu0
      %3266 = vmatprep.mubr.f32.mxu0 0.0
      %3267 = vmatmul.mubr.f32.gmra.mrb[0].mxu0 %v3082
      %v3268 = vpop.f32.mrb[0].mxu0
      %v3269 = vadd.f32 0.0, %v3268
      %v3270 = vpop.f32.mrb[0].mxu0
      %3271 = vmatprep.mubr.f32.mxu0 0.0
      %3272 = vmatmul.mubr.f32.gmra.mrb[0].mxu0 %v3083
      %v3273 = vpop.f32.mrb[0].mxu0
      %v3274 = vadd.f32 0.0, %v3273
      %v3275 = vpop.f32.mrb[0].mxu0
      %3276 = vdwg.mxu0
      %3293 = vrot.lane.b32.xlu0 %v3199, 16
      %v3294 = vpop.permute.xlu0 %3293
      %3295 = vrot.lane.b32.xlu0 %v3204, 16
      %v3296 = vpop.permute.xlu0 %3295
      %3297 = vrot.lane.b32.xlu0 %v3209, 16
      %v3298 = vpop.permute.xlu0 %3297
      %3299 = vrot.lane.b32.xlu0 %v3214, 16
      %v3300 = vpop.permute.xlu0 %3299
      %3301 = vrot.lane.b32.xlu0 %v3219, 16
      %v3302 = vpop.permute.xlu0 %3301
      %3303 = vrot.lane.b32.xlu0 %v3224, 16
      %v3304 = vpop.permute.xlu0 %3303
      %3305 = vrot.lane.b32.xlu0 %v3229, 16
      %v3306 = vpop.permute.xlu0 %3305
      %3307 = vrot.lane.b32.xlu0 %v3234, 16
      %v3308 = vpop.permute.xlu0 %3307
      %3309 = vrot.lane.b32.xlu0 %v3239, 16
      %v3310 = vpop.permute.xlu0 %3309
      %3311 = vrot.lane.b32.xlu0 %v3244, 16
      %v3312 = vpop.permute.xlu0 %3311
      %3313 = vrot.lane.b32.xlu0 %v3249, 16
      %v3314 = vpop.permute.xlu0 %3313
      %3315 = vrot.lane.b32.xlu0 %v3254, 16
      %v3316 = vpop.permute.xlu0 %3315
      %3317 = vrot.lane.b32.xlu0 %v3259, 16
      %v3318 = vpop.permute.xlu0 %3317
      %3319 = vrot.lane.b32.xlu0 %v3264, 16
      %v3320 = vpop.permute.xlu0 %3319
      %3321 = vrot.lane.b32.xlu0 %v3269, 16
      %v3322 = vpop.permute.xlu0 %3321
      %3323 = vrot.lane.b32.xlu0 %v3274, 16
      %v3324 = vpop.permute.xlu0 %3323
      %3341 = vst.msk [vmem:[%s2602] sm:$0xff] %vm1958, %v3294
      %3342 = vst.msk [vmem:[%s2602 + $0x8] sm:$0xff] %vm1958, %v3296
      %3343 = vst.msk [vmem:[%s2602 + $0x10] sm:$0xff] %vm1958, %v3298
      %3344 = vst.msk [vmem:[%s2602 + $0x18] sm:$0xff] %vm1958, %v3300
      %3345 = vst.msk [vmem:[%s2602 + $0x20] sm:$0xff] %vm1958, %v3302
      %3346 = vst.msk [vmem:[%s2602 + $0x28] sm:$0xff] %vm1958, %v3304
      %3347 = vst.msk [vmem:[%s2602 + $0x30] sm:$0xff] %vm1958, %v3306
      %3348 = vst.msk [vmem:[%s2602 + $0x38] sm:$0xff] %vm1958, %v3308
      %3349 = vst.msk [vmem:[%s2602 + $0x40] sm:$0xff] %vm1958, %v3310
      %3350 = vst.msk [vmem:[%s2602 + $0x48] sm:$0xff] %vm1958, %v3312
      %3351 = vst.msk [vmem:[%s2602 + $0x50] sm:$0xff] %vm1958, %v3314
      %3352 = vst.msk [vmem:[%s2602 + $0x58] sm:$0xff] %vm1958, %v3316
      %3353 = vst.msk [vmem:[%s2602 + $0x60] sm:$0xff] %vm1958, %v3318
      %3354 = vst.msk [vmem:[%s2602 + $0x68] sm:$0xff] %vm1958, %v3320
      %3355 = vst.msk [vmem:[%s2602 + $0x70] sm:$0xff] %vm1958, %v3322
      %3356 = vst.msk [vmem:[%s2602 + $0x78] sm:$0xff] %vm1958, %v3324
      %v3357 = vld [vmem:[#allocation3] sm:$0xff]
      %v3358 = vld [vmem:[#allocation3 + $0x8] sm:$0xff]
      %v3359 = vld [vmem:[#allocation3 + $0x10] sm:$0xff]
      %v3360 = vld [vmem:[#allocation3 + $0x18] sm:$0xff]
      %v3361 = vld [vmem:[#allocation3 + $0x20] sm:$0xff]
      %v3362 = vld [vmem:[#allocation3 + $0x28] sm:$0xff]
      %v3363 = vld [vmem:[#allocation3 + $0x30] sm:$0xff]
      %v3364 = vld [vmem:[#allocation3 + $0x38] sm:$0xff]
      %v3365 = vld [vmem:[#allocation3 + $0x40] sm:$0xff]
      %v3366 = vld [vmem:[#allocation3 + $0x48] sm:$0xff]
      %v3367 = vld [vmem:[#allocation3 + $0x50] sm:$0xff]
      %v3368 = vld [vmem:[#allocation3 + $0x58] sm:$0xff]
      %v3369 = vld [vmem:[#allocation3 + $0x60] sm:$0xff]
      %v3370 = vld [vmem:[#allocation3 + $0x68] sm:$0xff]
      %v3371 = vld [vmem:[#allocation3 + $0x70] sm:$0xff]
      %v3372 = vld [vmem:[#allocation3 + $0x78] sm:$0xff]
      %v3373 = vld [vmem:[#allocation3 + $0x80] sm:$0xff]
      %v3374 = vld [vmem:[#allocation3 + $0x88] sm:$0xff]
      %v3375 = vld [vmem:[#allocation3 + $0x90] sm:$0xff]
      %v3376 = vld [vmem:[#allocation3 + $0x98] sm:$0xff]
      %v3377 = vld [vmem:[#allocation3 + $0xa0] sm:$0xff]
      %v3378 = vld [vmem:[#allocation3 + $0xa8] sm:$0xff]
      %v3379 = vld [vmem:[#allocation3 + $0xb0] sm:$0xff]
      %v3380 = vld [vmem:[#allocation3 + $0xb8] sm:$0xff]
      %v3381 = vld [vmem:[#allocation3 + $0xc0] sm:$0xff]
      %v3382 = vld [vmem:[#allocation3 + $0xc8] sm:$0xff]
      %v3383 = vld [vmem:[#allocation3 + $0xd0] sm:$0xff]
      %v3384 = vld [vmem:[#allocation3 + $0xd8] sm:$0xff]
      %v3385 = vld [vmem:[#allocation3 + $0xe0] sm:$0xff]
      %v3386 = vld [vmem:[#allocation3 + $0xe8] sm:$0xff]
      %v3387 = vld [vmem:[#allocation3 + $0xf0] sm:$0xff]
      %v3388 = vld [vmem:[#allocation3 + $0xf8] sm:$0xff]
      %v3389 = vld [vmem:[%s3] sm:$0xff]
      %v3390 = vld [vmem:[%s3 + $0x8] sm:$0xff]
      %v3391 = vld [vmem:[%s3 + $0x10] sm:$0xff]
      %v3392 = vld [vmem:[%s3 + $0x18] sm:$0xff]
      %v3394 = vsel %vm237, %v3357, 0
      %v3397 = vsel %vm237, %v3358, 0
      %v3400 = vsel %vm237, %v3359, 0
      %v3403 = vsel %vm237, %v3360, 0
      %v3406 = vsel %vm237, %v3361, 0
      %v3409 = vsel %vm237, %v3362, 0
      %v3412 = vsel %vm237, %v3363, 0
      %v3415 = vsel %vm237, %v3364, 0
      %v3418 = vsel %vm237, %v3365, 0
      %v3421 = vsel %vm237, %v3366, 0
      %v3424 = vsel %vm237, %v3367, 0
      %v3427 = vsel %vm237, %v3368, 0
      %v3430 = vsel %vm237, %v3369, 0
      %v3433 = vsel %vm237, %v3370, 0
      %v3436 = vsel %vm237, %v3371, 0
      %v3439 = vsel %vm237, %v3372, 0
      %v3442 = vsel %vm237, %v3373, 0
      %v3445 = vsel %vm237, %v3374, 0
      %v3448 = vsel %vm237, %v3375, 0
      %v3451 = vsel %vm237, %v3376, 0
      %v3454 = vsel %vm237, %v3377, 0
      %v3457 = vsel %vm237, %v3378, 0
      %v3460 = vsel %vm237, %v3379, 0
      %v3463 = vsel %vm237, %v3380, 0
      %v3466 = vsel %vm237, %v3381, 0
      %v3469 = vsel %vm237, %v3382, 0
      %v3472 = vsel %vm237, %v3383, 0
      %v3475 = vsel %vm237, %v3384, 0
      %v3478 = vsel %vm237, %v3385, 0
      %v3481 = vsel %vm237, %v3386, 0
      %v3484 = vsel %vm237, %v3387, 0
      %v3487 = vsel %vm237, %v3388, 0
      %3489 = vmatprep.subr.mxu0 0.0
      %3490 = vmatpush1.msra.mxu0 %v3389
      %3491 = vmatprep.subr.mxu0 0.0
      %3492 = vmatpush1.msra.mxu0 %v3390
      %3493 = vmatprep.subr.mxu0 0.0
      %3494 = vmatpush1.msra.mxu0 %v3391
      %3495 = vmatprep.subr.mxu0 0.0
      %3496 = vmatpush1.msra.mxu0 %v3392
      %3497 = vmatprep.subr.mxu0 0.0
      %3498 = vmatpush1.msra.mxu0 0.0
      %3499 = vmatprep.subr.mxu0 0.0
      %3500 = vmatpush1.msra.mxu0 0.0
      %3501 = vmatprep.subr.mxu0 0.0
      %3502 = vmatpush1.msra.mxu0 0.0
      %3503 = vmatprep.subr.mxu0 0.0
      %3504 = vmatpush1.msra.mxu0 0.0
      %3505 = vmatprep.subr.mxu0 0.0
      %3506 = vmatpush1.msra.mxu0 0.0
      %3507 = vmatprep.subr.mxu0 0.0
      %3508 = vmatpush1.msra.mxu0 0.0
      %3509 = vmatprep.subr.mxu0 0.0
      %3510 = vmatpush1.msra.mxu0 0.0
      %3511 = vmatprep.subr.mxu0 0.0
      %3512 = vmatpush1.msra.mxu0 0.0
      %3513 = vmatprep.subr.mxu0 0.0
      %3514 = vmatpush1.msra.mxu0 0.0
      %3515 = vmatprep.subr.mxu0 0.0
      %3516 = vmatpush1.msra.mxu0 0.0
      %3517 = vmatprep.subr.mxu0 0.0
      %3518 = vmatpush1.msra.mxu0 0.0
      %3519 = vmatprep.subr.mxu0 0.0
      %3520 = vmatpush1.msra.mxu0 0.0
      %3521 = vmatprep.subr.mxu0 0.0
      %3522 = vmatpush1.msra.mxu0 0.0
      %3523 = vmatprep.subr.mxu0 0.0
      %3524 = vmatpush1.msra.mxu0 0.0
      %3525 = vmatprep.subr.mxu0 0.0
      %3526 = vmatpush1.msra.mxu0 0.0
      %3527 = vmatprep.subr.mxu0 0.0
      %3528 = vmatpush1.msra.mxu0 0.0
      %3529 = vmatprep.subr.mxu0 0.0
      %3530 = vmatpush1.msra.mxu0 0.0
      %3531 = vmatprep.subr.mxu0 0.0
      %3532 = vmatpush1.msra.mxu0 0.0
      %3533 = vmatprep.subr.mxu0 0.0
      %3534 = vmatpush1.msra.mxu0 0.0
      %3535 = vmatprep.subr.mxu0 0.0
      %3536 = vmatpush1.msra.mxu0 0.0
      %3537 = vmatprep.subr.mxu0 0.0
      %3538 = vmatpush1.msra.mxu0 0.0
      %3539 = vmatprep.subr.mxu0 0.0
      %3540 = vmatpush1.msra.mxu0 0.0
      %3541 = vmatprep.subr.mxu0 0.0
      %3542 = vmatpush1.msra.mxu0 0.0
      %3543 = vmatprep.subr.mxu0 0.0
      %3544 = vmatpush1.msra.mxu0 0.0
      %3545 = vmatprep.subr.mxu0 0.0
      %3546 = vmatpush1.msra.mxu0 0.0
      %3547 = vmatprep.subr.mxu0 0.0
      %3548 = vmatpush1.msra.mxu0 0.0
      %3549 = vmatprep.subr.mxu0 0.0
      %3550 = vmatpush1.msra.mxu0 0.0
      %3551 = vmatprep.subr.mxu0 0.0
      %3552 = vmatpush1.msra.mxu0 0.0
      %3553 = vmatprep.mubr.f32.mxu0 0.0
      %3554 = vmatmul.mubr.f32.gmra.mrb[0].mxu0 %v3394
      %v3555 = vpop.f32.mrb[0].mxu0
      %v3556 = vadd.f32 0.0, %v3555
      %v3557 = vpop.f32.mrb[0].mxu0
      %3558 = vmatprep.mubr.f32.mxu0 0.0
      %3559 = vmatmul.mubr.f32.gmra.mrb[0].mxu0 %v3397
      %v3560 = vpop.f32.mrb[0].mxu0
      %v3561 = vadd.f32 0.0, %v3560
      %v3562 = vpop.f32.mrb[0].mxu0
      %3563 = vmatprep.mubr.f32.mxu0 0.0
      %3564 = vmatmul.mubr.f32.gmra.mrb[0].mxu0 %v3400
      %v3565 = vpop.f32.mrb[0].mxu0
      %v3566 = vadd.f32 0.0, %v3565
      %v3567 = vpop.f32.mrb[0].mxu0
      %3568 = vmatprep.mubr.f32.mxu0 0.0
      %3569 = vmatmul.mubr.f32.gmra.mrb[0].mxu0 %v3403
      %v3570 = vpop.f32.mrb[0].mxu0
      %v3571 = vadd.f32 0.0, %v3570
      %v3572 = vpop.f32.mrb[0].mxu0
      %3573 = vmatprep.mubr.f32.mxu0 0.0
      %3574 = vmatmul.mubr.f32.gmra.mrb[0].mxu0 %v3406
      %v3575 = vpop.f32.mrb[0].mxu0
      %v3576 = vadd.f32 0.0, %v3575
      %v3577 = vpop.f32.mrb[0].mxu0
      %3578 = vmatprep.mubr.f32.mxu0 0.0
      %3579 = vmatmul.mubr.f32.gmra.mrb[0].mxu0 %v3409
      %v3580 = vpop.f32.mrb[0].mxu0
      %v3581 = vadd.f32 0.0, %v3580
      %v3582 = vpop.f32.mrb[0].mxu0
      %3583 = vmatprep.mubr.f32.mxu0 0.0
      %3584 = vmatmul.mubr.f32.gmra.mrb[0].mxu0 %v3412
      %v3585 = vpop.f32.mrb[0].mxu0
      %v3586 = vadd.f32 0.0, %v3585
      %v3587 = vpop.f32.mrb[0].mxu0
      %3588 = vmatprep.mubr.f32.mxu0 0.0
      %3589 = vmatmul.mubr.f32.gmra.mrb[0].mxu0 %v3415
      %v3590 = vpop.f32.mrb[0].mxu0
      %v3591 = vadd.f32 0.0, %v3590
      %v3592 = vpop.f32.mrb[0].mxu0
      %3593 = vmatprep.mubr.f32.mxu0 0.0
      %3594 = vmatmul.mubr.f32.gmra.mrb[0].mxu0 %v3418
      %v3595 = vpop.f32.mrb[0].mxu0
      %v3596 = vadd.f32 0.0, %v3595
      %v3597 = vpop.f32.mrb[0].mxu0
      %3598 = vmatprep.mubr.f32.mxu0 0.0
      %3599 = vmatmul.mubr.f32.gmra.mrb[0].mxu0 %v3421
      %v3600 = vpop.f32.mrb[0].mxu0
      %v3601 = vadd.f32 0.0, %v3600
      %v3602 = vpop.f32.mrb[0].mxu0
      %3603 = vmatprep.mubr.f32.mxu0 0.0
      %3604 = vmatmul.mubr.f32.gmra.mrb[0].mxu0 %v3424
      %v3605 = vpop.f32.mrb[0].mxu0
      %v3606 = vadd.f32 0.0, %v3605
      %v3607 = vpop.f32.mrb[0].mxu0
      %3608 = vmatprep.mubr.f32.mxu0 0.0
      %3609 = vmatmul.mubr.f32.gmra.mrb[0].mxu0 %v3427
      %v3610 = vpop.f32.mrb[0].mxu0
      %v3611 = vadd.f32 0.0, %v3610
      %v3612 = vpop.f32.mrb[0].mxu0
      %3613 = vmatprep.mubr.f32.mxu0 0.0
      %3614 = vmatmul.mubr.f32.gmra.mrb[0].mxu0 %v3430
      %v3615 = vpop.f32.mrb[0].mxu0
      %v3616 = vadd.f32 0.0, %v3615
      %v3617 = vpop.f32.mrb[0].mxu0
      %3618 = vmatprep.mubr.f32.mxu0 0.0
      %3619 = vmatmul.mubr.f32.gmra.mrb[0].mxu0 %v3433
      %v3620 = vpop.f32.mrb[0].mxu0
      %v3621 = vadd.f32 0.0, %v3620
      %v3622 = vpop.f32.mrb[0].mxu0
      %3623 = vmatprep.mubr.f32.mxu0 0.0
      %3624 = vmatmul.mubr.f32.gmra.mrb[0].mxu0 %v3436
      %v3625 = vpop.f32.mrb[0].mxu0
      %v3626 = vadd.f32 0.0, %v3625
      %v3627 = vpop.f32.mrb[0].mxu0
      %3628 = vmatprep.mubr.f32.mxu0 0.0
      %3629 = vmatmul.mubr.f32.gmra.mrb[0].mxu0 %v3439
      %v3630 = vpop.f32.mrb[0].mxu0
      %v3631 = vadd.f32 0.0, %v3630
      %v3632 = vpop.f32.mrb[0].mxu0
      %3633 = vmatprep.mubr.f32.mxu0 0.0
      %3634 = vmatmul.mubr.f32.gmra.mrb[0].mxu0 %v3442
      %v3635 = vpop.f32.mrb[0].mxu0
      %v3636 = vadd.f32 0.0, %v3635
      %v3637 = vpop.f32.mrb[0].mxu0
      %3638 = vmatprep.mubr.f32.mxu0 0.0
      %3639 = vmatmul.mubr.f32.gmra.mrb[0].mxu0 %v3445
      %v3640 = vpop.f32.mrb[0].mxu0
      %v3641 = vadd.f32 0.0, %v3640
      %v3642 = vpop.f32.mrb[0].mxu0
      %3643 = vmatprep.mubr.f32.mxu0 0.0
      %3644 = vmatmul.mubr.f32.gmra.mrb[0].mxu0 %v3448
      %v3645 = vpop.f32.mrb[0].mxu0
      %v3646 = vadd.f32 0.0, %v3645
      %v3647 = vpop.f32.mrb[0].mxu0
      %3648 = vmatprep.mubr.f32.mxu0 0.0
      %3649 = vmatmul.mubr.f32.gmra.mrb[0].mxu0 %v3451
      %v3650 = vpop.f32.mrb[0].mxu0
      %v3651 = vadd.f32 0.0, %v3650
      %v3652 = vpop.f32.mrb[0].mxu0
      %3653 = vmatprep.mubr.f32.mxu0 0.0
      %3654 = vmatmul.mubr.f32.gmra.mrb[0].mxu0 %v3454
      %v3655 = vpop.f32.mrb[0].mxu0
      %v3656 = vadd.f32 0.0, %v3655
      %v3657 = vpop.f32.mrb[0].mxu0
      %3658 = vmatprep.mubr.f32.mxu0 0.0
      %3659 = vmatmul.mubr.f32.gmra.mrb[0].mxu0 %v3457
      %v3660 = vpop.f32.mrb[0].mxu0
      %v3661 = vadd.f32 0.0, %v3660
      %v3662 = vpop.f32.mrb[0].mxu0
      %3663 = vmatprep.mubr.f32.mxu0 0.0
      %3664 = vmatmul.mubr.f32.gmra.mrb[0].mxu0 %v3460
      %v3665 = vpop.f32.mrb[0].mxu0
      %v3666 = vadd.f32 0.0, %v3665
      %v3667 = vpop.f32.mrb[0].mxu0
      %3668 = vmatprep.mubr.f32.mxu0 0.0
      %3669 = vmatmul.mubr.f32.gmra.mrb[0].mxu0 %v3463
      %v3670 = vpop.f32.mrb[0].mxu0
      %v3671 = vadd.f32 0.0, %v3670
      %v3672 = vpop.f32.mrb[0].mxu0
      %3673 = vmatprep.mubr.f32.mxu0 0.0
      %3674 = vmatmul.mubr.f32.gmra.mrb[0].mxu0 %v3466
      %v3675 = vpop.f32.mrb[0].mxu0
      %v3676 = vadd.f32 0.0, %v3675
      %v3677 = vpop.f32.mrb[0].mxu0
      %3678 = vmatprep.mubr.f32.mxu0 0.0
      %3679 = vmatmul.mubr.f32.gmra.mrb[0].mxu0 %v3469
      %v3680 = vpop.f32.mrb[0].mxu0
      %v3681 = vadd.f32 0.0, %v3680
      %v3682 = vpop.f32.mrb[0].mxu0
      %3683 = vmatprep.mubr.f32.mxu0 0.0
      %3684 = vmatmul.mubr.f32.gmra.mrb[0].mxu0 %v3472
      %v3685 = vpop.f32.mrb[0].mxu0
      %v3686 = vadd.f32 0.0, %v3685
      %v3687 = vpop.f32.mrb[0].mxu0
      %3688 = vmatprep.mubr.f32.mxu0 0.0
      %3689 = vmatmul.mubr.f32.gmra.mrb[0].mxu0 %v3475
      %v3690 = vpop.f32.mrb[0].mxu0
      %v3691 = vadd.f32 0.0, %v3690
      %v3692 = vpop.f32.mrb[0].mxu0
      %3693 = vmatprep.mubr.f32.mxu0 0.0
      %3694 = vmatmul.mubr.f32.gmra.mrb[0].mxu0 %v3478
      %v3695 = vpop.f32.mrb[0].mxu0
      %v3696 = vadd.f32 0.0, %v3695
      %v3697 = vpop.f32.mrb[0].mxu0
      %3698 = vmatprep.mubr.f32.mxu0 0.0
      %3699 = vmatmul.mubr.f32.gmra.mrb[0].mxu0 %v3481
      %v3700 = vpop.f32.mrb[0].mxu0
      %v3701 = vadd.f32 0.0, %v3700
      %v3702 = vpop.f32.mrb[0].mxu0
      %3703 = vmatprep.mubr.f32.mxu0 0.0
      %3704 = vmatmul.mubr.f32.gmra.mrb[0].mxu0 %v3484
      %v3705 = vpop.f32.mrb[0].mxu0
      %v3706 = vadd.f32 0.0, %v3705
      %v3707 = vpop.f32.mrb[0].mxu0
      %3708 = vmatprep.mubr.f32.mxu0 0.0
      %3709 = vmatmul.mubr.f32.gmra.mrb[0].mxu0 %v3487
      %v3710 = vpop.f32.mrb[0].mxu0
      %v3711 = vadd.f32 0.0, %v3710
      %v3712 = vpop.f32.mrb[0].mxu0
      %3713 = vdwg.mxu0
      %3714 = vst.msk [vmem:[%s199] sm:$0xff] %vm237, %v3556
      %3715 = vst.msk [vmem:[%s199 + $0x8] sm:$0xff] %vm237, %v3561
      %3716 = vst.msk [vmem:[%s199 + $0x10] sm:$0xff] %vm237, %v3566
      %3717 = vst.msk [vmem:[%s199 + $0x18] sm:$0xff] %vm237, %v3571
      %3718 = vst.msk [vmem:[%s199 + $0x20] sm:$0xff] %vm237, %v3576
      %3719 = vst.msk [vmem:[%s199 + $0x28] sm:$0xff] %vm237, %v3581
      %3720 = vst.msk [vmem:[%s199 + $0x30] sm:$0xff] %vm237, %v3586
      %3721 = vst.msk [vmem:[%s199 + $0x38] sm:$0xff] %vm237, %v3591
      %3722 = vst.msk [vmem:[%s199 + $0x40] sm:$0xff] %vm237, %v3596
      %3723 = vst.msk [vmem:[%s199 + $0x48] sm:$0xff] %vm237, %v3601
      %3724 = vst.msk [vmem:[%s199 + $0x50] sm:$0xff] %vm237, %v3606
      %3725 = vst.msk [vmem:[%s199 + $0x58] sm:$0xff] %vm237, %v3611
      %3726 = vst.msk [vmem:[%s199 + $0x60] sm:$0xff] %vm237, %v3616
      %3727 = vst.msk [vmem:[%s199 + $0x68] sm:$0xff] %vm237, %v3621
      %3728 = vst.msk [vmem:[%s199 + $0x70] sm:$0xff] %vm237, %v3626
      %3729 = vst.msk [vmem:[%s199 + $0x78] sm:$0xff] %vm237, %v3631
      %3730 = vst.msk [vmem:[%s199 + $0x80] sm:$0xff] %vm237, %v3636
      %3731 = vst.msk [vmem:[%s199 + $0x88] sm:$0xff] %vm237, %v3641
      %3732 = vst.msk [vmem:[%s199 + $0x90] sm:$0xff] %vm237, %v3646
      %3733 = vst.msk [vmem:[%s199 + $0x98] sm:$0xff] %vm237, %v3651
      %3734 = vst.msk [vmem:[%s199 + $0xa0] sm:$0xff] %vm237, %v3656
      %3735 = vst.msk [vmem:[%s199 + $0xa8] sm:$0xff] %vm237, %v3661
      %3736 = vst.msk [vmem:[%s199 + $0xb0] sm:$0xff] %vm237, %v3666
      %3737 = vst.msk [vmem:[%s199 + $0xb8] sm:$0xff] %vm237, %v3671
      %3738 = vst.msk [vmem:[%s199 + $0xc0] sm:$0xff] %vm237, %v3676
      %3739 = vst.msk [vmem:[%s199 + $0xc8] sm:$0xff] %vm237, %v3681
      %3740 = vst.msk [vmem:[%s199 + $0xd0] sm:$0xff] %vm237, %v3686
      %3741 = vst.msk [vmem:[%s199 + $0xd8] sm:$0xff] %vm237, %v3691
      %3742 = vst.msk [vmem:[%s199 + $0xe0] sm:$0xff] %vm237, %v3696
      %3743 = vst.msk [vmem:[%s199 + $0xe8] sm:$0xff] %vm237, %v3701
      %3744 = vst.msk [vmem:[%s199 + $0xf0] sm:$0xff] %vm237, %v3706
      %3745 = vst.msk [vmem:[%s199 + $0xf8] sm:$0xff] %vm237, %v3711
      %s3746 = smul.u32 32, %s15
      %p3747 = scmp.lt.s32.totalorder %s3746, 95
      %s3748 = scalar_select %p3747, %s3746, 95
      %s3749 = smul.addr %s3748, 8
      %s3750 = scalar_lea.vmem %s4, %s3749
      // Predicated region
      $region37: #{tpu_custom_call.1} parent=35 // pred_check
        %p3751 = pneg %p122
      $region38: #{tpu_custom_call.1} parent=35 // pred_check_branch
        %3753 = sbr.rel (%p3751) target = $region40
      $region39: #{tpu_custom_call.1} parent=35 // pred_region
        %s3754 = smul.u32 32, %s15
      $region40: #{tpu_custom_call.1} parent=35 // pred_fallthru
        _
    $region36: #{tpu_custom_call.1} parent=5 // pred_fallthru
      _
    %p3755 = scmp.le.s32.totalorder 2, %s10
    // Predicated region
    $region41: #{tpu_custom_call.1} parent=5 // pred_check
      %p3756 = pneg %p3755
    $region42: #{tpu_custom_call.1} parent=5 // pred_check_branch
      %3758 = sbr.rel (%p3756) target = $region44
    $region43: #{tpu_custom_call.1} parent=5 // pred_region
      %s3759 = ssub.s32 %s10, 2
      // Predicated region
      $region45: #{tpu_custom_call.1} parent=43 // pred_check
        %p3760 = pneg %p128
      $region46: #{tpu_custom_call.1} parent=43 // pred_check_branch
        %3762 = sbr.rel (%p3760) target = $region48
      $region47: #{tpu_custom_call.1} parent=43 // pred_region
        %s3763 = smul.u32 32, %s16
        %p3764 = scmp.lt.s32.totalorder %s3763, 95
        %s3765 = scalar_select %p3764, %s3763, 95
        %s3766 = smul.addr %s3765, 8
        %s3767 = scalar_lea.vmem %s4, %s3766
      $region48: #{tpu_custom_call.1} parent=43 // pred_fallthru
        _
    $region44: #{tpu_custom_call.1} parent=5 // pred_fallthru
      _
  $region6: #{tpu_custom_call.1} parent=0 // loop_footer
    %s14 = sadd.s32 1, %s10
  $region7: #{tpu_custom_call.1} parent=0 // loop_footer_branch
    %9 = sbr.rel target = $region3
  $region8: #{tpu_custom_call.1} parent=0 // loop_exit
    _

</llo_original>
